<compile_context>
chip_gen: v7x
topology: tpu7x:2x2x1
jax: 0.10.0
libtpu: 0.0.40
codegen_flags: <defaults>
</compile_context>

<pallas_src>
import functools

import jax
import jax.numpy as jnp
from jax.experimental import pallas as pl
from jax.experimental.pallas import tpu as pltpu

BN_EPS = 1e-5


# ----------------------------------------------------------------------------
# Pallas kernels
# ----------------------------------------------------------------------------
def _mm_bias_kernel(x_ref, w_ref, b_ref, o_ref, *, relu):
    """out = x @ w + b [, relu].  bf16 operands, f32 accumulate/epilogue."""
    acc = jnp.dot(x_ref[...], w_ref[...], preferred_element_type=jnp.float32)
    out = acc + b_ref[...]
    if relu:
        out = jnp.maximum(out, 0.0)
    o_ref[...] = out.astype(o_ref.dtype)


def matmul_bias(x, w, b, *, relu, out_dtype, tm=256):
    """x:(M,K) bf16, w:(K,N) bf16, b:(1,N) f32 -> (M,N) out_dtype."""
    M, K = x.shape
    N = w.shape[1]
    tm = min(tm, M)
    return pl.pallas_call(
        functools.partial(_mm_bias_kernel, relu=relu),
        out_shape=jax.ShapeDtypeStruct((M, N), out_dtype),
        grid=(pl.cdiv(M, tm),),
        in_specs=[
            pl.BlockSpec((tm, K), lambda i: (i, 0)),
            pl.BlockSpec((K, N), lambda i: (0, 0)),
            pl.BlockSpec((1, N), lambda i: (0, 0)),
        ],
        out_specs=pl.BlockSpec((tm, N), lambda i: (i, 0)),
        compiler_params=pltpu.CompilerParams(
            dimension_semantics=("parallel",)),
    )(x, w, b)


def _conv3x3_kernel(x_ref, w_ref, b_ref, o_ref, *, Wp, Mw, relu):
    """Fused 3x3 conv (stride 1) for one image.

    x_ref : (1, R, Cin)   flattened padded image rows (R >= Hp*Wp + 8 slack)
    w_ref : (9, Cin, Cout) BN-folded weights (kh*3+kw major)
    b_ref : (1, Cout)      BN-folded bias
    o_ref : (1, Mw, Cout)  "wide" output, Mw = Ho*Wp (columns w>=Wo are junk)
    """
    cout = o_ref.shape[-1]
    acc = jnp.zeros((Mw, cout), jnp.float32)
    for kh in range(3):
        for kw in range(3):
            shift = kh * Wp + kw
            patch = x_ref[0, shift:shift + Mw, :]          # contiguous 2-D slice
            acc = acc + jnp.dot(patch, w_ref[kh * 3 + kw],
                                preferred_element_type=jnp.float32)
    out = acc + b_ref[...]
    if relu:
        out = jnp.maximum(out, 0.0)
    o_ref[0] = out.astype(o_ref.dtype)


def conv3x3_bn(x_nhwc, w9, b, *, stride, relu):
    """3x3 conv (pad=1, bias=False) + folded BN [+ ReLU].  x is NHWC bf16."""
    N, H, W, Cin = x_nhwc.shape
    Cout = w9.shape[-1]
    Ho = (H + 2 - 3) // stride + 1
    Wo = (W + 2 - 3) // stride + 1
    xp = jnp.pad(x_nhwc, ((0, 0), (1, 1), (1, 1), (0, 0)))
    Hp, Wp = H + 2, W + 2

    if stride == 1:
        Mw = Ho * Wp                       # "wide" output rows (h, w in [0,Wp))
        R = Hp * Wp + 8                    # slack so the largest shift stays in-bounds
        xf = jnp.pad(xp.reshape(N, Hp * Wp, Cin),
                     ((0, 0), (0, R - Hp * Wp), (0, 0)))
        out_wide = pl.pallas_call(
            functools.partial(_conv3x3_kernel, Wp=Wp, Mw=Mw, relu=relu),
            out_shape=jax.ShapeDtypeStruct((N, Mw, Cout), jnp.bfloat16),
            grid=(N,),
            in_specs=[
                pl.BlockSpec((1, R, Cin), lambda n: (n, 0, 0)),
                pl.BlockSpec((9, Cin, Cout), lambda n: (0, 0, 0)),
                pl.BlockSpec((1, Cout), lambda n: (0, 0)),
            ],
            out_specs=pl.BlockSpec((1, Mw, Cout), lambda n: (n, 0, 0)),
            compiler_params=pltpu.CompilerParams(
                dimension_semantics=("parallel",)),
        )(xf, w9, b)
        # discard junk columns (w >= Wo); plain cheap XLA slice in the wrapper
        return out_wide.reshape(N, Ho, Wp, Cout)[:, :, :Wo, :]

    # stride > 1 fallback: bf16 im2col in the wrapper + fused matmul kernel.
    cols = [xp[:, kh:kh + stride * Ho:stride, kw:kw + stride * Wo:stride, :]
            for kh in range(3) for kw in range(3)]
    patches = jnp.concatenate(cols, axis=-1).reshape(N * Ho * Wo, 9 * Cin)
    w_mat = w9.reshape(9 * Cin, Cout)
    out = matmul_bias(patches, w_mat, b, relu=relu, out_dtype=jnp.bfloat16)
    return out.reshape(N, Ho, Wo, Cout)


def _tail_fused_kernel(x_ref, w_ref, b_ref, xs_ref, ws_ref, bs_ref, o_ref):
    """relu( x@w + b  +  xs@ws + bs ) : conv3+BN3 + shortcut conv+BN + add."""
    acc = jnp.dot(x_ref[...], w_ref[...],
                  preferred_element_type=jnp.float32) + b_ref[...]
    acc = acc + jnp.dot(xs_ref[...], ws_ref[...],
                        preferred_element_type=jnp.float32) + bs_ref[...]
    o_ref[...] = jnp.maximum(acc, 0.0).astype(o_ref.dtype)


def tail_fused(x, w, b, xs, ws, bs, tm=256):
    M, K = x.shape
    N = w.shape[1]
    Ks = xs.shape[1]
    tm = min(tm, M)
    return pl.pallas_call(
        _tail_fused_kernel,
        out_shape=jax.ShapeDtypeStruct((M, N), jnp.float32),
        grid=(pl.cdiv(M, tm),),
        in_specs=[
            pl.BlockSpec((tm, K), lambda i: (i, 0)),
            pl.BlockSpec((K, N), lambda i: (0, 0)),
            pl.BlockSpec((1, N), lambda i: (0, 0)),
            pl.BlockSpec((tm, Ks), lambda i: (i, 0)),
            pl.BlockSpec((Ks, N), lambda i: (0, 0)),
            pl.BlockSpec((1, N), lambda i: (0, 0)),
        ],
        out_specs=pl.BlockSpec((tm, N), lambda i: (i, 0)),
        compiler_params=pltpu.CompilerParams(
            dimension_semantics=("parallel",)),
    )(x, w, b, xs, ws, bs)


def _tail_identity_kernel(x_ref, w_ref, b_ref, res_ref, o_ref):
    """relu( x@w + b + residual ) : conv3+BN3 + identity shortcut + add."""
    acc = jnp.dot(x_ref[...], w_ref[...],
                  preferred_element_type=jnp.float32) + b_ref[...]
    acc = acc + res_ref[...].astype(jnp.float32)
    o_ref[...] = jnp.maximum(acc, 0.0).astype(o_ref.dtype)


def tail_identity(x, w, b, res, tm=256):
    M, K = x.shape
    N = w.shape[1]
    tm = min(tm, M)
    return pl.pallas_call(
        _tail_identity_kernel,
        out_shape=jax.ShapeDtypeStruct((M, N), jnp.float32),
        grid=(pl.cdiv(M, tm),),
        in_specs=[
            pl.BlockSpec((tm, K), lambda i: (i, 0)),
            pl.BlockSpec((K, N), lambda i: (0, 0)),
            pl.BlockSpec((1, N), lambda i: (0, 0)),
            pl.BlockSpec((tm, N), lambda i: (i, 0)),
        ],
        out_specs=pl.BlockSpec((tm, N), lambda i: (i, 0)),
        compiler_params=pltpu.CompilerParams(
            dimension_semantics=("parallel",)),
    )(x, w, b, res)


# ----------------------------------------------------------------------------
# One-time parameter prep (BN fold + weight re-layout, hoisted off hot path)
# ----------------------------------------------------------------------------
def _fold(w_oihw, bn):
    gamma, beta, mean, var = bn
    scale = gamma / jnp.sqrt(var + BN_EPS)          # (Cout,)
    bias = (beta - mean * scale).reshape(1, -1).astype(jnp.float32)
    w = w_oihw * scale[:, None, None, None]          # fold scale into weights
    cout, cin, kh, kw = w.shape
    if kh == 1 and kw == 1:
        w_mat = jnp.transpose(w.reshape(cout, cin), (1, 0))          # (Cin, Cout)
    else:
        w_mat = jnp.transpose(w, (2, 3, 1, 0)).reshape(kh * kw, cin, cout)
    return w_mat.astype(jnp.bfloat16), bias


def prepare_params(raw):
    p = {}
    p['w1'], p['b1'] = _fold(raw['conv1_w'], raw['bn1'])
    p['w2'], p['b2'] = _fold(raw['conv2_w'], raw['bn2'])
    p['w3'], p['b3'] = _fold(raw['conv3_w'], raw['bn3'])
    if 'sc_w' in raw:
        p['wsc'], p['bsc'] = _fold(raw['sc_w'], raw['sc_bn'])
    return p


# ----------------------------------------------------------------------------
# Bottleneck forward
# ----------------------------------------------------------------------------
@functools.partial(jax.jit, static_argnames=('stride',))
def bottleneck_forward(params, x_nchw, stride=1):
    x = jnp.transpose(x_nchw, (0, 2, 3, 1))                   # NCHW -> NHWC
    N, H, W, Cin = x.shape
    planes = params['w1'].shape[1]
    cout = params['w3'].shape[1]

    # conv1 (1x1) + BN1 + ReLU
    out1 = matmul_bias(x.reshape(N * H * W, Cin).astype(jnp.bfloat16),
                       params['w1'], params['b1'],
                       relu=True, out_dtype=jnp.bfloat16)
    out1 = out1.reshape(N, H, W, planes)

    # conv2 (3x3, stride, pad=1) + BN2 + ReLU
    out2 = conv3x3_bn(out1, params['w2'], params['b2'], stride=stride, relu=True)
    _, Ho, Wo, _ = out2.shape
    M2 = N * Ho * Wo
    x2 = out2.reshape(M2, planes)

    # conv3 (1x1) + BN3  +  shortcut  +  residual add  +  ReLU   (one kernel)
    xs = x[:, ::stride, ::stride, :].reshape(M2, Cin)
    if 'wsc' in params:
        out = tail_fused(x2, params['w3'], params['b3'],
                         xs.astype(jnp.bfloat16), params['wsc'], params['bsc'])
    else:
        out = tail_identity(x2, params['w3'], params['b3'], xs)

    return jnp.transpose(out.reshape(N, Ho, Wo, cout), (0, 3, 1, 2))  # -> NCHW


# ----------------------------------------------------------------------------
# Deterministic raw params (same shapes as the PyTorch module) + reference
# ----------------------------------------------------------------------------
def init_raw_params(key, in_planes, planes, stride, expansion=4):
    keys = jax.random.split(key, 32)
    ki = iter(keys)

    def conv_w(cout, cin, k):
        fan_in = cin * k * k
        return jax.random.normal(next(ki), (cout, cin, k, k),
                                 jnp.float32) * (2.0 / fan_in) ** 0.5

    def bn(c):
        g = 1.0 + 0.1 * jax.random.normal(next(ki), (c,), jnp.float32)
        b = 0.1 * jax.random.normal(next(ki), (c,), jnp.float32)
        m = 0.1 * jax.random.normal(next(ki), (c,), jnp.float32)
        v = 1.0 + 0.1 * jax.random.uniform(next(ki), (c,), jnp.float32)
        return (g, b, m, v)

    p = {'conv1_w': conv_w(planes, in_planes, 1), 'bn1': bn(planes),
         'conv2_w': conv_w(planes, planes, 3), 'bn2': bn(planes),
         'conv3_w': conv_w(expansion * planes, planes, 1),
         'bn3': bn(expansion * planes)}
    if stride != 1 or in_planes != expansion * planes:
        p['sc_w'] = conv_w(expansion * planes, in_planes, 1)
        p['sc_bn'] = bn(expansion * planes)
    return p


def reference_forward(raw, x_nchw, stride=1):
    """Pure-JAX (XLA) reference: conv -> eval-mode BN -> relu chain."""
    def bn(y, p):
        g, b, m, v = p
        inv = g / jnp.sqrt(v + BN_EPS)
        return y * inv[None, :, None, None] + (b - m * inv)[None, :, None, None]

    def conv(y, w, s, pad):
        return jax.lax.conv_general_dilated(
            y, w, window_strides=(s, s), padding=[(pad, pad), (pad, pad)],
            dimension_numbers=('NCHW', 'OIHW', 'NCHW'),
            precision=jax.lax.Precision.HIGHEST)

    out = jax.nn.relu(bn(conv(x_nchw, raw['conv1_w'], 1, 0), raw['bn1']))
    out = jax.nn.relu(bn(conv(out, raw['conv2_w'], stride, 1), raw['bn2']))
    out = bn(conv(out, raw['conv3_w'], 1, 0), raw['bn3'])
    if 'sc_w' in raw:
        sc = bn(conv(x_nchw, raw['sc_w'], stride, 0), raw['sc_bn'])
    else:
        sc = x_nchw
    return jax.nn.relu(out + sc)


if __name__ == "__main__":
    key = jax.random.PRNGKey(0)
    kp, kx = jax.random.split(key)

    in_planes, planes, stride = 64, 32, 1     # shortcut conv path is exercised
    raw = init_raw_params(kp, in_planes, planes, stride)
    params = prepare_params(raw)              # one-time BN fold + bf16 re-layout

    x = jax.random.normal(kx, (2, in_planes, 16, 16), jnp.float32)  # NCHW
    out = bottleneck_forward(params, x, stride=stride)
    jax.block_until_ready(out)

    assert out.shape == (2, 4 * planes, 16, 16), out.shape
    assert bool(jnp.all(jnp.isfinite(out)))

    ref = reference_forward(raw, x, stride)
    rel_err = jnp.linalg.norm(out - ref) / (jnp.linalg.norm(ref) + 1e-12)
    assert float(rel_err) < 5e-2, float(rel_err)   # bf16 MXU tolerance

    print("KERNEL_OK")
</pallas_src>

<mosaic_0001>
module attributes {stable_mosaic.version = 11 : i64} {
  func.func @_mm_bias_kernel(%arg0: i32, %arg1: memref<256x64xbf16, #tpu.memory_space<vmem>>, %arg2: memref<64x32xbf16, #tpu.memory_space<vmem>>, %arg3: memref<1x32xf32, #tpu.memory_space<vmem>>, %arg4: memref<256x32xbf16, #tpu.memory_space<vmem>>) attributes {dimension_semantics = [#tpu.dimension_semantics<parallel>], iteration_bounds = array<i64: 2>, scalar_prefetch = 0 : i64, scratch_operands = 0 : i64, tpu.core_type = #tpu.core_type<tc>, window_params = [{transform_indices = @transform_0, window_bounds = array<i64: 256, 64>}, {pipeline_mode = #tpu.pipeline_mode<synchronous>, transform_indices = @transform_1, window_bounds = array<i64: 64, 32>}, {pipeline_mode = #tpu.pipeline_mode<synchronous>, transform_indices = @transform_2, window_bounds = array<i64: 1, 32>}, {transform_indices = @transform_3, window_bounds = array<i64: 256, 32>}]} {
    %c0 = arith.constant 0 : index
    %c0_0 = arith.constant 0 : index
    %0 = vector.load %arg1[%c0, %c0_0] : memref<256x64xbf16, #tpu.memory_space<vmem>>, vector<256x64xbf16>
    %c0_1 = arith.constant 0 : index
    %c0_2 = arith.constant 0 : index
    %1 = vector.load %arg2[%c0_1, %c0_2] : memref<64x32xbf16, #tpu.memory_space<vmem>>, vector<64x32xbf16>
    %cst = arith.constant dense<0.000000e+00> : vector<256x32xf32>
    %2 = tpu.matmul %0, %1, %cst {dimension_numbers = #tpu.dot_dimension_numbers<[1], [0], [0], [1], [0, 0, 1, 1], [], []>} : vector<256x64xbf16>, vector<64x32xbf16>, vector<256x32xf32> -> vector<256x32xf32>
    %c0_3 = arith.constant 0 : index
    %c0_4 = arith.constant 0 : index
    %3 = vector.load %arg3[%c0_3, %c0_4] : memref<1x32xf32, #tpu.memory_space<vmem>>, vector<1x32xf32>
    %4 = vector.broadcast %3 : vector<1x32xf32> to vector<256x32xf32>
    %5 = arith.addf %2, %4 : vector<256x32xf32>
    %cst_5 = arith.constant 0.000000e+00 : f32
    %6 = vector.broadcast %cst_5 : f32 to vector<256x32xf32>
    %7 = arith.maximumf %5, %6 : vector<256x32xf32>
    %8 = arith.truncf %7 : vector<256x32xf32> to vector<256x32xbf16>
    %c0_6 = arith.constant 0 : index
    %c0_7 = arith.constant 0 : index
    %9 = vector.load %arg4[%c0_6, %c0_7] : memref<256x32xbf16, #tpu.memory_space<vmem>>, vector<256x32xbf16>
    tpu.vector_store %arg4[%c0_6, %c0_7], %8 {strides = array<i32>} : memref<256x32xbf16, #tpu.memory_space<vmem>>, vector<256x32xbf16>,
    return
  }
  func.func @transform_0(%arg0: i32) -> (i32, i32) {
    %c0_i32 = arith.constant 0 : i32
    %c0_i32_0 = arith.constant 0 : i32
    return %arg0, %c0_i32 : i32, i32
  }
  func.func @transform_1(%arg0: i32) -> (i32, i32) {
    %c0_i32 = arith.constant 0 : i32
    %c0_i32_0 = arith.constant 0 : i32
    %c0_i32_1 = arith.constant 0 : i32
    return %c0_i32, %c0_i32_0 : i32, i32
  }
  func.func @transform_2(%arg0: i32) -> (i32, i32) {
    %c0_i32 = arith.constant 0 : i32
    %c0_i32_0 = arith.constant 0 : i32
    %c0_i32_1 = arith.constant 0 : i32
    return %c0_i32, %c0_i32_0 : i32, i32
  }
  func.func @transform_3(%arg0: i32) -> (i32, i32) {
    %c0_i32 = arith.constant 0 : i32
    %c0_i32_0 = arith.constant 0 : i32
    return %arg0, %c0_i32 : i32, i32
  }
}

module attributes {stable_mosaic.version = 11 : i64} {
  func.func @_conv3x3_kernel(%arg0: i32, %arg1: memref<1x332x32xbf16, #tpu.memory_space<vmem>>, %arg2: memref<9x32x32xbf16, #tpu.memory_space<vmem>>, %arg3: memref<1x32xf32, #tpu.memory_space<vmem>>, %arg4: memref<1x288x32xbf16, #tpu.memory_space<vmem>>) attributes {dimension_semantics = [#tpu.dimension_semantics<parallel>], iteration_bounds = array<i64: 2>, scalar_prefetch = 0 : i64, scratch_operands = 0 : i64, tpu.core_type = #tpu.core_type<tc>, window_params = [{transform_indices = @transform_0, window_bounds = array<i64: 1, 332, 32>}, {pipeline_mode = #tpu.pipeline_mode<synchronous>, transform_indices = @transform_1, window_bounds = array<i64: 9, 32, 32>}, {pipeline_mode = #tpu.pipeline_mode<synchronous>, transform_indices = @transform_2, window_bounds = array<i64: 1, 32>}, {transform_indices = @transform_3, window_bounds = array<i64: 1, 288, 32>}]} {
    %cst = arith.constant 0.000000e+00 : f32
    %0 = vector.broadcast %cst : f32 to vector<288x32xf32>
    %c0 = arith.constant 0 : index
    %c0_0 = arith.constant 0 : index
    %c0_1 = arith.constant 0 : index
    %1 = vector.load %arg1[%c0, %c0_0, %c0_1] : memref<1x332x32xbf16, #tpu.memory_space<vmem>>, vector<1x288x32xbf16>
    %2 = vector.shape_cast %1 : vector<1x288x32xbf16> to vector<288x32xbf16>
    %c0_2 = arith.constant 0 : index
    %c0_3 = arith.constant 0 : index
    %c0_4 = arith.constant 0 : index
    %3 = vector.load %arg2[%c0_2, %c0_3, %c0_4] : memref<9x32x32xbf16, #tpu.memory_space<vmem>>, vector<1x32x32xbf16>
    %4 = vector.shape_cast %3 : vector<1x32x32xbf16> to vector<32x32xbf16>
    %cst_5 = arith.constant dense<0.000000e+00> : vector<288x32xf32>
    %5 = tpu.matmul %2, %4, %cst_5 {dimension_numbers = #tpu.dot_dimension_numbers<[1], [0], [0], [1], [0, 0, 1, 1], [], []>} : vector<288x32xbf16>, vector<32x32xbf16>, vector<288x32xf32> -> vector<288x32xf32>
    %6 = arith.addf %0, %5 : vector<288x32xf32>
    %c0_6 = arith.constant 0 : index
    %c1 = arith.constant 1 : index
    %c0_7 = arith.constant 0 : index
    %7 = vector.load %arg1[%c0_6, %c1, %c0_7] : memref<1x332x32xbf16, #tpu.memory_space<vmem>>, vector<1x288x32xbf16>
    %8 = vector.shape_cast %7 : vector<1x288x32xbf16> to vector<288x32xbf16>
    %c1_8 = arith.constant 1 : index
    %c0_9 = arith.constant 0 : index
    %c0_10 = arith.constant 0 : index
    %9 = vector.load %arg2[%c1_8, %c0_9, %c0_10] : memref<9x32x32xbf16, #tpu.memory_space<vmem>>, vector<1x32x32xbf16>
    %10 = vector.shape_cast %9 : vector<1x32x32xbf16> to vector<32x32xbf16>
    %cst_11 = arith.constant dense<0.000000e+00> : vector<288x32xf32>
    %11 = tpu.matmul %8, %10, %cst_11 {dimension_numbers = #tpu.dot_dimension_numbers<[1], [0], [0], [1], [0, 0, 1, 1], [], []>} : vector<288x32xbf16>, vector<32x32xbf16>, vector<288x32xf32> -> vector<288x32xf32>
    %12 = arith.addf %6, %11 : vector<288x32xf32>
    %c0_12 = arith.constant 0 : index
    %c2 = arith.constant 2 : index
    %c0_13 = arith.constant 0 : index
    %13 = vector.load %arg1[%c0_12, %c2, %c0_13] : memref<1x332x32xbf16, #tpu.memory_space<vmem>>, vector<1x288x32xbf16>
    %14 = vector.shape_cast %13 : vector<1x288x32xbf16> to vector<288x32xbf16>
    %c2_14 = arith.constant 2 : index
    %c0_15 = arith.constant 0 : index
    %c0_16 = arith.constant 0 : index
    %15 = vector.load %arg2[%c2_14, %c0_15, %c0_16] : memref<9x32x32xbf16, #tpu.memory_space<vmem>>, vector<1x32x32xbf16>
    %16 = vector.shape_cast %15 : vector<1x32x32xbf16> to vector<32x32xbf16>
    %cst_17 = arith.constant dense<0.000000e+00> : vector<288x32xf32>
    %17 = tpu.matmul %14, %16, %cst_17 {dimension_numbers = #tpu.dot_dimension_numbers<[1], [0], [0], [1], [0, 0, 1, 1], [], []>} : vector<288x32xbf16>, vector<32x32xbf16>, vector<288x32xf32> -> vector<288x32xf32>
    %18 = arith.addf %12, %17 : vector<288x32xf32>
    %c0_18 = arith.constant 0 : index
    %c18 = arith.constant 18 : index
    %c0_19 = arith.constant 0 : index
    %19 = vector.load %arg1[%c0_18, %c18, %c0_19] : memref<1x332x32xbf16, #tpu.memory_space<vmem>>, vector<1x288x32xbf16>
    %20 = vector.shape_cast %19 : vector<1x288x32xbf16> to vector<288x32xbf16>
    %c3 = arith.constant 3 : index
    %c0_20 = arith.constant 0 : index
    %c0_21 = arith.constant 0 : index
    %21 = vector.load %arg2[%c3, %c0_20, %c0_21] : memref<9x32x32xbf16, #tpu.memory_space<vmem>>, vector<1x32x32xbf16>
    %22 = vector.shape_cast %21 : vector<1x32x32xbf16> to vector<32x32xbf16>
    %cst_22 = arith.constant dense<0.000000e+00> : vector<288x32xf32>
    %23 = tpu.matmul %20, %22, %cst_22 {dimension_numbers = #tpu.dot_dimension_numbers<[1], [0], [0], [1], [0, 0, 1, 1], [], []>} : vector<288x32xbf16>, vector<32x32xbf16>, vector<288x32xf32> -> vector<288x32xf32>
    %24 = arith.addf %18, %23 : vector<288x32xf32>
    %c0_23 = arith.constant 0 : index
    %c19 = arith.constant 19 : index
    %c0_24 = arith.constant 0 : index
    %25 = vector.load %arg1[%c0_23, %c19, %c0_24] : memref<1x332x32xbf16, #tpu.memory_space<vmem>>, vector<1x288x32xbf16>
    %26 = vector.shape_cast %25 : vector<1x288x32xbf16> to vector<288x32xbf16>
    %c4 = arith.constant 4 : index
    %c0_25 = arith.constant 0 : index
    %c0_26 = arith.constant 0 : index
    %27 = vector.load %arg2[%c4, %c0_25, %c0_26] : memref<9x32x32xbf16, #tpu.memory_space<vmem>>, vector<1x32x32xbf16>
    %28 = vector.shape_cast %27 : vector<1x32x32xbf16> to vector<32x32xbf16>
    %cst_27 = arith.constant dense<0.000000e+00> : vector<288x32xf32>
    %29 = tpu.matmul %26, %28, %cst_27 {dimension_numbers = #tpu.dot_dimension_numbers<[1], [0], [0], [1], [0, 0, 1, 1], [], []>} : vector<288x32xbf16>, vector<32x32xbf16>, vector<288x32xf32> -> vector<288x32xf32>
    %30 = arith.addf %24, %29 : vector<288x32xf32>
    %c0_28 = arith.constant 0 : index
    %c20 = arith.constant 20 : index
    %c0_29 = arith.constant 0 : index
    %31 = vector.load %arg1[%c0_28, %c20, %c0_29] : memref<1x332x32xbf16, #tpu.memory_space<vmem>>, vector<1x288x32xbf16>
    %32 = vector.shape_cast %31 : vector<1x288x32xbf16> to vector<288x32xbf16>
    %c5 = arith.constant 5 : index
    %c0_30 = arith.constant 0 : index
    %c0_31 = arith.constant 0 : index
    %33 = vector.load %arg2[%c5, %c0_30, %c0_31] : memref<9x32x32xbf16, #tpu.memory_space<vmem>>, vector<1x32x32xbf16>
    %34 = vector.shape_cast %33 : vector<1x32x32xbf16> to vector<32x32xbf16>
    %cst_32 = arith.constant dense<0.000000e+00> : vector<288x32xf32>
    %35 = tpu.matmul %32, %34, %cst_32 {dimension_numbers = #tpu.dot_dimension_numbers<[1], [0], [0], [1], [0, 0, 1, 1], [], []>} : vector<288x32xbf16>, vector<32x32xbf16>, vector<288x32xf32> -> vector<288x32xf32>
    %36 = arith.addf %30, %35 : vector<288x32xf32>
    %c0_33 = arith.constant 0 : index
    %c36 = arith.constant 36 : index
    %c0_34 = arith.constant 0 : index
    %37 = vector.load %arg1[%c0_33, %c36, %c0_34] : memref<1x332x32xbf16, #tpu.memory_space<vmem>>, vector<1x288x32xbf16>
    %38 = vector.shape_cast %37 : vector<1x288x32xbf16> to vector<288x32xbf16>
    %c6 = arith.constant 6 : index
    %c0_35 = arith.constant 0 : index
    %c0_36 = arith.constant 0 : index
    %39 = vector.load %arg2[%c6, %c0_35, %c0_36] : memref<9x32x32xbf16, #tpu.memory_space<vmem>>, vector<1x32x32xbf16>
    %40 = vector.shape_cast %39 : vector<1x32x32xbf16> to vector<32x32xbf16>
    %cst_37 = arith.constant dense<0.000000e+00> : vector<288x32xf32>
    %41 = tpu.matmul %38, %40, %cst_37 {dimension_numbers = #tpu.dot_dimension_numbers<[1], [0], [0], [1], [0, 0, 1, 1], [], []>} : vector<288x32xbf16>, vector<32x32xbf16>, vector<288x32xf32> -> vector<288x32xf32>
    %42 = arith.addf %36, %41 : vector<288x32xf32>
    %c0_38 = arith.constant 0 : index
    %c37 = arith.constant 37 : index
    %c0_39 = arith.constant 0 : index
    %43 = vector.load %arg1[%c0_38, %c37, %c0_39] : memref<1x332x32xbf16, #tpu.memory_space<vmem>>, vector<1x288x32xbf16>
    %44 = vector.shape_cast %43 : vector<1x288x32xbf16> to vector<288x32xbf16>
    %c7 = arith.constant 7 : index
    %c0_40 = arith.constant 0 : index
    %c0_41 = arith.constant 0 : index
    %45 = vector.load %arg2[%c7, %c0_40, %c0_41] : memref<9x32x32xbf16, #tpu.memory_space<vmem>>, vector<1x32x32xbf16>
    %46 = vector.shape_cast %45 : vector<1x32x32xbf16> to vector<32x32xbf16>
    %cst_42 = arith.constant dense<0.000000e+00> : vector<288x32xf32>
    %47 = tpu.matmul %44, %46, %cst_42 {dimension_numbers = #tpu.dot_dimension_numbers<[1], [0], [0], [1], [0, 0, 1, 1], [], []>} : vector<288x32xbf16>, vector<32x32xbf16>, vector<288x32xf32> -> vector<288x32xf32>
    %48 = arith.addf %42, %47 : vector<288x32xf32>
    %c0_43 = arith.constant 0 : index
    %c38 = arith.constant 38 : index
    %c0_44 = arith.constant 0 : index
    %49 = vector.load %arg1[%c0_43, %c38, %c0_44] : memref<1x332x32xbf16, #tpu.memory_space<vmem>>, vector<1x288x32xbf16>
    %50 = vector.shape_cast %49 : vector<1x288x32xbf16> to vector<288x32xbf16>
    %c8 = arith.constant 8 : index
    %c0_45 = arith.constant 0 : index
    %c0_46 = arith.constant 0 : index
    %51 = vector.load %arg2[%c8, %c0_45, %c0_46] : memref<9x32x32xbf16, #tpu.memory_space<vmem>>, vector<1x32x32xbf16>
    %52 = vector.shape_cast %51 : vector<1x32x32xbf16> to vector<32x32xbf16>
    %cst_47 = arith.constant dense<0.000000e+00> : vector<288x32xf32>
    %53 = tpu.matmul %50, %52, %cst_47 {dimension_numbers = #tpu.dot_dimension_numbers<[1], [0], [0], [1], [0, 0, 1, 1], [], []>} : vector<288x32xbf16>, vector<32x32xbf16>, vector<288x32xf32> -> vector<288x32xf32>
    %54 = arith.addf %48, %53 : vector<288x32xf32>
    %c0_48 = arith.constant 0 : index
    %c0_49 = arith.constant 0 : index
    %55 = vector.load %arg3[%c0_48, %c0_49] : memref<1x32xf32, #tpu.memory_space<vmem>>, vector<1x32xf32>
    %56 = vector.broadcast %55 : vector<1x32xf32> to vector<288x32xf32>
    %57 = arith.addf %54, %56 : vector<288x32xf32>
    %cst_50 = arith.constant 0.000000e+00 : f32
    %58 = vector.broadcast %cst_50 : f32 to vector<288x32xf32>
    %59 = arith.maximumf %57, %58 : vector<288x32xf32>
    %60 = arith.truncf %59 : vector<288x32xf32> to vector<288x32xbf16>
    %c0_51 = arith.constant 0 : index
    %c0_52 = arith.constant 0 : index
    %c0_53 = arith.constant 0 : index
    %61 = vector.load %arg4[%c0_51, %c0_52, %c0_53] : memref<1x288x32xbf16, #tpu.memory_space<vmem>>, vector<1x288x32xbf16>
    %62 = vector.shape_cast %61 : vector<1x288x32xbf16> to vector<288x32xbf16>
    %63 = vector.shape_cast %60 : vector<288x32xbf16> to vector<1x288x32xbf16>
    tpu.vector_store %arg4[%c0_51, %c0_52, %c0_53], %63 {strides = array<i32>} : memref<1x288x32xbf16, #tpu.memory_space<vmem>>, vector<1x288x32xbf16>,
    return
  }
  func.func @transform_0(%arg0: i32) -> (i32, i32, i32) {
    %c0_i32 = arith.constant 0 : i32
    %c0_i32_0 = arith.constant 0 : i32
    %c0_i32_1 = arith.constant 0 : i32
    return %arg0, %c0_i32, %c0_i32_0 : i32, i32, i32
  }
  func.func @transform_1(%arg0: i32) -> (i32, i32, i32) {
    %c0_i32 = arith.constant 0 : i32
    %c0_i32_0 = arith.constant 0 : i32
    %c0_i32_1 = arith.constant 0 : i32
    %c0_i32_2 = arith.constant 0 : i32
    return %c0_i32, %c0_i32_0, %c0_i32_1 : i32, i32, i32
  }
  func.func @transform_2(%arg0: i32) -> (i32, i32) {
    %c0_i32 = arith.constant 0 : i32
    %c0_i32_0 = arith.constant 0 : i32
    %c0_i32_1 = arith.constant 0 : i32
    return %c0_i32, %c0_i32_0 : i32, i32
  }
  func.func @transform_3(%arg0: i32) -> (i32, i32, i32) {
    %c0_i32 = arith.constant 0 : i32
    %c0_i32_0 = arith.constant 0 : i32
    %c0_i32_1 = arith.constant 0 : i32
    return %arg0, %c0_i32, %c0_i32_0 : i32, i32, i32
  }
}

module attributes {stable_mosaic.version = 11 : i64} {
  func.func @_tail_fused_kernel(%arg0: i32, %arg1: memref<256x32xbf16, #tpu.memory_space<vmem>>, %arg2: memref<32x128xbf16, #tpu.memory_space<vmem>>, %arg3: memref<1x128xf32, #tpu.memory_space<vmem>>, %arg4: memref<256x64xbf16, #tpu.memory_space<vmem>>, %arg5: memref<64x128xbf16, #tpu.memory_space<vmem>>, %arg6: memref<1x128xf32, #tpu.memory_space<vmem>>, %arg7: memref<256x128xf32, #tpu.memory_space<vmem>>) attributes {dimension_semantics = [#tpu.dimension_semantics<parallel>], iteration_bounds = array<i64: 2>, scalar_prefetch = 0 : i64, scratch_operands = 0 : i64, tpu.core_type = #tpu.core_type<tc>, window_params = [{transform_indices = @transform_0, window_bounds = array<i64: 256, 32>}, {pipeline_mode = #tpu.pipeline_mode<synchronous>, transform_indices = @transform_1, window_bounds = array<i64: 32, 128>}, {pipeline_mode = #tpu.pipeline_mode<synchronous>, transform_indices = @transform_2, window_bounds = array<i64: 1, 128>}, {transform_indices = @transform_3, window_bounds = array<i64: 256, 64>}, {pipeline_mode = #tpu.pipeline_mode<synchronous>, transform_indices = @transform_4, window_bounds = array<i64: 64, 128>}, {pipeline_mode = #tpu.pipeline_mode<synchronous>, transform_indices = @transform_5, window_bounds = array<i64: 1, 128>}, {transform_indices = @transform_6, window_bounds = array<i64: 256, 128>}]} {
    %c0 = arith.constant 0 : index
    %c0_0 = arith.constant 0 : index
    %0 = vector.load %arg1[%c0, %c0_0] : memref<256x32xbf16, #tpu.memory_space<vmem>>, vector<256x32xbf16>
    %c0_1 = arith.constant 0 : index
    %c0_2 = arith.constant 0 : index
    %1 = vector.load %arg2[%c0_1, %c0_2] : memref<32x128xbf16, #tpu.memory_space<vmem>>, vector<32x128xbf16>
    %cst = arith.constant dense<0.000000e+00> : vector<256x128xf32>
    %2 = tpu.matmul %0, %1, %cst {dimension_numbers = #tpu.dot_dimension_numbers<[1], [0], [0], [1], [0, 0, 1, 1], [], []>} : vector<256x32xbf16>, vector<32x128xbf16>, vector<256x128xf32> -> vector<256x128xf32>
    %c0_3 = arith.constant 0 : index
    %c0_4 = arith.constant 0 : index
    %3 = vector.load %arg3[%c0_3, %c0_4] : memref<1x128xf32, #tpu.memory_space<vmem>>, vector<1x128xf32>
    %4 = vector.broadcast %3 : vector<1x128xf32> to vector<256x128xf32>
    %5 = arith.addf %2, %4 : vector<256x128xf32>
    %c0_5 = arith.constant 0 : index
    %c0_6 = arith.constant 0 : index
    %6 = vector.load %arg4[%c0_5, %c0_6] : memref<256x64xbf16, #tpu.memory_space<vmem>>, vector<256x64xbf16>
    %c0_7 = arith.constant 0 : index
    %c0_8 = arith.constant 0 : index
    %7 = vector.load %arg5[%c0_7, %c0_8] : memref<64x128xbf16, #tpu.memory_space<vmem>>, vector<64x128xbf16>
    %cst_9 = arith.constant dense<0.000000e+00> : vector<256x128xf32>
    %8 = tpu.matmul %6, %7, %cst_9 {dimension_numbers = #tpu.dot_dimension_numbers<[1], [0], [0], [1], [0, 0, 1, 1], [], []>} : vector<256x64xbf16>, vector<64x128xbf16>, vector<256x128xf32> -> vector<256x128xf32>
    %9 = arith.addf %5, %8 : vector<256x128xf32>
    %c0_10 = arith.constant 0 : index
    %c0_11 = arith.constant 0 : index
    %10 = vector.load %arg6[%c0_10, %c0_11] : memref<1x128xf32, #tpu.memory_space<vmem>>, vector<1x128xf32>
    %11 = vector.broadcast %10 : vector<1x128xf32> to vector<256x128xf32>
    %12 = arith.addf %9, %11 : vector<256x128xf32>
    %cst_12 = arith.constant 0.000000e+00 : f32
    %13 = vector.broadcast %cst_12 : f32 to vector<256x128xf32>
    %14 = arith.maximumf %12, %13 : vector<256x128xf32>
    %c0_13 = arith.constant 0 : index
    %c0_14 = arith.constant 0 : index
    %15 = vector.load %arg7[%c0_13, %c0_14] : memref<256x128xf32, #tpu.memory_space<vmem>>, vector<256x128xf32>
    tpu.vector_store %arg7[%c0_13, %c0_14], %14 {strides = array<i32>} : memref<256x128xf32, #tpu.memory_space<vmem>>, vector<256x128xf32>,
    return
  }
  func.func @transform_0(%arg0: i32) -> (i32, i32) {
    %c0_i32 = arith.constant 0 : i32
    %c0_i32_0 = arith.constant 0 : i32
    return %arg0, %c0_i32 : i32, i32
  }
  func.func @transform_1(%arg0: i32) -> (i32, i32) {
    %c0_i32 = arith.constant 0 : i32
    %c0_i32_0 = arith.constant 0 : i32
    %c0_i32_1 = arith.constant 0 : i32
    return %c0_i32, %c0_i32_0 : i32, i32
  }
  func.func @transform_2(%arg0: i32) -> (i32, i32) {
    %c0_i32 = arith.constant 0 : i32
    %c0_i32_0 = arith.constant 0 : i32
    %c0_i32_1 = arith.constant 0 : i32
    return %c0_i32, %c0_i32_0 : i32, i32
  }
  func.func @transform_3(%arg0: i32) -> (i32, i32) {
    %c0_i32 = arith.constant 0 : i32
    %c0_i32_0 = arith.constant 0 : i32
    return %arg0, %c0_i32 : i32, i32
  }
  func.func @transform_4(%arg0: i32) -> (i32, i32) {
    %c0_i32 = arith.constant 0 : i32
    %c0_i32_0 = arith.constant 0 : i32
    %c0_i32_1 = arith.constant 0 : i32
    return %c0_i32, %c0_i32_0 : i32, i32
  }
  func.func @transform_5(%arg0: i32) -> (i32, i32) {
    %c0_i32 = arith.constant 0 : i32
    %c0_i32_0 = arith.constant 0 : i32
    %c0_i32_1 = arith.constant 0 : i32
    return %c0_i32, %c0_i32_0 : i32, i32
  }
  func.func @transform_6(%arg0: i32) -> (i32, i32) {
    %c0_i32 = arith.constant 0 : i32
    %c0_i32_0 = arith.constant 0 : i32
    return %arg0, %c0_i32 : i32, i32
  }
}

</mosaic_0001>

<llo_original>
// kernel: bottleneck_forward.3
$region0: #{bottleneck_forward.3}
  #allocation0 [shape = 'u32[]', space=smem, size = 0x4, offset = 0x4, fixed_abs, tag = 'smem constant byte address 0x4 - core index']
  #allocation1 [shape = 'u32[144,128]{1,0:T(1,128)}', space=vmem, size = 0x12000, scoped, tag = 'internal scratch']
  %s0 = inlined_call_operand.vmem [shape: bf16[512,64], index: 0, kind: input, shape index: {}]
  %s1 = inlined_call_operand.vmem [shape: bf16[64,32], index: 1, kind: input, shape index: {}]
  %s2 = inlined_call_operand.vmem [shape: f32[1,32], index: 2, kind: input, shape index: {}]
  %s3 = inlined_call_operand.vmem [shape: bf16[512,32], index: 3, kind: output, shape index: {}]
  %s4 = sld [smem:[#allocation0]]
  $region45: #{bottleneck_forward.3} parent=0
    _
  %s6 = ssub.s32 1, %s4
  %s7 = scalar_select 0, %s6, %s4
  loop: start=0, step=1, limit=4
  $region2: #{bottleneck_forward.3} parent=0 // loop_pre_header
    _
  $region3: #{bottleneck_forward.3} parent=0 // loop_header
    %s9 = sphi 0, %s13
    %p10 = scmp.ge.s32.totalorder %s9, 4
    %s19 = sphi 0, %s21
    %s22 = sphi 0, %s19
    %s23 = sphi 0, %s22
    %s39 = sphi 0, %s23
    %s43 = sphi 0, %s43
    %s45 = sphi 0, %s43
    %s46 = sphi 0, %s45
    %s60 = sphi 0, %s46
    %s64 = sphi 0, %s64
    %s66 = sphi 0, %s64
    %s67 = sphi 0, %s66
    %s81 = sphi 0, %s67
    %s87 = sphi 0, %s89
    %s90 = sphi 0, %s87
    %s91 = sphi 0, %s90
    %s107 = sphi 0, %s91
  $region4: #{bottleneck_forward.3} parent=0 // loop_header_branch
    %12 = sbr.rel (%p10) target = $region8
  $region5: #{bottleneck_forward.3} parent=0 // loop_body
    %s14 = ssub.s32 %s9, 1
    %s15 = ssub.s32 %s9, 2
    %s16 = sadd.s32 %s9, 1
    %s17 = ssub.s32 %s9, %s16
    %p18 = scmp.eq.s32.totalorder %s17, 0
    %s20 = sadd.s32 %s19, 1
    %s21 = scalar_select %p18, %s19, %s20
    %p24 = pneg %p18
    %p25 = scmp.eq.s32.totalorder %s9, 1
    %p26 = por %p24, %p25
    %p27 = scmp.ne.s32.totalorder %s19, %s22
    %p28 = scmp.eq.s32.totalorder %s9, 0
    %p29 = por %p27, %p28
    %p30 = scmp.ne.s32.totalorder %s19, %s22
    %p31 = scmp.eq.s32.totalorder %s14, 1
    %p32 = por %p30, %p31
    %p33 = scmp.ne.s32.totalorder %s22, %s23
    %p34 = scmp.eq.s32.totalorder %s14, 0
    %p35 = por %p33, %p34
    %p36 = scmp.ne.s32.totalorder %s22, %s23
    %p37 = scmp.eq.s32.totalorder %s15, 1
    %p38 = por %p36, %p37
    %p40 = scmp.ne.s32.totalorder %s23, %s39
    %p41 = scmp.eq.s32.totalorder %s15, 0
    %p42 = por %p40, %p41
    %s44 = sadd.s32 %s43, 1
    %p47 = scmp.eq.s32.totalorder %s9, 1
    %p48 = scmp.ne.s32.totalorder %s43, %s45
    %p49 = scmp.eq.s32.totalorder %s9, 0
    %p50 = por %p48, %p49
    %p51 = scmp.ne.s32.totalorder %s43, %s45
    %p52 = scmp.eq.s32.totalorder %s14, 1
    %p53 = por %p51, %p52
    %p54 = scmp.ne.s32.totalorder %s45, %s46
    %p55 = scmp.eq.s32.totalorder %s14, 0
    %p56 = por %p54, %p55
    %p57 = scmp.ne.s32.totalorder %s45, %s46
    %p58 = scmp.eq.s32.totalorder %s15, 1
    %p59 = por %p57, %p58
    %p61 = scmp.ne.s32.totalorder %s46, %s60
    %p62 = scmp.eq.s32.totalorder %s15, 0
    %p63 = por %p61, %p62
    %s65 = sadd.s32 %s64, 1
    %p68 = scmp.eq.s32.totalorder %s9, 1
    %p69 = scmp.ne.s32.totalorder %s64, %s66
    %p70 = scmp.eq.s32.totalorder %s9, 0
    %p71 = por %p69, %p70
    %p72 = scmp.ne.s32.totalorder %s64, %s66
    %p73 = scmp.eq.s32.totalorder %s14, 1
    %p74 = por %p72, %p73
    %p75 = scmp.ne.s32.totalorder %s66, %s67
    %p76 = scmp.eq.s32.totalorder %s14, 0
    %p77 = por %p75, %p76
    %p78 = scmp.ne.s32.totalorder %s66, %s67
    %p79 = scmp.eq.s32.totalorder %s15, 1
    %p80 = por %p78, %p79
    %p82 = scmp.ne.s32.totalorder %s67, %s81
    %p83 = scmp.eq.s32.totalorder %s15, 0
    %p84 = por %p82, %p83
    %s85 = ssub.s32 %s9, %s16
    %p86 = scmp.eq.s32.totalorder %s85, 0
    %s88 = sadd.s32 %s87, 1
    %s89 = scalar_select %p86, %s87, %s88
    %p92 = pneg %p86
    %p93 = scmp.eq.s32.totalorder %s9, 1
    %p94 = por %p92, %p93
    %p95 = scmp.ne.s32.totalorder %s87, %s90
    %p96 = scmp.eq.s32.totalorder %s9, 0
    %p97 = por %p95, %p96
    %p98 = scmp.ne.s32.totalorder %s87, %s90
    %p99 = scmp.eq.s32.totalorder %s14, 1
    %p100 = por %p98, %p99
    %p101 = scmp.ne.s32.totalorder %s90, %s91
    %p102 = scmp.eq.s32.totalorder %s14, 0
    %p103 = por %p101, %p102
    %p104 = scmp.ne.s32.totalorder %s90, %s91
    %p105 = scmp.eq.s32.totalorder %s15, 1
    %p106 = por %p104, %p105
    %p108 = scmp.ne.s32.totalorder %s91, %s107
    %p109 = scmp.eq.s32.totalorder %s15, 0
    %p110 = por %p108, %p109
    %p111 = scmp.le.s32.totalorder 1, %s9
    %p112 = scmp.lt.s32.totalorder %s9, 3
    %p113 = pnand %p111, %p112
    %p114 = pneg %p113
    // Predicated region
    $region9: #{bottleneck_forward.3} parent=5 // pred_check
      _
    $region10: #{bottleneck_forward.3} parent=5 // pred_check_branch
      %116 = sbr.rel (%p113) target = $region12
    $region11: #{bottleneck_forward.3} parent=5 // pred_region
      %s117 = ssub.s32 %s9, 1
      // Predicated region
      $region13: #{bottleneck_forward.3} parent=11 // pred_check
        %p118 = pneg %p56
      $region14: #{bottleneck_forward.3} parent=11 // pred_check_branch
        %120 = sbr.rel (%p118) target = $region16
      $region15: #{bottleneck_forward.3} parent=11 // pred_region
        _
      $region16: #{bottleneck_forward.3} parent=11 // pred_fallthru
        _
      // Predicated region
      $region17: #{bottleneck_forward.3} parent=11 // pred_check
        %p121 = pneg %p77
      $region18: #{bottleneck_forward.3} parent=11 // pred_check_branch
        %123 = sbr.rel (%p121) target = $region20
      $region19: #{bottleneck_forward.3} parent=11 // pred_region
        _
      $region20: #{bottleneck_forward.3} parent=11 // pred_fallthru
        _
    $region12: #{bottleneck_forward.3} parent=5 // pred_fallthru
      _
    %p124 = scmp.lt.s32.totalorder %s9, 2
    // Predicated region
    $region21: #{bottleneck_forward.3} parent=5 // pred_check
      %p125 = pneg %p124
    $region22: #{bottleneck_forward.3} parent=5 // pred_check_branch
      %127 = sbr.rel (%p125) target = $region24
    $region23: #{bottleneck_forward.3} parent=5 // pred_region
      // Predicated region
      $region25: #{bottleneck_forward.3} parent=23 // pred_check
        %p128 = pneg %p29
      $region26: #{bottleneck_forward.3} parent=23 // pred_check_branch
        %130 = sbr.rel (%p128) target = $region28
      $region27: #{bottleneck_forward.3} parent=23 // pred_region
        %s131 = smul.u32 32, %s9
        %p132 = scmp.lt.s32.totalorder %s131, 63
        %s133 = scalar_select %p132, %s131, 63
        %s134 = smul.addr %s133, 4
        %s135 = scalar_lea.vmem %s0, %s134
        %s136 = smul.u32 32, %s9
      $region28: #{bottleneck_forward.3} parent=23 // pred_fallthru
        _
    $region24: #{bottleneck_forward.3} parent=5 // pred_fallthru
      _
    %p137 = scmp.le.s32.totalorder 1, %s9
    %p138 = scmp.lt.s32.totalorder %s9, 3
    %p139 = pnand %p137, %p138
    %p140 = pneg %p139
    // Predicated region
    $region29: #{bottleneck_forward.3} parent=5 // pred_check
      _
    $region30: #{bottleneck_forward.3} parent=5 // pred_check_branch
      %142 = sbr.rel (%p139) target = $region32
    $region31: #{bottleneck_forward.3} parent=5 // pred_region
      %s143 = ssub.s32 %s9, 1
      %s144 = smul.u32 32, %s14
      %p145 = scmp.lt.s32.totalorder %s144, 63
      %s146 = scalar_select %p145, %s144, 63
      %s147 = smul.addr %s146, 4
      %s148 = scalar_lea.vmem %s0, %s147
      %p149 = pneg %p35
      %p150 = pneg %p32
      %p151 = pneg %p56
      %p152 = pneg %p53
      %p153 = pneg %p77
      %p154 = pneg %p74
      %p155 = pneg %p103
      %p156 = pneg %p100
      %s157 = smul.u32 32, %s14
      %p158 = scmp.lt.s32.totalorder %s157, 63
      %s159 = scalar_select %p158, %s157, 63
      %s160 = smul.addr %s159, 4
      %s161 = scalar_lea.vmem %s3, %s160
      %s162 = smul.u32 32, %s14
      %p163 = scmp.lt.s32.totalorder %s162, 63
      %s164 = scalar_select %p163, %s162, 63
      %s165 = smul.addr %s164, 4
      %s166 = scalar_lea.vmem %s0, %s165
      %s167 = smul.u32 32, %s14
      %s168 = smul.u32 32, %s14
      %p169 = scmp.lt.s32.totalorder %s168, 63
      %s170 = scalar_select %p169, %s168, 63
      %s171 = smul.addr %s170, 4
      %s172 = scalar_lea.vmem %s3, %s171
      %s173 = smul.u32 32, %s14
      %v175 = vld [vmem:[%s166] sm:$0xf]
      %v176 = vld [vmem:[%s166 + $0x4] sm:$0xf]
      %v177 = vld [vmem:[%s166 + $0x8] sm:$0xf]
      %v178 = vld [vmem:[%s166 + $0xc] sm:$0xf]
      %v179 = vld [vmem:[%s166 + $0x10] sm:$0xf]
      %v180 = vld [vmem:[%s166 + $0x14] sm:$0xf]
      %v181 = vld [vmem:[%s166 + $0x18] sm:$0xf]
      %v182 = vld [vmem:[%s166 + $0x1c] sm:$0xf]
      %v183 = vld [vmem:[%s166 + $0x20] sm:$0xf]
      %v184 = vld [vmem:[%s166 + $0x24] sm:$0xf]
      %v185 = vld [vmem:[%s166 + $0x28] sm:$0xf]
      %v186 = vld [vmem:[%s166 + $0x2c] sm:$0xf]
      %v187 = vld [vmem:[%s166 + $0x30] sm:$0xf]
      %v188 = vld [vmem:[%s166 + $0x34] sm:$0xf]
      %v189 = vld [vmem:[%s166 + $0x38] sm:$0xf]
      %v190 = vld [vmem:[%s166 + $0x3c] sm:$0xf]
      %v191 = vld [vmem:[%s166 + $0x40] sm:$0xf]
      %v192 = vld [vmem:[%s166 + $0x44] sm:$0xf]
      %v193 = vld [vmem:[%s166 + $0x48] sm:$0xf]
      %v194 = vld [vmem:[%s166 + $0x4c] sm:$0xf]
      %v195 = vld [vmem:[%s166 + $0x50] sm:$0xf]
      %v196 = vld [vmem:[%s166 + $0x54] sm:$0xf]
      %v197 = vld [vmem:[%s166 + $0x58] sm:$0xf]
      %v198 = vld [vmem:[%s166 + $0x5c] sm:$0xf]
      %v199 = vld [vmem:[%s166 + $0x60] sm:$0xf]
      %v200 = vld [vmem:[%s166 + $0x64] sm:$0xf]
      %v201 = vld [vmem:[%s166 + $0x68] sm:$0xf]
      %v202 = vld [vmem:[%s166 + $0x6c] sm:$0xf]
      %v203 = vld [vmem:[%s166 + $0x70] sm:$0xf]
      %v204 = vld [vmem:[%s166 + $0x74] sm:$0xf]
      %v205 = vld [vmem:[%s166 + $0x78] sm:$0xf]
      %v206 = vld [vmem:[%s166 + $0x7c] sm:$0xf]
      %v207 = vld [vmem:[%s1] sm:$0xf]
      %v208 = vld [vmem:[%s1 + $0x4] sm:$0xf]
      %v209 = vld [vmem:[%s1 + $0x8] sm:$0xf]
      %v210 = vld [vmem:[%s1 + $0xc] sm:$0xf]
      %v211 = vld [vmem:[%s1 + $0x10] sm:$0xf]
      %v212 = vld [vmem:[%s1 + $0x14] sm:$0xf]
      %v213 = vld [vmem:[%s1 + $0x18] sm:$0xf]
      %v214 = vld [vmem:[%s1 + $0x1c] sm:$0xf]
      %v215 = vld [vmem:[%s2] sm:$0x1]
      %v217 = vlaneseq
      %v218 = vshrl.u32 %v217, 7
      %v219 = vsub.s32 0, %v218
      %v220 = vrot.slane %v215, %v219
      %v254 = vunpack.c.l.b16 %v175
      %v255 = vunpack.c.l.b16 %v176
      %v256 = vunpack.c.l.b16 %v177
      %v257 = vunpack.c.l.b16 %v178
      %v258 = vunpack.c.l.b16 %v179
      %v259 = vunpack.c.l.b16 %v180
      %v260 = vunpack.c.l.b16 %v181
      %v261 = vunpack.c.l.b16 %v182
      %v262 = vunpack.c.l.b16 %v183
      %v263 = vunpack.c.l.b16 %v184
      %v264 = vunpack.c.l.b16 %v185
      %v265 = vunpack.c.l.b16 %v186
      %v266 = vunpack.c.l.b16 %v187
      %v267 = vunpack.c.l.b16 %v188
      %v268 = vunpack.c.l.b16 %v189
      %v269 = vunpack.c.l.b16 %v190
      %v270 = vunpack.c.l.b16 %v191
      %v271 = vunpack.c.l.b16 %v192
      %v272 = vunpack.c.l.b16 %v193
      %v273 = vunpack.c.l.b16 %v194
      %v274 = vunpack.c.l.b16 %v195
      %v275 = vunpack.c.l.b16 %v196
      %v276 = vunpack.c.l.b16 %v197
      %v277 = vunpack.c.l.b16 %v198
      %v278 = vunpack.c.l.b16 %v199
      %v279 = vunpack.c.l.b16 %v200
      %v280 = vunpack.c.l.b16 %v201
      %v281 = vunpack.c.l.b16 %v202
      %v282 = vunpack.c.l.b16 %v203
      %v283 = vunpack.c.l.b16 %v204
      %v284 = vunpack.c.l.b16 %v205
      %v285 = vunpack.c.l.b16 %v206
      %v286 = vpack.c.b16 %v255, %v254
      %v287 = vpack.c.b16 %v257, %v256
      %v288 = vpack.c.b16 %v259, %v258
      %v289 = vpack.c.b16 %v261, %v260
      %v290 = vpack.c.b16 %v263, %v262
      %v291 = vpack.c.b16 %v265, %v264
      %v292 = vpack.c.b16 %v267, %v266
      %v293 = vpack.c.b16 %v269, %v268
      %v294 = vpack.c.b16 %v271, %v270
      %v295 = vpack.c.b16 %v273, %v272
      %v296 = vpack.c.b16 %v275, %v274
      %v297 = vpack.c.b16 %v277, %v276
      %v298 = vpack.c.b16 %v279, %v278
      %v299 = vpack.c.b16 %v281, %v280
      %v300 = vpack.c.b16 %v283, %v282
      %v301 = vpack.c.b16 %v285, %v284
      %v310 = vunpack.c.l.b16 %v207
      %v311 = vunpack.c.l.b16 %v208
      %v312 = vunpack.c.l.b16 %v209
      %v313 = vunpack.c.l.b16 %v210
      %v314 = vunpack.c.l.b16 %v211
      %v315 = vunpack.c.l.b16 %v212
      %v316 = vunpack.c.l.b16 %v213
      %v317 = vunpack.c.l.b16 %v214
      %v318 = vpack.c.b16 %v311, %v310
      %v319 = vpack.c.b16 %v313, %v312
      %v320 = vpack.c.b16 %v315, %v314
      %v321 = vpack.c.b16 %v317, %v316
      %vm326 = vcmask 523264
      %v328 = vsel %vm326, %v286, 0
      %v331 = vsel %vm326, %v287, 0
      %v334 = vsel %vm326, %v288, 0
      %v337 = vsel %vm326, %v289, 0
      %v340 = vsel %vm326, %v290, 0
      %v343 = vsel %vm326, %v291, 0
      %v346 = vsel %vm326, %v292, 0
      %v349 = vsel %vm326, %v293, 0
      %v352 = vsel %vm326, %v294, 0
      %v355 = vsel %vm326, %v295, 0
      %v358 = vsel %vm326, %v296, 0
      %v361 = vsel %vm326, %v297, 0
      %v364 = vsel %vm326, %v298, 0
      %v367 = vsel %vm326, %v299, 0
      %v370 = vsel %vm326, %v300, 0
      %v373 = vsel %vm326, %v301, 0
      %375 = vmatprep.subr.bf16.mxu0 0
      %376 = vmatpush1.bf16.msra.mxu0 %v318
      %377 = vmatprep.subr.bf16.mxu0 0
      %378 = vmatpush1.bf16.msra.mxu0 %v319
      %379 = vmatprep.subr.bf16.mxu0 0
      %380 = vmatpush1.bf16.msra.mxu0 %v320
      %381 = vmatprep.subr.bf16.mxu0 0
      %382 = vmatpush1.bf16.msra.mxu0 %v321
      %383 = vmatprep.subr.bf16.mxu0 0
      %384 = vmatpush1.bf16.msra.mxu0 0
      %385 = vmatprep.subr.bf16.mxu0 0
      %386 = vmatpush1.bf16.msra.mxu0 0
      %387 = vmatprep.subr.bf16.mxu0 0
      %388 = vmatpush1.bf16.msra.mxu0 0
      %389 = vmatprep.subr.bf16.mxu0 0
      %390 = vmatpush1.bf16.msra.mxu0 0
      %391 = vmatprep.subr.bf16.mxu0 0
      %392 = vmatpush1.bf16.msra.mxu0 0
      %393 = vmatprep.subr.bf16.mxu0 0
      %394 = vmatpush1.bf16.msra.mxu0 0
      %395 = vmatprep.subr.bf16.mxu0 0
      %396 = vmatpush1.bf16.msra.mxu0 0
      %397 = vmatprep.subr.bf16.mxu0 0
      %398 = vmatpush1.bf16.msra.mxu0 0
      %399 = vmatprep.subr.bf16.mxu0 0
      %400 = vmatpush1.bf16.msra.mxu0 0
      %401 = vmatprep.subr.bf16.mxu0 0
      %402 = vmatpush1.bf16.msra.mxu0 0
      %403 = vmatprep.subr.bf16.mxu0 0
      %404 = vmatpush1.bf16.msra.mxu0 0
      %405 = vmatprep.subr.bf16.mxu0 0
      %406 = vmatpush1.bf16.msra.mxu0 0
      %407 = vmatprep.mubr.bf16.mxu0 0
      %408 = vmatmul.mubr.bf16.gmra.mrb[0].mxu0 %v328
      %v409 = vpop.f32.mrb[0].mxu0
      %v410 = vadd.f32 %v220, %v409
      %v411 = vpop.f32.mrb[0].mxu0
      %v412 = vpop.f32.mrb[0].mxu0
      %v413 = vadd.f32 %v220, %v412
      %v414 = vpop.f32.mrb[0].mxu0
      %415 = vmatprep.mubr.bf16.mxu0 0
      %416 = vmatmul.mubr.bf16.gmra.mrb[0].mxu0 %v331
      %v417 = vpop.f32.mrb[0].mxu0
      %v418 = vadd.f32 %v220, %v417
      %v419 = vpop.f32.mrb[0].mxu0
      %v420 = vpop.f32.mrb[0].mxu0
      %v421 = vadd.f32 %v220, %v420
      %v422 = vpop.f32.mrb[0].mxu0
      %423 = vmatprep.mubr.bf16.mxu0 0
      %424 = vmatmul.mubr.bf16.gmra.mrb[0].mxu0 %v334
      %v425 = vpop.f32.mrb[0].mxu0
      %v426 = vadd.f32 %v220, %v425
      %v427 = vpop.f32.mrb[0].mxu0
      %v428 = vpop.f32.mrb[0].mxu0
      %v429 = vadd.f32 %v220, %v428
      %v430 = vpop.f32.mrb[0].mxu0
      %431 = vmatprep.mubr.bf16.mxu0 0
      %432 = vmatmul.mubr.bf16.gmra.mrb[0].mxu0 %v337
      %v433 = vpop.f32.mrb[0].mxu0
      %v434 = vadd.f32 %v220, %v433
      %v435 = vpop.f32.mrb[0].mxu0
      %v436 = vpop.f32.mrb[0].mxu0
      %v437 = vadd.f32 %v220, %v436
      %v438 = vpop.f32.mrb[0].mxu0
      %439 = vmatprep.mubr.bf16.mxu0 0
      %440 = vmatmul.mubr.bf16.gmra.mrb[0].mxu0 %v340
      %v441 = vpop.f32.mrb[0].mxu0
      %v442 = vadd.f32 %v220, %v441
      %v443 = vpop.f32.mrb[0].mxu0
      %v444 = vpop.f32.mrb[0].mxu0
      %v445 = vadd.f32 %v220, %v444
      %v446 = vpop.f32.mrb[0].mxu0
      %447 = vmatprep.mubr.bf16.mxu0 0
      %448 = vmatmul.mubr.bf16.gmra.mrb[0].mxu0 %v343
      %v449 = vpop.f32.mrb[0].mxu0
      %v450 = vadd.f32 %v220, %v449
      %v451 = vpop.f32.mrb[0].mxu0
      %v452 = vpop.f32.mrb[0].mxu0
      %v453 = vadd.f32 %v220, %v452
      %v454 = vpop.f32.mrb[0].mxu0
      %455 = vmatprep.mubr.bf16.mxu0 0
      %456 = vmatmul.mubr.bf16.gmra.mrb[0].mxu0 %v346
      %v457 = vpop.f32.mrb[0].mxu0
      %v458 = vadd.f32 %v220, %v457
      %v459 = vpop.f32.mrb[0].mxu0
      %v460 = vpop.f32.mrb[0].mxu0
      %v461 = vadd.f32 %v220, %v460
      %v462 = vpop.f32.mrb[0].mxu0
      %463 = vmatprep.mubr.bf16.mxu0 0
      %464 = vmatmul.mubr.bf16.gmra.mrb[0].mxu0 %v349
      %v465 = vpop.f32.mrb[0].mxu0
      %v466 = vadd.f32 %v220, %v465
      %v467 = vpop.f32.mrb[0].mxu0
      %v468 = vpop.f32.mrb[0].mxu0
      %v469 = vadd.f32 %v220, %v468
      %v470 = vpop.f32.mrb[0].mxu0
      %471 = vmatprep.mubr.bf16.mxu0 0
      %472 = vmatmul.mubr.bf16.gmra.mrb[0].mxu0 %v352
      %v473 = vpop.f32.mrb[0].mxu0
      %v474 = vadd.f32 %v220, %v473
      %v475 = vpop.f32.mrb[0].mxu0
      %v476 = vpop.f32.mrb[0].mxu0
      %v477 = vadd.f32 %v220, %v476
      %v478 = vpop.f32.mrb[0].mxu0
      %479 = vmatprep.mubr.bf16.mxu0 0
      %480 = vmatmul.mubr.bf16.gmra.mrb[0].mxu0 %v355
      %v481 = vpop.f32.mrb[0].mxu0
      %v482 = vadd.f32 %v220, %v481
      %v483 = vpop.f32.mrb[0].mxu0
      %v484 = vpop.f32.mrb[0].mxu0
      %v485 = vadd.f32 %v220, %v484
      %v486 = vpop.f32.mrb[0].mxu0
      %487 = vmatprep.mubr.bf16.mxu0 0
      %488 = vmatmul.mubr.bf16.gmra.mrb[0].mxu0 %v358
      %v489 = vpop.f32.mrb[0].mxu0
      %v490 = vadd.f32 %v220, %v489
      %v491 = vpop.f32.mrb[0].mxu0
      %v492 = vpop.f32.mrb[0].mxu0
      %v493 = vadd.f32 %v220, %v492
      %v494 = vpop.f32.mrb[0].mxu0
      %495 = vmatprep.mubr.bf16.mxu0 0
      %496 = vmatmul.mubr.bf16.gmra.mrb[0].mxu0 %v361
      %v497 = vpop.f32.mrb[0].mxu0
      %v498 = vadd.f32 %v220, %v497
      %v499 = vpop.f32.mrb[0].mxu0
      %v500 = vpop.f32.mrb[0].mxu0
      %v501 = vadd.f32 %v220, %v500
      %v502 = vpop.f32.mrb[0].mxu0
      %503 = vmatprep.mubr.bf16.mxu0 0
      %504 = vmatmul.mubr.bf16.gmra.mrb[0].mxu0 %v364
      %v505 = vpop.f32.mrb[0].mxu0
      %v506 = vadd.f32 %v220, %v505
      %v507 = vpop.f32.mrb[0].mxu0
      %v508 = vpop.f32.mrb[0].mxu0
      %v509 = vadd.f32 %v220, %v508
      %v510 = vpop.f32.mrb[0].mxu0
      %511 = vmatprep.mubr.bf16.mxu0 0
      %512 = vmatmul.mubr.bf16.gmra.mrb[0].mxu0 %v367
      %v513 = vpop.f32.mrb[0].mxu0
      %v514 = vadd.f32 %v220, %v513
      %v515 = vpop.f32.mrb[0].mxu0
      %v516 = vpop.f32.mrb[0].mxu0
      %v517 = vadd.f32 %v220, %v516
      %v518 = vpop.f32.mrb[0].mxu0
      %519 = vmatprep.mubr.bf16.mxu0 0
      %520 = vmatmul.mubr.bf16.gmra.mrb[0].mxu0 %v370
      %v521 = vpop.f32.mrb[0].mxu0
      %v522 = vadd.f32 %v220, %v521
      %v523 = vpop.f32.mrb[0].mxu0
      %v524 = vpop.f32.mrb[0].mxu0
      %v525 = vadd.f32 %v220, %v524
      %v526 = vpop.f32.mrb[0].mxu0
      %527 = vmatprep.mubr.bf16.mxu0 0
      %528 = vmatmul.mubr.bf16.gmra.mrb[0].mxu0 %v373
      %v529 = vpop.f32.mrb[0].mxu0
      %v530 = vadd.f32 %v220, %v529
      %v531 = vpop.f32.mrb[0].mxu0
      %v532 = vpop.f32.mrb[0].mxu0
      %v533 = vadd.f32 %v220, %v532
      %v534 = vpop.f32.mrb[0].mxu0
      %535 = vdwg.mxu0
      %v536 = vmax.f32 %v410, 0.0
      %v537 = vmax.f32 %v413, 0.0
      %v538 = vmax.f32 %v418, 0.0
      %v539 = vmax.f32 %v421, 0.0
      %v540 = vmax.f32 %v426, 0.0
      %v541 = vmax.f32 %v429, 0.0
      %v542 = vmax.f32 %v434, 0.0
      %v543 = vmax.f32 %v437, 0.0
      %v544 = vmax.f32 %v442, 0.0
      %v545 = vmax.f32 %v445, 0.0
      %v546 = vmax.f32 %v450, 0.0
      %v547 = vmax.f32 %v453, 0.0
      %v548 = vmax.f32 %v458, 0.0
      %v549 = vmax.f32 %v461, 0.0
      %v550 = vmax.f32 %v466, 0.0
      %v551 = vmax.f32 %v469, 0.0
      %v552 = vmax.f32 %v474, 0.0
      %v553 = vmax.f32 %v477, 0.0
      %v554 = vmax.f32 %v482, 0.0
      %v555 = vmax.f32 %v485, 0.0
      %v556 = vmax.f32 %v490, 0.0
      %v557 = vmax.f32 %v493, 0.0
      %v558 = vmax.f32 %v498, 0.0
      %v559 = vmax.f32 %v501, 0.0
      %v560 = vmax.f32 %v506, 0.0
      %v561 = vmax.f32 %v509, 0.0
      %v562 = vmax.f32 %v514, 0.0
      %v563 = vmax.f32 %v517, 0.0
      %v564 = vmax.f32 %v522, 0.0
      %v565 = vmax.f32 %v525, 0.0
      %v566 = vmax.f32 %v530, 0.0
      %v567 = vmax.f32 %v533, 0.0
      %v568 = vpack.c.bf16 %v537, %v536
      %v569 = vpack.c.bf16 %v539, %v538
      %v570 = vpack.c.bf16 %v541, %v540
      %v571 = vpack.c.bf16 %v543, %v542
      %v572 = vpack.c.bf16 %v545, %v544
      %v573 = vpack.c.bf16 %v547, %v546
      %v574 = vpack.c.bf16 %v549, %v548
      %v575 = vpack.c.bf16 %v551, %v550
      %v576 = vpack.c.bf16 %v553, %v552
      %v577 = vpack.c.bf16 %v555, %v554
      %v578 = vpack.c.bf16 %v557, %v556
      %v579 = vpack.c.bf16 %v559, %v558
      %v580 = vpack.c.bf16 %v561, %v560
      %v581 = vpack.c.bf16 %v563, %v562
      %v582 = vpack.c.bf16 %v565, %v564
      %v583 = vpack.c.bf16 %v567, %v566
      %v600 = vunpack.c.l.b16 %v568
      %v601 = vunpack.c.h.b16 %v568
      %v602 = vunpack.c.l.b16 %v569
      %v603 = vunpack.c.h.b16 %v569
      %v604 = vunpack.c.l.b16 %v570
      %v605 = vunpack.c.h.b16 %v570
      %v606 = vunpack.c.l.b16 %v571
      %v607 = vunpack.c.h.b16 %v571
      %v608 = vunpack.c.l.b16 %v572
      %v609 = vunpack.c.h.b16 %v572
      %v610 = vunpack.c.l.b16 %v573
      %v611 = vunpack.c.h.b16 %v573
      %v612 = vunpack.c.l.b16 %v574
      %v613 = vunpack.c.h.b16 %v574
      %v614 = vunpack.c.l.b16 %v575
      %v615 = vunpack.c.h.b16 %v575
      %v616 = vunpack.c.l.b16 %v576
      %v617 = vunpack.c.h.b16 %v576
      %v618 = vunpack.c.l.b16 %v577
      %v619 = vunpack.c.h.b16 %v577
      %v620 = vunpack.c.l.b16 %v578
      %v621 = vunpack.c.h.b16 %v578
      %v622 = vunpack.c.l.b16 %v579
      %v623 = vunpack.c.h.b16 %v579
      %v624 = vunpack.c.l.b16 %v580
      %v625 = vunpack.c.h.b16 %v580
      %v626 = vunpack.c.l.b16 %v581
      %v627 = vunpack.c.h.b16 %v581
      %v628 = vunpack.c.l.b16 %v582
      %v629 = vunpack.c.h.b16 %v582
      %v630 = vunpack.c.l.b16 %v583
      %v631 = vunpack.c.h.b16 %v583
      %v632 = vpack.c.b16 %v600, %v600
      %v633 = vpack.c.b16 %v601, %v601
      %v634 = vpack.c.b16 %v602, %v602
      %v635 = vpack.c.b16 %v603, %v603
      %v636 = vpack.c.b16 %v604, %v604
      %v637 = vpack.c.b16 %v605, %v605
      %v638 = vpack.c.b16 %v606, %v606
      %v639 = vpack.c.b16 %v607, %v607
      %v640 = vpack.c.b16 %v608, %v608
      %v641 = vpack.c.b16 %v609, %v609
      %v642 = vpack.c.b16 %v610, %v610
      %v643 = vpack.c.b16 %v611, %v611
      %v644 = vpack.c.b16 %v612, %v612
      %v645 = vpack.c.b16 %v613, %v613
      %v646 = vpack.c.b16 %v614, %v614
      %v647 = vpack.c.b16 %v615, %v615
      %v648 = vpack.c.b16 %v616, %v616
      %v649 = vpack.c.b16 %v617, %v617
      %v650 = vpack.c.b16 %v618, %v618
      %v651 = vpack.c.b16 %v619, %v619
      %v652 = vpack.c.b16 %v620, %v620
      %v653 = vpack.c.b16 %v621, %v621
      %v654 = vpack.c.b16 %v622, %v622
      %v655 = vpack.c.b16 %v623, %v623
      %v656 = vpack.c.b16 %v624, %v624
      %v657 = vpack.c.b16 %v625, %v625
      %v658 = vpack.c.b16 %v626, %v626
      %v659 = vpack.c.b16 %v627, %v627
      %v660 = vpack.c.b16 %v628, %v628
      %v661 = vpack.c.b16 %v629, %v629
      %v662 = vpack.c.b16 %v630, %v630
      %v663 = vpack.c.b16 %v631, %v631
      %vm696 = vcmask 257024
      %697 = vst.msk [vmem:[%s172] sm:$0xf] %vm696, %v632
      %698 = vst.msk [vmem:[%s172 + $0x4] sm:$0xf] %vm696, %v633
      %699 = vst.msk [vmem:[%s172 + $0x8] sm:$0xf] %vm696, %v634
      %700 = vst.msk [vmem:[%s172 + $0xc] sm:$0xf] %vm696, %v635
      %701 = vst.msk [vmem:[%s172 + $0x10] sm:$0xf] %vm696, %v636
      %702 = vst.msk [vmem:[%s172 + $0x14] sm:$0xf] %vm696, %v637
      %703 = vst.msk [vmem:[%s172 + $0x18] sm:$0xf] %vm696, %v638
      %704 = vst.msk [vmem:[%s172 + $0x1c] sm:$0xf] %vm696, %v639
      %705 = vst.msk [vmem:[%s172 + $0x20] sm:$0xf] %vm696, %v640
      %706 = vst.msk [vmem:[%s172 + $0x24] sm:$0xf] %vm696, %v641
      %707 = vst.msk [vmem:[%s172 + $0x28] sm:$0xf] %vm696, %v642
      %708 = vst.msk [vmem:[%s172 + $0x2c] sm:$0xf] %vm696, %v643
      %709 = vst.msk [vmem:[%s172 + $0x30] sm:$0xf] %vm696, %v644
      %710 = vst.msk [vmem:[%s172 + $0x34] sm:$0xf] %vm696, %v645
      %711 = vst.msk [vmem:[%s172 + $0x38] sm:$0xf] %vm696, %v646
      %712 = vst.msk [vmem:[%s172 + $0x3c] sm:$0xf] %vm696, %v647
      %713 = vst.msk [vmem:[%s172 + $0x40] sm:$0xf] %vm696, %v648
      %714 = vst.msk [vmem:[%s172 + $0x44] sm:$0xf] %vm696, %v649
      %715 = vst.msk [vmem:[%s172 + $0x48] sm:$0xf] %vm696, %v650
      %716 = vst.msk [vmem:[%s172 + $0x4c] sm:$0xf] %vm696, %v651
      %717 = vst.msk [vmem:[%s172 + $0x50] sm:$0xf] %vm696, %v652
      %718 = vst.msk [vmem:[%s172 + $0x54] sm:$0xf] %vm696, %v653
      %719 = vst.msk [vmem:[%s172 + $0x58] sm:$0xf] %vm696, %v654
      %720 = vst.msk [vmem:[%s172 + $0x5c] sm:$0xf] %vm696, %v655
      %721 = vst.msk [vmem:[%s172 + $0x60] sm:$0xf] %vm696, %v656
      %722 = vst.msk [vmem:[%s172 + $0x64] sm:$0xf] %vm696, %v657
      %723 = vst.msk [vmem:[%s172 + $0x68] sm:$0xf] %vm696, %v658
      %724 = vst.msk [vmem:[%s172 + $0x6c] sm:$0xf] %vm696, %v659
      %725 = vst.msk [vmem:[%s172 + $0x70] sm:$0xf] %vm696, %v660
      %726 = vst.msk [vmem:[%s172 + $0x74] sm:$0xf] %vm696, %v661
      %727 = vst.msk [vmem:[%s172 + $0x78] sm:$0xf] %vm696, %v662
      %728 = vst.msk [vmem:[%s172 + $0x7c] sm:$0xf] %vm696, %v663
      %s729 = smul.u32 32, %s14
      %p730 = scmp.lt.s32.totalorder %s729, 63
      %s731 = scalar_select %p730, %s729, 63
      %s732 = smul.addr %s731, 4
      %s733 = scalar_lea.vmem %s3, %s732
      // Predicated region
      $region33: #{bottleneck_forward.3} parent=31 // pred_check
        %p734 = pneg %p100
      $region34: #{bottleneck_forward.3} parent=31 // pred_check_branch
        %736 = sbr.rel (%p734) target = $region36
      $region35: #{bottleneck_forward.3} parent=31 // pred_region
        %s737 = smul.u32 32, %s14
      $region36: #{bottleneck_forward.3} parent=31 // pred_fallthru
        _
    $region32: #{bottleneck_forward.3} parent=5 // pred_fallthru
      _
    %p738 = scmp.le.s32.totalorder 2, %s9
    // Predicated region
    $region37: #{bottleneck_forward.3} parent=5 // pred_check
      %p739 = pneg %p738
    $region38: #{bottleneck_forward.3} parent=5 // pred_check_branch
      %741 = sbr.rel (%p739) target = $region40
    $region39: #{bottleneck_forward.3} parent=5 // pred_region
      %s742 = ssub.s32 %s9, 2
      // Predicated region
      $region41: #{bottleneck_forward.3} parent=39 // pred_check
        %p743 = pneg %p106
      $region42: #{bottleneck_forward.3} parent=39 // pred_check_branch
        %745 = sbr.rel (%p743) target = $region44
      $region43: #{bottleneck_forward.3} parent=39 // pred_region
        %s746 = smul.u32 32, %s15
        %p747 = scmp.lt.s32.totalorder %s746, 63
        %s748 = scalar_select %p747, %s746, 63
        %s749 = smul.addr %s748, 4
        %s750 = scalar_lea.vmem %s3, %s749
      $region44: #{bottleneck_forward.3} parent=39 // pred_fallthru
        _
    $region40: #{bottleneck_forward.3} parent=5 // pred_fallthru
      _
  $region6: #{bottleneck_forward.3} parent=0 // loop_footer
    %s13 = sadd.s32 1, %s9
  $region7: #{bottleneck_forward.3} parent=0 // loop_footer_branch
    %8 = sbr.rel target = $region3
  $region8: #{bottleneck_forward.3} parent=0 // loop_exit
    _

// kernel: bottleneck_forward.5
$region0: #{bottleneck_forward.5}
  #allocation0 [shape = 'u32[]', space=smem, size = 0x4, offset = 0x4, fixed_abs, tag = 'smem constant byte address 0x4 - core index']
  #allocation1 [shape = 'u32[144,128]{1,0:T(1,128)}', space=vmem, size = 0x12000, scoped, tag = 'internal scratch']
  %s0 = inlined_call_operand.vmem [shape: bf16[512,32], index: 0, kind: input, shape index: {}]
  %s1 = inlined_call_operand.vmem [shape: bf16[32,128], index: 1, kind: input, shape index: {}]
  %s2 = inlined_call_operand.vmem [shape: f32[1,128], index: 2, kind: input, shape index: {}]
  %s3 = inlined_call_operand.vmem [shape: bf16[512,64], index: 3, kind: input, shape index: {}]
  %s4 = inlined_call_operand.vmem [shape: bf16[64,128], index: 4, kind: input, shape index: {}]
  %s5 = inlined_call_operand.vmem [shape: f32[1,128], index: 5, kind: input, shape index: {}]
  %s6 = inlined_call_operand.hbm [shape: f32[512,128], index: 6, kind: output, shape index: {}]
  %s7 = sld [smem:[#allocation0]]
  $region57: #{bottleneck_forward.5} parent=0
    _
  %s9 = ssub.s32 1, %s7
  %s10 = scalar_select 0, %s9, %s7
  $region1: #{bottleneck_forward.5} parent=0
    #allocation2 [shape = 'u8[262144]{0}', space=vmem, size = 0x40000, scoped, tag = 'output window, operand 0']
    #allocation3 [shape = 's32[2]{0}', space=sflag, size = 0x8, scoped, tag = 'scoped memory for bottleneck_forward.5']
    %11 = vsyncpa [#allocation3], 0
    %s12 = scalar_lea.sflag [#allocation3], 1
    %13 = vsyncpa %s12, 0
    loop: start=0, step=1, limit=4
    $region2: #{bottleneck_forward.5} parent=1 // loop_pre_header
      _
    $region3: #{bottleneck_forward.5} parent=1 // loop_header
      %s15 = sphi 0, %s19
      %p16 = scmp.ge.s32.totalorder %s15, 4
      %s25 = sphi 0, %s27
      %s28 = sphi 0, %s25
      %s29 = sphi 0, %s28
      %s45 = sphi 0, %s29
      %s49 = sphi 0, %s49
      %s51 = sphi 0, %s49
      %s52 = sphi 0, %s51
      %s66 = sphi 0, %s52
      %s70 = sphi 0, %s70
      %s72 = sphi 0, %s70
      %s73 = sphi 0, %s72
      %s87 = sphi 0, %s73
      %s93 = sphi 0, %s95
      %s96 = sphi 0, %s93
      %s97 = sphi 0, %s96
      %s113 = sphi 0, %s97
      %s117 = sphi 0, %s117
      %s119 = sphi 0, %s117
      %s120 = sphi 0, %s119
      %s134 = sphi 0, %s120
      %s138 = sphi 0, %s138
      %s140 = sphi 0, %s138
      %s141 = sphi 0, %s140
      %s155 = sphi 0, %s141
      %s161 = sphi 0, %s163
      %s164 = sphi 0, %s161
      %s165 = sphi 0, %s164
      %s181 = sphi 0, %s165
    $region4: #{bottleneck_forward.5} parent=1 // loop_header_branch
      %18 = sbr.rel (%p16) target = $region8
    $region5: #{bottleneck_forward.5} parent=1 // loop_body
      %s20 = ssub.s32 %s15, 1
      %s21 = ssub.s32 %s15, 2
      %s22 = sadd.s32 %s15, 1
      %s23 = ssub.s32 %s15, %s22
      %p24 = scmp.eq.s32.totalorder %s23, 0
      %s26 = sadd.s32 %s25, 1
      %s27 = scalar_select %p24, %s25, %s26
      %p30 = pneg %p24
      %p31 = scmp.eq.s32.totalorder %s15, 1
      %p32 = por %p30, %p31
      %p33 = scmp.ne.s32.totalorder %s25, %s28
      %p34 = scmp.eq.s32.totalorder %s15, 0
      %p35 = por %p33, %p34
      %p36 = scmp.ne.s32.totalorder %s25, %s28
      %p37 = scmp.eq.s32.totalorder %s20, 1
      %p38 = por %p36, %p37
      %p39 = scmp.ne.s32.totalorder %s28, %s29
      %p40 = scmp.eq.s32.totalorder %s20, 0
      %p41 = por %p39, %p40
      %p42 = scmp.ne.s32.totalorder %s28, %s29
      %p43 = scmp.eq.s32.totalorder %s21, 1
      %p44 = por %p42, %p43
      %p46 = scmp.ne.s32.totalorder %s29, %s45
      %p47 = scmp.eq.s32.totalorder %s21, 0
      %p48 = por %p46, %p47
      %s50 = sadd.s32 %s49, 1
      %p53 = scmp.eq.s32.totalorder %s15, 1
      %p54 = scmp.ne.s32.totalorder %s49, %s51
      %p55 = scmp.eq.s32.totalorder %s15, 0
      %p56 = por %p54, %p55
      %p57 = scmp.ne.s32.totalorder %s49, %s51
      %p58 = scmp.eq.s32.totalorder %s20, 1
      %p59 = por %p57, %p58
      %p60 = scmp.ne.s32.totalorder %s51, %s52
      %p61 = scmp.eq.s32.totalorder %s20, 0
      %p62 = por %p60, %p61
      %p63 = scmp.ne.s32.totalorder %s51, %s52
      %p64 = scmp.eq.s32.totalorder %s21, 1
      %p65 = por %p63, %p64
      %p67 = scmp.ne.s32.totalorder %s52, %s66
      %p68 = scmp.eq.s32.totalorder %s21, 0
      %p69 = por %p67, %p68
      %s71 = sadd.s32 %s70, 1
      %p74 = scmp.eq.s32.totalorder %s15, 1
      %p75 = scmp.ne.s32.totalorder %s70, %s72
      %p76 = scmp.eq.s32.totalorder %s15, 0
      %p77 = por %p75, %p76
      %p78 = scmp.ne.s32.totalorder %s70, %s72
      %p79 = scmp.eq.s32.totalorder %s20, 1
      %p80 = por %p78, %p79
      %p81 = scmp.ne.s32.totalorder %s72, %s73
      %p82 = scmp.eq.s32.totalorder %s20, 0
      %p83 = por %p81, %p82
      %p84 = scmp.ne.s32.totalorder %s72, %s73
      %p85 = scmp.eq.s32.totalorder %s21, 1
      %p86 = por %p84, %p85
      %p88 = scmp.ne.s32.totalorder %s73, %s87
      %p89 = scmp.eq.s32.totalorder %s21, 0
      %p90 = por %p88, %p89
      %s91 = ssub.s32 %s15, %s22
      %p92 = scmp.eq.s32.totalorder %s91, 0
      %s94 = sadd.s32 %s93, 1
      %s95 = scalar_select %p92, %s93, %s94
      %p98 = pneg %p92
      %p99 = scmp.eq.s32.totalorder %s15, 1
      %p100 = por %p98, %p99
      %p101 = scmp.ne.s32.totalorder %s93, %s96
      %p102 = scmp.eq.s32.totalorder %s15, 0
      %p103 = por %p101, %p102
      %p104 = scmp.ne.s32.totalorder %s93, %s96
      %p105 = scmp.eq.s32.totalorder %s20, 1
      %p106 = por %p104, %p105
      %p107 = scmp.ne.s32.totalorder %s96, %s97
      %p108 = scmp.eq.s32.totalorder %s20, 0
      %p109 = por %p107, %p108
      %p110 = scmp.ne.s32.totalorder %s96, %s97
      %p111 = scmp.eq.s32.totalorder %s21, 1
      %p112 = por %p110, %p111
      %p114 = scmp.ne.s32.totalorder %s97, %s113
      %p115 = scmp.eq.s32.totalorder %s21, 0
      %p116 = por %p114, %p115
      %s118 = sadd.s32 %s117, 1
      %p121 = scmp.eq.s32.totalorder %s15, 1
      %p122 = scmp.ne.s32.totalorder %s117, %s119
      %p123 = scmp.eq.s32.totalorder %s15, 0
      %p124 = por %p122, %p123
      %p125 = scmp.ne.s32.totalorder %s117, %s119
      %p126 = scmp.eq.s32.totalorder %s20, 1
      %p127 = por %p125, %p126
      %p128 = scmp.ne.s32.totalorder %s119, %s120
      %p129 = scmp.eq.s32.totalorder %s20, 0
      %p130 = por %p128, %p129
      %p131 = scmp.ne.s32.totalorder %s119, %s120
      %p132 = scmp.eq.s32.totalorder %s21, 1
      %p133 = por %p131, %p132
      %p135 = scmp.ne.s32.totalorder %s120, %s134
      %p136 = scmp.eq.s32.totalorder %s21, 0
      %p137 = por %p135, %p136
      %s139 = sadd.s32 %s138, 1
      %p142 = scmp.eq.s32.totalorder %s15, 1
      %p143 = scmp.ne.s32.totalorder %s138, %s140
      %p144 = scmp.eq.s32.totalorder %s15, 0
      %p145 = por %p143, %p144
      %p146 = scmp.ne.s32.totalorder %s138, %s140
      %p147 = scmp.eq.s32.totalorder %s20, 1
      %p148 = por %p146, %p147
      %p149 = scmp.ne.s32.totalorder %s140, %s141
      %p150 = scmp.eq.s32.totalorder %s20, 0
      %p151 = por %p149, %p150
      %p152 = scmp.ne.s32.totalorder %s140, %s141
      %p153 = scmp.eq.s32.totalorder %s21, 1
      %p154 = por %p152, %p153
      %p156 = scmp.ne.s32.totalorder %s141, %s155
      %p157 = scmp.eq.s32.totalorder %s21, 0
      %p158 = por %p156, %p157
      %s159 = ssub.s32 %s15, %s22
      %p160 = scmp.eq.s32.totalorder %s159, 0
      %s162 = sadd.s32 %s161, 1
      %s163 = scalar_select %p160, %s161, %s162
      %p166 = pneg %p160
      %p167 = scmp.eq.s32.totalorder %s15, 1
      %p168 = por %p166, %p167
      %p169 = scmp.ne.s32.totalorder %s161, %s164
      %p170 = scmp.eq.s32.totalorder %s15, 0
      %p171 = por %p169, %p170
      %p172 = scmp.ne.s32.totalorder %s161, %s164
      %p173 = scmp.eq.s32.totalorder %s20, 1
      %p174 = por %p172, %p173
      %p175 = scmp.ne.s32.totalorder %s164, %s165
      %p176 = scmp.eq.s32.totalorder %s20, 0
      %p177 = por %p175, %p176
      %p178 = scmp.ne.s32.totalorder %s164, %s165
      %p179 = scmp.eq.s32.totalorder %s21, 1
      %p180 = por %p178, %p179
      %p182 = scmp.ne.s32.totalorder %s165, %s181
      %p183 = scmp.eq.s32.totalorder %s21, 0
      %p184 = por %p182, %p183
      %p185 = scmp.le.s32.totalorder 1, %s15
      %p186 = scmp.lt.s32.totalorder %s15, 3
      %p187 = pnand %p185, %p186
      %p188 = pneg %p187
      // Predicated region
      $region9: #{bottleneck_forward.5} parent=5 // pred_check
        _
      $region10: #{bottleneck_forward.5} parent=5 // pred_check_branch
        %190 = sbr.rel (%p187) target = $region12
      $region11: #{bottleneck_forward.5} parent=5 // pred_region
        %s191 = ssub.s32 %s15, 1
        // Predicated region
        $region13: #{bottleneck_forward.5} parent=11 // pred_check
          %p192 = pneg %p62
        $region14: #{bottleneck_forward.5} parent=11 // pred_check_branch
          %194 = sbr.rel (%p192) target = $region16
        $region15: #{bottleneck_forward.5} parent=11 // pred_region
          _
        $region16: #{bottleneck_forward.5} parent=11 // pred_fallthru
          _
        // Predicated region
        $region17: #{bottleneck_forward.5} parent=11 // pred_check
          %p195 = pneg %p83
        $region18: #{bottleneck_forward.5} parent=11 // pred_check_branch
          %197 = sbr.rel (%p195) target = $region20
        $region19: #{bottleneck_forward.5} parent=11 // pred_region
          _
        $region20: #{bottleneck_forward.5} parent=11 // pred_fallthru
          _
        // Predicated region
        $region21: #{bottleneck_forward.5} parent=11 // pred_check
          %p198 = pneg %p130
        $region22: #{bottleneck_forward.5} parent=11 // pred_check_branch
          %200 = sbr.rel (%p198) target = $region24
        $region23: #{bottleneck_forward.5} parent=11 // pred_region
          _
        $region24: #{bottleneck_forward.5} parent=11 // pred_fallthru
          _
        // Predicated region
        $region25: #{bottleneck_forward.5} parent=11 // pred_check
          %p201 = pneg %p151
        $region26: #{bottleneck_forward.5} parent=11 // pred_check_branch
          %203 = sbr.rel (%p201) target = $region28
        $region27: #{bottleneck_forward.5} parent=11 // pred_region
          _
        $region28: #{bottleneck_forward.5} parent=11 // pred_fallthru
          _
      $region12: #{bottleneck_forward.5} parent=5 // pred_fallthru
        _
      %p204 = scmp.lt.s32.totalorder %s15, 2
      // Predicated region
      $region29: #{bottleneck_forward.5} parent=5 // pred_check
        %p205 = pneg %p204
      $region30: #{bottleneck_forward.5} parent=5 // pred_check_branch
        %207 = sbr.rel (%p205) target = $region32
      $region31: #{bottleneck_forward.5} parent=5 // pred_region
        // Predicated region
        $region33: #{bottleneck_forward.5} parent=31 // pred_check
          %p208 = pneg %p35
        $region34: #{bottleneck_forward.5} parent=31 // pred_check_branch
          %210 = sbr.rel (%p208) target = $region36
        $region35: #{bottleneck_forward.5} parent=31 // pred_region
          %s211 = smul.u32 32, %s15
          %p212 = scmp.lt.s32.totalorder %s211, 63
          %s213 = scalar_select %p212, %s211, 63
          %s214 = smul.addr %s213, 4
          %s215 = scalar_lea.vmem %s0, %s214
          %s216 = smul.u32 32, %s15
        $region36: #{bottleneck_forward.5} parent=31 // pred_fallthru
          _
        // Predicated region
        $region37: #{bottleneck_forward.5} parent=31 // pred_check
          %p217 = pneg %p103
        $region38: #{bottleneck_forward.5} parent=31 // pred_check_branch
          %219 = sbr.rel (%p217) target = $region40
        $region39: #{bottleneck_forward.5} parent=31 // pred_region
          %s220 = smul.u32 32, %s15
          %p221 = scmp.lt.s32.totalorder %s220, 63
          %s222 = scalar_select %p221, %s220, 63
          %s223 = smul.addr %s222, 4
          %s224 = scalar_lea.vmem %s3, %s223
          %s225 = smul.u32 32, %s15
        $region40: #{bottleneck_forward.5} parent=31 // pred_fallthru
          _
      $region32: #{bottleneck_forward.5} parent=5 // pred_fallthru
        _
      %p226 = scmp.le.s32.totalorder 1, %s15
      %p227 = scmp.lt.s32.totalorder %s15, 3
      %p228 = pnand %p226, %p227
      %p229 = pneg %p228
      // Predicated region
      $region41: #{bottleneck_forward.5} parent=5 // pred_check
        _
      $region42: #{bottleneck_forward.5} parent=5 // pred_check_branch
        %231 = sbr.rel (%p228) target = $region44
      $region43: #{bottleneck_forward.5} parent=5 // pred_region
        %s232 = ssub.s32 %s15, 1
        %s233 = smul.u32 32, %s20
        %p234 = scmp.lt.s32.totalorder %s233, 63
        %s235 = scalar_select %p234, %s233, 63
        %s236 = smul.addr %s235, 4
        %s237 = scalar_lea.vmem %s0, %s236
        %p238 = pneg %p41
        %p239 = pneg %p38
        %p240 = pneg %p62
        %p241 = pneg %p59
        %p242 = pneg %p83
        %p243 = pneg %p80
        %s244 = smul.u32 32, %s20
        %p245 = scmp.lt.s32.totalorder %s244, 63
        %s246 = scalar_select %p245, %s244, 63
        %s247 = smul.addr %s246, 4
        %s248 = scalar_lea.vmem %s3, %s247
        %p249 = pneg %p109
        %p250 = pneg %p106
        %p251 = pneg %p130
        %p252 = pneg %p127
        %p253 = pneg %p151
        %p254 = pneg %p148
        %p255 = pneg %p177
        %p256 = pneg %p174
        %s257 = sand.u32 %s164, 1
        %s258 = scalar_lea.sflag [#allocation3], %s257
        %s259 = sand.u32 %s164, 1
        %s260 = smul.addr %s259, 256
        %s261 = scalar_lea.vmem [#allocation2], %s260
        %s262 = smul.u32 32, %s20
        %p263 = scmp.lt.s32.totalorder %s262, 63
        %s264 = scalar_select %p263, %s262, 63
        %s265 = smul.addr %s264, 4
        %s266 = scalar_lea.vmem %s0, %s265
        %s267 = smul.u32 32, %s20
        %s268 = smul.u32 32, %s20
        %p269 = scmp.lt.s32.totalorder %s268, 63
        %s270 = scalar_select %p269, %s268, 63
        %s271 = smul.addr %s270, 4
        %s272 = scalar_lea.vmem %s3, %s271
        %s273 = smul.u32 32, %s20
        %s274 = smul.u32 32, %s20
        %v276 = vld [vmem:[%s266] sm:$0xf]
        %v277 = vld [vmem:[%s266 + $0x4] sm:$0xf]
        %v278 = vld [vmem:[%s266 + $0x8] sm:$0xf]
        %v279 = vld [vmem:[%s266 + $0xc] sm:$0xf]
        %v280 = vld [vmem:[%s266 + $0x10] sm:$0xf]
        %v281 = vld [vmem:[%s266 + $0x14] sm:$0xf]
        %v282 = vld [vmem:[%s266 + $0x18] sm:$0xf]
        %v283 = vld [vmem:[%s266 + $0x1c] sm:$0xf]
        %v284 = vld [vmem:[%s266 + $0x20] sm:$0xf]
        %v285 = vld [vmem:[%s266 + $0x24] sm:$0xf]
        %v286 = vld [vmem:[%s266 + $0x28] sm:$0xf]
        %v287 = vld [vmem:[%s266 + $0x2c] sm:$0xf]
        %v288 = vld [vmem:[%s266 + $0x30] sm:$0xf]
        %v289 = vld [vmem:[%s266 + $0x34] sm:$0xf]
        %v290 = vld [vmem:[%s266 + $0x38] sm:$0xf]
        %v291 = vld [vmem:[%s266 + $0x3c] sm:$0xf]
        %v292 = vld [vmem:[%s266 + $0x40] sm:$0xf]
        %v293 = vld [vmem:[%s266 + $0x44] sm:$0xf]
        %v294 = vld [vmem:[%s266 + $0x48] sm:$0xf]
        %v295 = vld [vmem:[%s266 + $0x4c] sm:$0xf]
        %v296 = vld [vmem:[%s266 + $0x50] sm:$0xf]
        %v297 = vld [vmem:[%s266 + $0x54] sm:$0xf]
        %v298 = vld [vmem:[%s266 + $0x58] sm:$0xf]
        %v299 = vld [vmem:[%s266 + $0x5c] sm:$0xf]
        %v300 = vld [vmem:[%s266 + $0x60] sm:$0xf]
        %v301 = vld [vmem:[%s266 + $0x64] sm:$0xf]
        %v302 = vld [vmem:[%s266 + $0x68] sm:$0xf]
        %v303 = vld [vmem:[%s266 + $0x6c] sm:$0xf]
        %v304 = vld [vmem:[%s266 + $0x70] sm:$0xf]
        %v305 = vld [vmem:[%s266 + $0x74] sm:$0xf]
        %v306 = vld [vmem:[%s266 + $0x78] sm:$0xf]
        %v307 = vld [vmem:[%s266 + $0x7c] sm:$0xf]
        %v308 = vld [vmem:[%s1] sm:$0xf]
        %v309 = vld [vmem:[%s1 + $0x4] sm:$0xf]
        %v310 = vld [vmem:[%s1 + $0x8] sm:$0xf]
        %v311 = vld [vmem:[%s1 + $0xc] sm:$0xf]
        %v312 = vld [vmem:[%s2] sm:$0x1]
        %v314 = vlaneseq
        %v315 = vshrl.u32 %v314, 7
        %v316 = vsub.s32 0, %v315
        %v317 = vrot.slane %v312, %v316
        %v351 = vunpack.c.l.b16 %v276
        %v352 = vunpack.c.l.b16 %v277
        %v353 = vunpack.c.l.b16 %v278
        %v354 = vunpack.c.l.b16 %v279
        %v355 = vunpack.c.l.b16 %v280
        %v356 = vunpack.c.l.b16 %v281
        %v357 = vunpack.c.l.b16 %v282
        %v358 = vunpack.c.l.b16 %v283
        %v359 = vunpack.c.l.b16 %v284
        %v360 = vunpack.c.l.b16 %v285
        %v361 = vunpack.c.l.b16 %v286
        %v362 = vunpack.c.l.b16 %v287
        %v363 = vunpack.c.l.b16 %v288
        %v364 = vunpack.c.l.b16 %v289
        %v365 = vunpack.c.l.b16 %v290
        %v366 = vunpack.c.l.b16 %v291
        %v367 = vunpack.c.l.b16 %v292
        %v368 = vunpack.c.l.b16 %v293
        %v369 = vunpack.c.l.b16 %v294
        %v370 = vunpack.c.l.b16 %v295
        %v371 = vunpack.c.l.b16 %v296
        %v372 = vunpack.c.l.b16 %v297
        %v373 = vunpack.c.l.b16 %v298
        %v374 = vunpack.c.l.b16 %v299
        %v375 = vunpack.c.l.b16 %v300
        %v376 = vunpack.c.l.b16 %v301
        %v377 = vunpack.c.l.b16 %v302
        %v378 = vunpack.c.l.b16 %v303
        %v379 = vunpack.c.l.b16 %v304
        %v380 = vunpack.c.l.b16 %v305
        %v381 = vunpack.c.l.b16 %v306
        %v382 = vunpack.c.l.b16 %v307
        %v383 = vpack.c.b16 %v352, %v351
        %v384 = vpack.c.b16 %v354, %v353
        %v385 = vpack.c.b16 %v356, %v355
        %v386 = vpack.c.b16 %v358, %v357
        %v387 = vpack.c.b16 %v360, %v359
        %v388 = vpack.c.b16 %v362, %v361
        %v389 = vpack.c.b16 %v364, %v363
        %v390 = vpack.c.b16 %v366, %v365
        %v391 = vpack.c.b16 %v368, %v367
        %v392 = vpack.c.b16 %v370, %v369
        %v393 = vpack.c.b16 %v372, %v371
        %v394 = vpack.c.b16 %v374, %v373
        %v395 = vpack.c.b16 %v376, %v375
        %v396 = vpack.c.b16 %v378, %v377
        %v397 = vpack.c.b16 %v380, %v379
        %v398 = vpack.c.b16 %v382, %v381
        %v403 = vunpack.c.l.b16 %v308
        %v404 = vunpack.c.l.b16 %v309
        %v405 = vunpack.c.l.b16 %v310
        %v406 = vunpack.c.l.b16 %v311
        %v407 = vpack.c.b16 %v404, %v403
        %v408 = vpack.c.b16 %v406, %v405
        %vm411 = vcmask 261120
        %v413 = vsel %vm411, %v383, 0
        %v416 = vsel %vm411, %v384, 0
        %v419 = vsel %vm411, %v385, 0
        %v422 = vsel %vm411, %v386, 0
        %v425 = vsel %vm411, %v387, 0
        %v428 = vsel %vm411, %v388, 0
        %v431 = vsel %vm411, %v389, 0
        %v434 = vsel %vm411, %v390, 0
        %v437 = vsel %vm411, %v391, 0
        %v440 = vsel %vm411, %v392, 0
        %v443 = vsel %vm411, %v393, 0
        %v446 = vsel %vm411, %v394, 0
        %v449 = vsel %vm411, %v395, 0
        %v452 = vsel %vm411, %v396, 0
        %v455 = vsel %vm411, %v397, 0
        %v458 = vsel %vm411, %v398, 0
        %460 = vmatprep.subr.bf16.mxu0 0
        %461 = vmatpush1.bf16.msra.mxu0 %v407
        %462 = vmatprep.subr.bf16.mxu0 0
        %463 = vmatpush1.bf16.msra.mxu0 %v408
        %464 = vmatprep.subr.bf16.mxu0 0
        %465 = vmatpush1.bf16.msra.mxu0 0
        %466 = vmatprep.subr.bf16.mxu0 0
        %467 = vmatpush1.bf16.msra.mxu0 0
        %468 = vmatprep.subr.bf16.mxu0 0
        %469 = vmatpush1.bf16.msra.mxu0 0
        %470 = vmatprep.subr.bf16.mxu0 0
        %471 = vmatpush1.bf16.msra.mxu0 0
        %472 = vmatprep.subr.bf16.mxu0 0
        %473 = vmatpush1.bf16.msra.mxu0 0
        %474 = vmatprep.subr.bf16.mxu0 0
        %475 = vmatpush1.bf16.msra.mxu0 0
        %476 = vmatprep.subr.bf16.mxu0 0
        %477 = vmatpush1.bf16.msra.mxu0 0
        %478 = vmatprep.subr.bf16.mxu0 0
        %479 = vmatpush1.bf16.msra.mxu0 0
        %480 = vmatprep.subr.bf16.mxu0 0
        %481 = vmatpush1.bf16.msra.mxu0 0
        %482 = vmatprep.subr.bf16.mxu0 0
        %483 = vmatpush1.bf16.msra.mxu0 0
        %484 = vmatprep.subr.bf16.mxu0 0
        %485 = vmatpush1.bf16.msra.mxu0 0
        %486 = vmatprep.subr.bf16.mxu0 0
        %487 = vmatpush1.bf16.msra.mxu0 0
        %488 = vmatprep.subr.bf16.mxu0 0
        %489 = vmatpush1.bf16.msra.mxu0 0
        %490 = vmatprep.subr.bf16.mxu0 0
        %491 = vmatpush1.bf16.msra.mxu0 0
        %492 = vmatprep.mubr.bf16.mxu0 0
        %493 = vmatmul.mubr.bf16.gmra.mrb[0].mxu0 %v413
        %v494 = vpop.f32.mrb[0].mxu0
        %v495 = vadd.f32 %v317, %v494
        %v496 = vpop.f32.mrb[0].mxu0
        %v497 = vpop.f32.mrb[0].mxu0
        %v498 = vadd.f32 %v317, %v497
        %v499 = vpop.f32.mrb[0].mxu0
        %500 = vmatprep.mubr.bf16.mxu0 0
        %501 = vmatmul.mubr.bf16.gmra.mrb[0].mxu0 %v416
        %v502 = vpop.f32.mrb[0].mxu0
        %v503 = vadd.f32 %v317, %v502
        %v504 = vpop.f32.mrb[0].mxu0
        %v505 = vpop.f32.mrb[0].mxu0
        %v506 = vadd.f32 %v317, %v505
        %v507 = vpop.f32.mrb[0].mxu0
        %508 = vmatprep.mubr.bf16.mxu0 0
        %509 = vmatmul.mubr.bf16.gmra.mrb[0].mxu0 %v419
        %v510 = vpop.f32.mrb[0].mxu0
        %v511 = vadd.f32 %v317, %v510
        %v512 = vpop.f32.mrb[0].mxu0
        %v513 = vpop.f32.mrb[0].mxu0
        %v514 = vadd.f32 %v317, %v513
        %v515 = vpop.f32.mrb[0].mxu0
        %516 = vmatprep.mubr.bf16.mxu0 0
        %517 = vmatmul.mubr.bf16.gmra.mrb[0].mxu0 %v422
        %v518 = vpop.f32.mrb[0].mxu0
        %v519 = vadd.f32 %v317, %v518
        %v520 = vpop.f32.mrb[0].mxu0
        %v521 = vpop.f32.mrb[0].mxu0
        %v522 = vadd.f32 %v317, %v521
        %v523 = vpop.f32.mrb[0].mxu0
        %524 = vmatprep.mubr.bf16.mxu0 0
        %525 = vmatmul.mubr.bf16.gmra.mrb[0].mxu0 %v425
        %v526 = vpop.f32.mrb[0].mxu0
        %v527 = vadd.f32 %v317, %v526
        %v528 = vpop.f32.mrb[0].mxu0
        %v529 = vpop.f32.mrb[0].mxu0
        %v530 = vadd.f32 %v317, %v529
        %v531 = vpop.f32.mrb[0].mxu0
        %532 = vmatprep.mubr.bf16.mxu0 0
        %533 = vmatmul.mubr.bf16.gmra.mrb[0].mxu0 %v428
        %v534 = vpop.f32.mrb[0].mxu0
        %v535 = vadd.f32 %v317, %v534
        %v536 = vpop.f32.mrb[0].mxu0
        %v537 = vpop.f32.mrb[0].mxu0
        %v538 = vadd.f32 %v317, %v537
        %v539 = vpop.f32.mrb[0].mxu0
        %540 = vmatprep.mubr.bf16.mxu0 0
        %541 = vmatmul.mubr.bf16.gmra.mrb[0].mxu0 %v431
        %v542 = vpop.f32.mrb[0].mxu0
        %v543 = vadd.f32 %v317, %v542
        %v544 = vpop.f32.mrb[0].mxu0
        %v545 = vpop.f32.mrb[0].mxu0
        %v546 = vadd.f32 %v317, %v545
        %v547 = vpop.f32.mrb[0].mxu0
        %548 = vmatprep.mubr.bf16.mxu0 0
        %549 = vmatmul.mubr.bf16.gmra.mrb[0].mxu0 %v434
        %v550 = vpop.f32.mrb[0].mxu0
        %v551 = vadd.f32 %v317, %v550
        %v552 = vpop.f32.mrb[0].mxu0
        %v553 = vpop.f32.mrb[0].mxu0
        %v554 = vadd.f32 %v317, %v553
        %v555 = vpop.f32.mrb[0].mxu0
        %556 = vmatprep.mubr.bf16.mxu0 0
        %557 = vmatmul.mubr.bf16.gmra.mrb[0].mxu0 %v437
        %v558 = vpop.f32.mrb[0].mxu0
        %v559 = vadd.f32 %v317, %v558
        %v560 = vpop.f32.mrb[0].mxu0
        %v561 = vpop.f32.mrb[0].mxu0
        %v562 = vadd.f32 %v317, %v561
        %v563 = vpop.f32.mrb[0].mxu0
        %564 = vmatprep.mubr.bf16.mxu0 0
        %565 = vmatmul.mubr.bf16.gmra.mrb[0].mxu0 %v440
        %v566 = vpop.f32.mrb[0].mxu0
        %v567 = vadd.f32 %v317, %v566
        %v568 = vpop.f32.mrb[0].mxu0
        %v569 = vpop.f32.mrb[0].mxu0
        %v570 = vadd.f32 %v317, %v569
        %v571 = vpop.f32.mrb[0].mxu0
        %572 = vmatprep.mubr.bf16.mxu0 0
        %573 = vmatmul.mubr.bf16.gmra.mrb[0].mxu0 %v443
        %v574 = vpop.f32.mrb[0].mxu0
        %v575 = vadd.f32 %v317, %v574
        %v576 = vpop.f32.mrb[0].mxu0
        %v577 = vpop.f32.mrb[0].mxu0
        %v578 = vadd.f32 %v317, %v577
        %v579 = vpop.f32.mrb[0].mxu0
        %580 = vmatprep.mubr.bf16.mxu0 0
        %581 = vmatmul.mubr.bf16.gmra.mrb[0].mxu0 %v446
        %v582 = vpop.f32.mrb[0].mxu0
        %v583 = vadd.f32 %v317, %v582
        %v584 = vpop.f32.mrb[0].mxu0
        %v585 = vpop.f32.mrb[0].mxu0
        %v586 = vadd.f32 %v317, %v585
        %v587 = vpop.f32.mrb[0].mxu0
        %588 = vmatprep.mubr.bf16.mxu0 0
        %589 = vmatmul.mubr.bf16.gmra.mrb[0].mxu0 %v449
        %v590 = vpop.f32.mrb[0].mxu0
        %v591 = vadd.f32 %v317, %v590
        %v592 = vpop.f32.mrb[0].mxu0
        %v593 = vpop.f32.mrb[0].mxu0
        %v594 = vadd.f32 %v317, %v593
        %v595 = vpop.f32.mrb[0].mxu0
        %596 = vmatprep.mubr.bf16.mxu0 0
        %597 = vmatmul.mubr.bf16.gmra.mrb[0].mxu0 %v452
        %v598 = vpop.f32.mrb[0].mxu0
        %v599 = vadd.f32 %v317, %v598
        %v600 = vpop.f32.mrb[0].mxu0
        %v601 = vpop.f32.mrb[0].mxu0
        %v602 = vadd.f32 %v317, %v601
        %v603 = vpop.f32.mrb[0].mxu0
        %604 = vmatprep.mubr.bf16.mxu0 0
        %605 = vmatmul.mubr.bf16.gmra.mrb[0].mxu0 %v455
        %v606 = vpop.f32.mrb[0].mxu0
        %v607 = vadd.f32 %v317, %v606
        %v608 = vpop.f32.mrb[0].mxu0
        %v609 = vpop.f32.mrb[0].mxu0
        %v610 = vadd.f32 %v317, %v609
        %v611 = vpop.f32.mrb[0].mxu0
        %612 = vmatprep.mubr.bf16.mxu0 0
        %613 = vmatmul.mubr.bf16.gmra.mrb[0].mxu0 %v458
        %v614 = vpop.f32.mrb[0].mxu0
        %v615 = vadd.f32 %v317, %v614
        %v616 = vpop.f32.mrb[0].mxu0
        %v617 = vpop.f32.mrb[0].mxu0
        %v618 = vadd.f32 %v317, %v617
        %v619 = vpop.f32.mrb[0].mxu0
        %620 = vdwg.mxu0
        %v621 = vld [vmem:[%s272] sm:$0xf]
        %v622 = vld [vmem:[%s272 + $0x4] sm:$0xf]
        %v623 = vld [vmem:[%s272 + $0x8] sm:$0xf]
        %v624 = vld [vmem:[%s272 + $0xc] sm:$0xf]
        %v625 = vld [vmem:[%s272 + $0x10] sm:$0xf]
        %v626 = vld [vmem:[%s272 + $0x14] sm:$0xf]
        %v627 = vld [vmem:[%s272 + $0x18] sm:$0xf]
        %v628 = vld [vmem:[%s272 + $0x1c] sm:$0xf]
        %v629 = vld [vmem:[%s272 + $0x20] sm:$0xf]
        %v630 = vld [vmem:[%s272 + $0x24] sm:$0xf]
        %v631 = vld [vmem:[%s272 + $0x28] sm:$0xf]
        %v632 = vld [vmem:[%s272 + $0x2c] sm:$0xf]
        %v633 = vld [vmem:[%s272 + $0x30] sm:$0xf]
        %v634 = vld [vmem:[%s272 + $0x34] sm:$0xf]
        %v635 = vld [vmem:[%s272 + $0x38] sm:$0xf]
        %v636 = vld [vmem:[%s272 + $0x3c] sm:$0xf]
        %v637 = vld [vmem:[%s272 + $0x40] sm:$0xf]
        %v638 = vld [vmem:[%s272 + $0x44] sm:$0xf]
        %v639 = vld [vmem:[%s272 + $0x48] sm:$0xf]
        %v640 = vld [vmem:[%s272 + $0x4c] sm:$0xf]
        %v641 = vld [vmem:[%s272 + $0x50] sm:$0xf]
        %v642 = vld [vmem:[%s272 + $0x54] sm:$0xf]
        %v643 = vld [vmem:[%s272 + $0x58] sm:$0xf]
        %v644 = vld [vmem:[%s272 + $0x5c] sm:$0xf]
        %v645 = vld [vmem:[%s272 + $0x60] sm:$0xf]
        %v646 = vld [vmem:[%s272 + $0x64] sm:$0xf]
        %v647 = vld [vmem:[%s272 + $0x68] sm:$0xf]
        %v648 = vld [vmem:[%s272 + $0x6c] sm:$0xf]
        %v649 = vld [vmem:[%s272 + $0x70] sm:$0xf]
        %v650 = vld [vmem:[%s272 + $0x74] sm:$0xf]
        %v651 = vld [vmem:[%s272 + $0x78] sm:$0xf]
        %v652 = vld [vmem:[%s272 + $0x7c] sm:$0xf]
        %v653 = vld [vmem:[%s4] sm:$0xf]
        %v654 = vld [vmem:[%s4 + $0x4] sm:$0xf]
        %v655 = vld [vmem:[%s4 + $0x8] sm:$0xf]
        %v656 = vld [vmem:[%s4 + $0xc] sm:$0xf]
        %v657 = vld [vmem:[%s4 + $0x10] sm:$0xf]
        %v658 = vld [vmem:[%s4 + $0x14] sm:$0xf]
        %v659 = vld [vmem:[%s4 + $0x18] sm:$0xf]
        %v660 = vld [vmem:[%s4 + $0x1c] sm:$0xf]
        %v693 = vunpack.c.l.b16 %v621
        %v694 = vunpack.c.l.b16 %v622
        %v695 = vunpack.c.l.b16 %v623
        %v696 = vunpack.c.l.b16 %v624
        %v697 = vunpack.c.l.b16 %v625
        %v698 = vunpack.c.l.b16 %v626
        %v699 = vunpack.c.l.b16 %v627
        %v700 = vunpack.c.l.b16 %v628
        %v701 = vunpack.c.l.b16 %v629
        %v702 = vunpack.c.l.b16 %v630
        %v703 = vunpack.c.l.b16 %v631
        %v704 = vunpack.c.l.b16 %v632
        %v705 = vunpack.c.l.b16 %v633
        %v706 = vunpack.c.l.b16 %v634
        %v707 = vunpack.c.l.b16 %v635
        %v708 = vunpack.c.l.b16 %v636
        %v709 = vunpack.c.l.b16 %v637
        %v710 = vunpack.c.l.b16 %v638
        %v711 = vunpack.c.l.b16 %v639
        %v712 = vunpack.c.l.b16 %v640
        %v713 = vunpack.c.l.b16 %v641
        %v714 = vunpack.c.l.b16 %v642
        %v715 = vunpack.c.l.b16 %v643
        %v716 = vunpack.c.l.b16 %v644
        %v717 = vunpack.c.l.b16 %v645
        %v718 = vunpack.c.l.b16 %v646
        %v719 = vunpack.c.l.b16 %v647
        %v720 = vunpack.c.l.b16 %v648
        %v721 = vunpack.c.l.b16 %v649
        %v722 = vunpack.c.l.b16 %v650
        %v723 = vunpack.c.l.b16 %v651
        %v724 = vunpack.c.l.b16 %v652
        %v725 = vpack.c.b16 %v694, %v693
        %v726 = vpack.c.b16 %v696, %v695
        %v727 = vpack.c.b16 %v698, %v697
        %v728 = vpack.c.b16 %v700, %v699
        %v729 = vpack.c.b16 %v702, %v701
        %v730 = vpack.c.b16 %v704, %v703
        %v731 = vpack.c.b16 %v706, %v705
        %v732 = vpack.c.b16 %v708, %v707
        %v733 = vpack.c.b16 %v710, %v709
        %v734 = vpack.c.b16 %v712, %v711
        %v735 = vpack.c.b16 %v714, %v713
        %v736 = vpack.c.b16 %v716, %v715
        %v737 = vpack.c.b16 %v718, %v717
        %v738 = vpack.c.b16 %v720, %v719
        %v739 = vpack.c.b16 %v722, %v721
        %v740 = vpack.c.b16 %v724, %v723
        %v749 = vunpack.c.l.b16 %v653
        %v750 = vunpack.c.l.b16 %v654
        %v751 = vunpack.c.l.b16 %v655
        %v752 = vunpack.c.l.b16 %v656
        %v753 = vunpack.c.l.b16 %v657
        %v754 = vunpack.c.l.b16 %v658
        %v755 = vunpack.c.l.b16 %v659
        %v756 = vunpack.c.l.b16 %v660
        %v757 = vpack.c.b16 %v750, %v749
        %v758 = vpack.c.b16 %v752, %v751
        %v759 = vpack.c.b16 %v754, %v753
        %v760 = vpack.c.b16 %v756, %v755
        %vm765 = vcmask 523264
        %v767 = vsel %vm765, %v725, 0
        %v770 = vsel %vm765, %v726, 0
        %v773 = vsel %vm765, %v727, 0
        %v776 = vsel %vm765, %v728, 0
        %v779 = vsel %vm765, %v729, 0
        %v782 = vsel %vm765, %v730, 0
        %v785 = vsel %vm765, %v731, 0
        %v788 = vsel %vm765, %v732, 0
        %v791 = vsel %vm765, %v733, 0
        %v794 = vsel %vm765, %v734, 0
        %v797 = vsel %vm765, %v735, 0
        %v800 = vsel %vm765, %v736, 0
        %v803 = vsel %vm765, %v737, 0
        %v806 = vsel %vm765, %v738, 0
        %v809 = vsel %vm765, %v739, 0
        %v812 = vsel %vm765, %v740, 0
        %814 = vmatprep.subr.bf16.mxu0 0
        %815 = vmatpush1.bf16.msra.mxu0 %v757
        %816 = vmatprep.subr.bf16.mxu0 0
        %817 = vmatpush1.bf16.msra.mxu0 %v758
        %818 = vmatprep.subr.bf16.mxu0 0
        %819 = vmatpush1.bf16.msra.mxu0 %v759
        %820 = vmatprep.subr.bf16.mxu0 0
        %821 = vmatpush1.bf16.msra.mxu0 %v760
        %822 = vmatprep.subr.bf16.mxu0 0
        %823 = vmatpush1.bf16.msra.mxu0 0
        %824 = vmatprep.subr.bf16.mxu0 0
        %825 = vmatpush1.bf16.msra.mxu0 0
        %826 = vmatprep.subr.bf16.mxu0 0
        %827 = vmatpush1.bf16.msra.mxu0 0
        %828 = vmatprep.subr.bf16.mxu0 0
        %829 = vmatpush1.bf16.msra.mxu0 0
        %830 = vmatprep.subr.bf16.mxu0 0
        %831 = vmatpush1.bf16.msra.mxu0 0
        %832 = vmatprep.subr.bf16.mxu0 0
        %833 = vmatpush1.bf16.msra.mxu0 0
        %834 = vmatprep.subr.bf16.mxu0 0
        %835 = vmatpush1.bf16.msra.mxu0 0
        %836 = vmatprep.subr.bf16.mxu0 0
        %837 = vmatpush1.bf16.msra.mxu0 0
        %838 = vmatprep.subr.bf16.mxu0 0
        %839 = vmatpush1.bf16.msra.mxu0 0
        %840 = vmatprep.subr.bf16.mxu0 0
        %841 = vmatpush1.bf16.msra.mxu0 0
        %842 = vmatprep.subr.bf16.mxu0 0
        %843 = vmatpush1.bf16.msra.mxu0 0
        %844 = vmatprep.subr.bf16.mxu0 0
        %845 = vmatpush1.bf16.msra.mxu0 0
        %846 = vmatprep.mubr.bf16.mxu0 0
        %847 = vmatmul.mubr.bf16.gmra.mrb[0].mxu0 %v767
        %v848 = vpop.f32.mrb[0].mxu0
        %v849 = vadd.f32 0.0, %v848
        %v850 = vpop.f32.mrb[0].mxu0
        %v851 = vpop.f32.mrb[0].mxu0
        %v852 = vadd.f32 0.0, %v851
        %v853 = vpop.f32.mrb[0].mxu0
        %854 = vmatprep.mubr.bf16.mxu0 0
        %855 = vmatmul.mubr.bf16.gmra.mrb[0].mxu0 %v770
        %v856 = vpop.f32.mrb[0].mxu0
        %v857 = vadd.f32 0.0, %v856
        %v858 = vpop.f32.mrb[0].mxu0
        %v859 = vpop.f32.mrb[0].mxu0
        %v860 = vadd.f32 0.0, %v859
        %v861 = vpop.f32.mrb[0].mxu0
        %862 = vmatprep.mubr.bf16.mxu0 0
        %863 = vmatmul.mubr.bf16.gmra.mrb[0].mxu0 %v773
        %v864 = vpop.f32.mrb[0].mxu0
        %v865 = vadd.f32 0.0, %v864
        %v866 = vpop.f32.mrb[0].mxu0
        %v867 = vpop.f32.mrb[0].mxu0
        %v868 = vadd.f32 0.0, %v867
        %v869 = vpop.f32.mrb[0].mxu0
        %870 = vmatprep.mubr.bf16.mxu0 0
        %871 = vmatmul.mubr.bf16.gmra.mrb[0].mxu0 %v776
        %v872 = vpop.f32.mrb[0].mxu0
        %v873 = vadd.f32 0.0, %v872
        %v874 = vpop.f32.mrb[0].mxu0
        %v875 = vpop.f32.mrb[0].mxu0
        %v876 = vadd.f32 0.0, %v875
        %v877 = vpop.f32.mrb[0].mxu0
        %878 = vmatprep.mubr.bf16.mxu0 0
        %879 = vmatmul.mubr.bf16.gmra.mrb[0].mxu0 %v779
        %v880 = vpop.f32.mrb[0].mxu0
        %v881 = vadd.f32 0.0, %v880
        %v882 = vpop.f32.mrb[0].mxu0
        %v883 = vpop.f32.mrb[0].mxu0
        %v884 = vadd.f32 0.0, %v883
        %v885 = vpop.f32.mrb[0].mxu0
        %886 = vmatprep.mubr.bf16.mxu0 0
        %887 = vmatmul.mubr.bf16.gmra.mrb[0].mxu0 %v782
        %v888 = vpop.f32.mrb[0].mxu0
        %v889 = vadd.f32 0.0, %v888
        %v890 = vpop.f32.mrb[0].mxu0
        %v891 = vpop.f32.mrb[0].mxu0
        %v892 = vadd.f32 0.0, %v891
        %v893 = vpop.f32.mrb[0].mxu0
        %894 = vmatprep.mubr.bf16.mxu0 0
        %895 = vmatmul.mubr.bf16.gmra.mrb[0].mxu0 %v785
        %v896 = vpop.f32.mrb[0].mxu0
        %v897 = vadd.f32 0.0, %v896
        %v898 = vpop.f32.mrb[0].mxu0
        %v899 = vpop.f32.mrb[0].mxu0
        %v900 = vadd.f32 0.0, %v899
        %v901 = vpop.f32.mrb[0].mxu0
        %902 = vmatprep.mubr.bf16.mxu0 0
        %903 = vmatmul.mubr.bf16.gmra.mrb[0].mxu0 %v788
        %v904 = vpop.f32.mrb[0].mxu0
        %v905 = vadd.f32 0.0, %v904
        %v906 = vpop.f32.mrb[0].mxu0
        %v907 = vpop.f32.mrb[0].mxu0
        %v908 = vadd.f32 0.0, %v907
        %v909 = vpop.f32.mrb[0].mxu0
        %910 = vmatprep.mubr.bf16.mxu0 0
        %911 = vmatmul.mubr.bf16.gmra.mrb[0].mxu0 %v791
        %v912 = vpop.f32.mrb[0].mxu0
        %v913 = vadd.f32 0.0, %v912
        %v914 = vpop.f32.mrb[0].mxu0
        %v915 = vpop.f32.mrb[0].mxu0
        %v916 = vadd.f32 0.0, %v915
        %v917 = vpop.f32.mrb[0].mxu0
        %918 = vmatprep.mubr.bf16.mxu0 0
        %919 = vmatmul.mubr.bf16.gmra.mrb[0].mxu0 %v794
        %v920 = vpop.f32.mrb[0].mxu0
        %v921 = vadd.f32 0.0, %v920
        %v922 = vpop.f32.mrb[0].mxu0
        %v923 = vpop.f32.mrb[0].mxu0
        %v924 = vadd.f32 0.0, %v923
        %v925 = vpop.f32.mrb[0].mxu0
        %926 = vmatprep.mubr.bf16.mxu0 0
        %927 = vmatmul.mubr.bf16.gmra.mrb[0].mxu0 %v797
        %v928 = vpop.f32.mrb[0].mxu0
        %v929 = vadd.f32 0.0, %v928
        %v930 = vpop.f32.mrb[0].mxu0
        %v931 = vpop.f32.mrb[0].mxu0
        %v932 = vadd.f32 0.0, %v931
        %v933 = vpop.f32.mrb[0].mxu0
        %934 = vmatprep.mubr.bf16.mxu0 0
        %935 = vmatmul.mubr.bf16.gmra.mrb[0].mxu0 %v800
        %v936 = vpop.f32.mrb[0].mxu0
        %v937 = vadd.f32 0.0, %v936
        %v938 = vpop.f32.mrb[0].mxu0
        %v939 = vpop.f32.mrb[0].mxu0
        %v940 = vadd.f32 0.0, %v939
        %v941 = vpop.f32.mrb[0].mxu0
        %942 = vmatprep.mubr.bf16.mxu0 0
        %943 = vmatmul.mubr.bf16.gmra.mrb[0].mxu0 %v803
        %v944 = vpop.f32.mrb[0].mxu0
        %v945 = vadd.f32 0.0, %v944
        %v946 = vpop.f32.mrb[0].mxu0
        %v947 = vpop.f32.mrb[0].mxu0
        %v948 = vadd.f32 0.0, %v947
        %v949 = vpop.f32.mrb[0].mxu0
        %950 = vmatprep.mubr.bf16.mxu0 0
        %951 = vmatmul.mubr.bf16.gmra.mrb[0].mxu0 %v806
        %v952 = vpop.f32.mrb[0].mxu0
        %v953 = vadd.f32 0.0, %v952
        %v954 = vpop.f32.mrb[0].mxu0
        %v955 = vpop.f32.mrb[0].mxu0
        %v956 = vadd.f32 0.0, %v955
        %v957 = vpop.f32.mrb[0].mxu0
        %958 = vmatprep.mubr.bf16.mxu0 0
        %959 = vmatmul.mubr.bf16.gmra.mrb[0].mxu0 %v809
        %v960 = vpop.f32.mrb[0].mxu0
        %v961 = vadd.f32 0.0, %v960
        %v962 = vpop.f32.mrb[0].mxu0
        %v963 = vpop.f32.mrb[0].mxu0
        %v964 = vadd.f32 0.0, %v963
        %v965 = vpop.f32.mrb[0].mxu0
        %966 = vmatprep.mubr.bf16.mxu0 0
        %967 = vmatmul.mubr.bf16.gmra.mrb[0].mxu0 %v812
        %v968 = vpop.f32.mrb[0].mxu0
        %v969 = vadd.f32 0.0, %v968
        %v970 = vpop.f32.mrb[0].mxu0
        %v971 = vpop.f32.mrb[0].mxu0
        %v972 = vadd.f32 0.0, %v971
        %v973 = vpop.f32.mrb[0].mxu0
        %974 = vdwg.mxu0
        %v975 = vadd.f32 %v495, %v849
        %v976 = vadd.f32 %v498, %v852
        %v977 = vadd.f32 %v503, %v857
        %v978 = vadd.f32 %v506, %v860
        %v979 = vadd.f32 %v511, %v865
        %v980 = vadd.f32 %v514, %v868
        %v981 = vadd.f32 %v519, %v873
        %v982 = vadd.f32 %v522, %v876
        %v983 = vadd.f32 %v527, %v881
        %v984 = vadd.f32 %v530, %v884
        %v985 = vadd.f32 %v535, %v889
        %v986 = vadd.f32 %v538, %v892
        %v987 = vadd.f32 %v543, %v897
        %v988 = vadd.f32 %v546, %v900
        %v989 = vadd.f32 %v551, %v905
        %v990 = vadd.f32 %v554, %v908
        %v991 = vadd.f32 %v559, %v913
        %v992 = vadd.f32 %v562, %v916
        %v993 = vadd.f32 %v567, %v921
        %v994 = vadd.f32 %v570, %v924
        %v995 = vadd.f32 %v575, %v929
        %v996 = vadd.f32 %v578, %v932
        %v997 = vadd.f32 %v583, %v937
        %v998 = vadd.f32 %v586, %v940
        %v999 = vadd.f32 %v591, %v945
        %v1000 = vadd.f32 %v594, %v948
        %v1001 = vadd.f32 %v599, %v953
        %v1002 = vadd.f32 %v602, %v956
        %v1003 = vadd.f32 %v607, %v961
        %v1004 = vadd.f32 %v610, %v964
        %v1005 = vadd.f32 %v615, %v969
        %v1006 = vadd.f32 %v618, %v972
        %v1007 = vld [vmem:[%s5] sm:$0x1]
        %v1009 = vlaneseq
        %v1010 = vshrl.u32 %v1009, 7
        %v1011 = vsub.s32 0, %v1010
        %v1012 = vrot.slane %v1007, %v1011
        %v1014 = vadd.f32 %v975, %v1012
        %v1015 = vadd.f32 %v976, %v1012
        %v1016 = vadd.f32 %v977, %v1012
        %v1017 = vadd.f32 %v978, %v1012
        %v1018 = vadd.f32 %v979, %v1012
        %v1019 = vadd.f32 %v980, %v1012
        %v1020 = vadd.f32 %v981, %v1012
        %v1021 = vadd.f32 %v982, %v1012
        %v1022 = vadd.f32 %v983, %v1012
        %v1023 = vadd.f32 %v984, %v1012
        %v1024 = vadd.f32 %v985, %v1012
        %v1025 = vadd.f32 %v986, %v1012
        %v1026 = vadd.f32 %v987, %v1012
        %v1027 = vadd.f32 %v988, %v1012
        %v1028 = vadd.f32 %v989, %v1012
        %v1029 = vadd.f32 %v990, %v1012
        %v1030 = vadd.f32 %v991, %v1012
        %v1031 = vadd.f32 %v992, %v1012
        %v1032 = vadd.f32 %v993, %v1012
        %v1033 = vadd.f32 %v994, %v1012
        %v1034 = vadd.f32 %v995, %v1012
        %v1035 = vadd.f32 %v996, %v1012
        %v1036 = vadd.f32 %v997, %v1012
        %v1037 = vadd.f32 %v998, %v1012
        %v1038 = vadd.f32 %v999, %v1012
        %v1039 = vadd.f32 %v1000, %v1012
        %v1040 = vadd.f32 %v1001, %v1012
        %v1041 = vadd.f32 %v1002, %v1012
        %v1042 = vadd.f32 %v1003, %v1012
        %v1043 = vadd.f32 %v1004, %v1012
        %v1044 = vadd.f32 %v1005, %v1012
        %v1045 = vadd.f32 %v1006, %v1012
        %v1046 = vmax.f32 %v1014, 0.0
        %v1047 = vmax.f32 %v1015, 0.0
        %v1048 = vmax.f32 %v1016, 0.0
        %v1049 = vmax.f32 %v1017, 0.0
        %v1050 = vmax.f32 %v1018, 0.0
        %v1051 = vmax.f32 %v1019, 0.0
        %v1052 = vmax.f32 %v1020, 0.0
        %v1053 = vmax.f32 %v1021, 0.0
        %v1054 = vmax.f32 %v1022, 0.0
        %v1055 = vmax.f32 %v1023, 0.0
        %v1056 = vmax.f32 %v1024, 0.0
        %v1057 = vmax.f32 %v1025, 0.0
        %v1058 = vmax.f32 %v1026, 0.0
        %v1059 = vmax.f32 %v1027, 0.0
        %v1060 = vmax.f32 %v1028, 0.0
        %v1061 = vmax.f32 %v1029, 0.0
        %v1062 = vmax.f32 %v1030, 0.0
        %v1063 = vmax.f32 %v1031, 0.0
        %v1064 = vmax.f32 %v1032, 0.0
        %v1065 = vmax.f32 %v1033, 0.0
        %v1066 = vmax.f32 %v1034, 0.0
        %v1067 = vmax.f32 %v1035, 0.0
        %v1068 = vmax.f32 %v1036, 0.0
        %v1069 = vmax.f32 %v1037, 0.0
        %v1070 = vmax.f32 %v1038, 0.0
        %v1071 = vmax.f32 %v1039, 0.0
        %v1072 = vmax.f32 %v1040, 0.0
        %v1073 = vmax.f32 %v1041, 0.0
        %v1074 = vmax.f32 %v1042, 0.0
        %v1075 = vmax.f32 %v1043, 0.0
        %v1076 = vmax.f32 %v1044, 0.0
        %v1077 = vmax.f32 %v1045, 0.0
        %1078 = vst [vmem:[%s261] sm:$0xff] %v1046
        %1079 = vst [vmem:[%s261 + $0x8] sm:$0xff] %v1047
        %1080 = vst [vmem:[%s261 + $0x10] sm:$0xff] %v1048
        %1081 = vst [vmem:[%s261 + $0x18] sm:$0xff] %v1049
        %1082 = vst [vmem:[%s261 + $0x20] sm:$0xff] %v1050
        %1083 = vst [vmem:[%s261 + $0x28] sm:$0xff] %v1051
        %1084 = vst [vmem:[%s261 + $0x30] sm:$0xff] %v1052
        %1085 = vst [vmem:[%s261 + $0x38] sm:$0xff] %v1053
        %1086 = vst [vmem:[%s261 + $0x40] sm:$0xff] %v1054
        %1087 = vst [vmem:[%s261 + $0x48] sm:$0xff] %v1055
        %1088 = vst [vmem:[%s261 + $0x50] sm:$0xff] %v1056
        %1089 = vst [vmem:[%s261 + $0x58] sm:$0xff] %v1057
        %1090 = vst [vmem:[%s261 + $0x60] sm:$0xff] %v1058
        %1091 = vst [vmem:[%s261 + $0x68] sm:$0xff] %v1059
        %1092 = vst [vmem:[%s261 + $0x70] sm:$0xff] %v1060
        %1093 = vst [vmem:[%s261 + $0x78] sm:$0xff] %v1061
        %1094 = vst [vmem:[%s261 + $0x80] sm:$0xff] %v1062
        %1095 = vst [vmem:[%s261 + $0x88] sm:$0xff] %v1063
        %1096 = vst [vmem:[%s261 + $0x90] sm:$0xff] %v1064
        %1097 = vst [vmem:[%s261 + $0x98] sm:$0xff] %v1065
        %1098 = vst [vmem:[%s261 + $0xa0] sm:$0xff] %v1066
        %1099 = vst [vmem:[%s261 + $0xa8] sm:$0xff] %v1067
        %1100 = vst [vmem:[%s261 + $0xb0] sm:$0xff] %v1068
        %1101 = vst [vmem:[%s261 + $0xb8] sm:$0xff] %v1069
        %1102 = vst [vmem:[%s261 + $0xc0] sm:$0xff] %v1070
        %1103 = vst [vmem:[%s261 + $0xc8] sm:$0xff] %v1071
        %1104 = vst [vmem:[%s261 + $0xd0] sm:$0xff] %v1072
        %1105 = vst [vmem:[%s261 + $0xd8] sm:$0xff] %v1073
        %1106 = vst [vmem:[%s261 + $0xe0] sm:$0xff] %v1074
        %1107 = vst [vmem:[%s261 + $0xe8] sm:$0xff] %v1075
        %1108 = vst [vmem:[%s261 + $0xf0] sm:$0xff] %v1076
        %1109 = vst [vmem:[%s261 + $0xf8] sm:$0xff] %v1077
        %s1110 = sand.u32 %s164, 1
        %s1111 = scalar_lea.sflag [#allocation3], %s1110
        %s1112 = sand.u32 %s164, 1
        %s1113 = smul.addr %s1112, 256
        %s1114 = scalar_lea.vmem [#allocation2], %s1113
        // Predicated region
        $region45: #{bottleneck_forward.5} parent=43 // pred_check
          %p1115 = pneg %p174
        $region46: #{bottleneck_forward.5} parent=43 // pred_check_branch
          %1117 = sbr.rel (%p1115) target = $region48
        $region47: #{bottleneck_forward.5} parent=43 // pred_region
          %s1118 = smul.u32 32, %s20
          %s1120 = ssub.s32 4096, 4096
          %1121 = vsyncadd %s1111, %s1120
          %s1122 = smul.addr %s1118, 128
          %s1123 = scalar_lea.hbm %s6, %s1122
          %s1124 = sshll.u32 %s1114, 4
          %s1125 = int_to_ptr.vmem [resolvable:$true] %s1124
          %1130 = dma.vmem_to_hbm [thread:$0]  %s1125, 4096, %s1123, %s1111, 128, 128, 8
        $region48: #{bottleneck_forward.5} parent=43 // pred_fallthru
          _
      $region44: #{bottleneck_forward.5} parent=5 // pred_fallthru
        _
      %p1131 = scmp.le.s32.totalorder 2, %s15
      // Predicated region
      $region49: #{bottleneck_forward.5} parent=5 // pred_check
        %p1132 = pneg %p1131
      $region50: #{bottleneck_forward.5} parent=5 // pred_check_branch
        %1134 = sbr.rel (%p1132) target = $region52
      $region51: #{bottleneck_forward.5} parent=5 // pred_region
        %s1135 = ssub.s32 %s15, 2
        // Predicated region
        $region53: #{bottleneck_forward.5} parent=51 // pred_check
          %p1136 = pneg %p180
        $region54: #{bottleneck_forward.5} parent=51 // pred_check_branch
          %1138 = sbr.rel (%p1136) target = $region56
        $region55: #{bottleneck_forward.5} parent=51 // pred_region
          %s1139 = sand.u32 %s165, 1
          %s1140 = scalar_lea.sflag [#allocation3], %s1139
          %s1141 = sand.u32 %s165, 1
          %s1142 = smul.addr %s1141, 256
          %s1143 = scalar_lea.vmem [#allocation2], %s1142
          %1144 = dma.done %s1140, 4096
        $region56: #{bottleneck_forward.5} parent=51 // pred_fallthru
          _
      $region52: #{bottleneck_forward.5} parent=5 // pred_fallthru
        _
    $region6: #{bottleneck_forward.5} parent=1 // loop_footer
      %s19 = sadd.s32 1, %s15
    $region7: #{bottleneck_forward.5} parent=1 // loop_footer_branch
      %14 = sbr.rel target = $region3
    $region8: #{bottleneck_forward.5} parent=1 // loop_exit
      _
    %1145 = vsyncpa [#allocation3], 1
    %s1146 = scalar_lea.sflag [#allocation3], 1
    %1147 = vsyncpa %s1146, 1

// kernel: bottleneck_forward.4
$region0: #{bottleneck_forward.4}
  #allocation0 [shape = 'u32[]', space=smem, size = 0x4, offset = 0x4, fixed_abs, tag = 'smem constant byte address 0x4 - core index']
  #allocation1 [shape = 'u32[144,128]{1,0:T(1,128)}', space=vmem, size = 0x12000, scoped, tag = 'internal scratch']
  %s0 = inlined_call_operand.vmem [shape: bf16[2,332,32], index: 0, kind: input, shape index: {}]
  %s1 = inlined_call_operand.vmem [shape: bf16[9,32,32], index: 1, kind: input, shape index: {}]
  %s2 = inlined_call_operand.vmem [shape: f32[1,32], index: 2, kind: input, shape index: {}]
  %s3 = inlined_call_operand.vmem [shape: bf16[2,288,32], index: 3, kind: output, shape index: {}]
  %s4 = sld [smem:[#allocation0]]
  $region45: #{bottleneck_forward.4} parent=0
    _
  %s6 = ssub.s32 1, %s4
  %s7 = scalar_select 0, %s6, %s4
  loop: start=0, step=1, limit=4
  $region2: #{bottleneck_forward.4} parent=0 // loop_pre_header
    _
  $region3: #{bottleneck_forward.4} parent=0 // loop_header
    %s9 = sphi 0, %s13
    %p10 = scmp.ge.s32.totalorder %s9, 4
    %s19 = sphi 0, %s21
    %s22 = sphi 0, %s19
    %s23 = sphi 0, %s22
    %s39 = sphi 0, %s23
    %s43 = sphi 0, %s43
    %s45 = sphi 0, %s43
    %s46 = sphi 0, %s45
    %s60 = sphi 0, %s46
    %s64 = sphi 0, %s64
    %s66 = sphi 0, %s64
    %s67 = sphi 0, %s66
    %s81 = sphi 0, %s67
    %s87 = sphi 0, %s89
    %s90 = sphi 0, %s87
    %s91 = sphi 0, %s90
    %s107 = sphi 0, %s91
  $region4: #{bottleneck_forward.4} parent=0 // loop_header_branch
    %12 = sbr.rel (%p10) target = $region8
  $region5: #{bottleneck_forward.4} parent=0 // loop_body
    %s14 = ssub.s32 %s9, 1
    %s15 = ssub.s32 %s9, 2
    %s16 = sadd.s32 %s9, 1
    %s17 = ssub.s32 %s9, %s16
    %p18 = scmp.eq.s32.totalorder %s17, 0
    %s20 = sadd.s32 %s19, 1
    %s21 = scalar_select %p18, %s19, %s20
    %p24 = pneg %p18
    %p25 = scmp.eq.s32.totalorder %s9, 1
    %p26 = por %p24, %p25
    %p27 = scmp.ne.s32.totalorder %s19, %s22
    %p28 = scmp.eq.s32.totalorder %s9, 0
    %p29 = por %p27, %p28
    %p30 = scmp.ne.s32.totalorder %s19, %s22
    %p31 = scmp.eq.s32.totalorder %s14, 1
    %p32 = por %p30, %p31
    %p33 = scmp.ne.s32.totalorder %s22, %s23
    %p34 = scmp.eq.s32.totalorder %s14, 0
    %p35 = por %p33, %p34
    %p36 = scmp.ne.s32.totalorder %s22, %s23
    %p37 = scmp.eq.s32.totalorder %s15, 1
    %p38 = por %p36, %p37
    %p40 = scmp.ne.s32.totalorder %s23, %s39
    %p41 = scmp.eq.s32.totalorder %s15, 0
    %p42 = por %p40, %p41
    %s44 = sadd.s32 %s43, 1
    %p47 = scmp.eq.s32.totalorder %s9, 1
    %p48 = scmp.ne.s32.totalorder %s43, %s45
    %p49 = scmp.eq.s32.totalorder %s9, 0
    %p50 = por %p48, %p49
    %p51 = scmp.ne.s32.totalorder %s43, %s45
    %p52 = scmp.eq.s32.totalorder %s14, 1
    %p53 = por %p51, %p52
    %p54 = scmp.ne.s32.totalorder %s45, %s46
    %p55 = scmp.eq.s32.totalorder %s14, 0
    %p56 = por %p54, %p55
    %p57 = scmp.ne.s32.totalorder %s45, %s46
    %p58 = scmp.eq.s32.totalorder %s15, 1
    %p59 = por %p57, %p58
    %p61 = scmp.ne.s32.totalorder %s46, %s60
    %p62 = scmp.eq.s32.totalorder %s15, 0
    %p63 = por %p61, %p62
    %s65 = sadd.s32 %s64, 1
    %p68 = scmp.eq.s32.totalorder %s9, 1
    %p69 = scmp.ne.s32.totalorder %s64, %s66
    %p70 = scmp.eq.s32.totalorder %s9, 0
    %p71 = por %p69, %p70
    %p72 = scmp.ne.s32.totalorder %s64, %s66
    %p73 = scmp.eq.s32.totalorder %s14, 1
    %p74 = por %p72, %p73
    %p75 = scmp.ne.s32.totalorder %s66, %s67
    %p76 = scmp.eq.s32.totalorder %s14, 0
    %p77 = por %p75, %p76
    %p78 = scmp.ne.s32.totalorder %s66, %s67
    %p79 = scmp.eq.s32.totalorder %s15, 1
    %p80 = por %p78, %p79
    %p82 = scmp.ne.s32.totalorder %s67, %s81
    %p83 = scmp.eq.s32.totalorder %s15, 0
    %p84 = por %p82, %p83
    %s85 = ssub.s32 %s9, %s16
    %p86 = scmp.eq.s32.totalorder %s85, 0
    %s88 = sadd.s32 %s87, 1
    %s89 = scalar_select %p86, %s87, %s88
    %p92 = pneg %p86
    %p93 = scmp.eq.s32.totalorder %s9, 1
    %p94 = por %p92, %p93
    %p95 = scmp.ne.s32.totalorder %s87, %s90
    %p96 = scmp.eq.s32.totalorder %s9, 0
    %p97 = por %p95, %p96
    %p98 = scmp.ne.s32.totalorder %s87, %s90
    %p99 = scmp.eq.s32.totalorder %s14, 1
    %p100 = por %p98, %p99
    %p101 = scmp.ne.s32.totalorder %s90, %s91
    %p102 = scmp.eq.s32.totalorder %s14, 0
    %p103 = por %p101, %p102
    %p104 = scmp.ne.s32.totalorder %s90, %s91
    %p105 = scmp.eq.s32.totalorder %s15, 1
    %p106 = por %p104, %p105
    %p108 = scmp.ne.s32.totalorder %s91, %s107
    %p109 = scmp.eq.s32.totalorder %s15, 0
    %p110 = por %p108, %p109
    %p111 = scmp.le.s32.totalorder 1, %s9
    %p112 = scmp.lt.s32.totalorder %s9, 3
    %p113 = pnand %p111, %p112
    %p114 = pneg %p113
    // Predicated region
    $region9: #{bottleneck_forward.4} parent=5 // pred_check
      _
    $region10: #{bottleneck_forward.4} parent=5 // pred_check_branch
      %116 = sbr.rel (%p113) target = $region12
    $region11: #{bottleneck_forward.4} parent=5 // pred_region
      %s117 = ssub.s32 %s9, 1
      // Predicated region
      $region13: #{bottleneck_forward.4} parent=11 // pred_check
        %p118 = pneg %p56
      $region14: #{bottleneck_forward.4} parent=11 // pred_check_branch
        %120 = sbr.rel (%p118) target = $region16
      $region15: #{bottleneck_forward.4} parent=11 // pred_region
        _
      $region16: #{bottleneck_forward.4} parent=11 // pred_fallthru
        _
      // Predicated region
      $region17: #{bottleneck_forward.4} parent=11 // pred_check
        %p121 = pneg %p77
      $region18: #{bottleneck_forward.4} parent=11 // pred_check_branch
        %123 = sbr.rel (%p121) target = $region20
      $region19: #{bottleneck_forward.4} parent=11 // pred_region
        _
      $region20: #{bottleneck_forward.4} parent=11 // pred_fallthru
        _
    $region12: #{bottleneck_forward.4} parent=5 // pred_fallthru
      _
    %p124 = scmp.lt.s32.totalorder %s9, 2
    // Predicated region
    $region21: #{bottleneck_forward.4} parent=5 // pred_check
      %p125 = pneg %p124
    $region22: #{bottleneck_forward.4} parent=5 // pred_check_branch
      %127 = sbr.rel (%p125) target = $region24
    $region23: #{bottleneck_forward.4} parent=5 // pred_region
      // Predicated region
      $region25: #{bottleneck_forward.4} parent=23 // pred_check
        %p128 = pneg %p29
      $region26: #{bottleneck_forward.4} parent=23 // pred_check_branch
        %130 = sbr.rel (%p128) target = $region28
      $region27: #{bottleneck_forward.4} parent=23 // pred_region
        %p131 = scmp.lt.s32.totalorder %s9, 1
        %s132 = scalar_select %p131, %s9, 1
        %s133 = smul.addr %s132, 42
        %s134 = smul.addr %s133, 4
        %s135 = scalar_lea.vmem %s0, %s134
      $region28: #{bottleneck_forward.4} parent=23 // pred_fallthru
        _
    $region24: #{bottleneck_forward.4} parent=5 // pred_fallthru
      _
    %p136 = scmp.le.s32.totalorder 1, %s9
    %p137 = scmp.lt.s32.totalorder %s9, 3
    %p138 = pnand %p136, %p137
    %p139 = pneg %p138
    // Predicated region
    $region29: #{bottleneck_forward.4} parent=5 // pred_check
      _
    $region30: #{bottleneck_forward.4} parent=5 // pred_check_branch
      %141 = sbr.rel (%p138) target = $region32
    $region31: #{bottleneck_forward.4} parent=5 // pred_region
      %s142 = ssub.s32 %s9, 1
      %p143 = scmp.lt.s32.totalorder %s14, 1
      %s144 = scalar_select %p143, %s14, 1
      %s145 = smul.addr %s144, 42
      %s146 = smul.addr %s145, 4
      %s147 = scalar_lea.vmem %s0, %s146
      %p148 = pneg %p35
      %p149 = pneg %p32
      %p150 = pneg %p56
      %p151 = pneg %p53
      %p152 = pneg %p77
      %p153 = pneg %p74
      %p154 = pneg %p103
      %p155 = pneg %p100
      %p156 = scmp.lt.s32.totalorder %s14, 1
      %s157 = scalar_select %p156, %s14, 1
      %s158 = smul.addr %s157, 36
      %s159 = smul.addr %s158, 4
      %s160 = scalar_lea.vmem %s3, %s159
      %p161 = scmp.lt.s32.totalorder %s14, 1
      %s162 = scalar_select %p161, %s14, 1
      %s163 = smul.addr %s162, 42
      %s164 = smul.addr %s163, 4
      %s165 = scalar_lea.vmem %s0, %s164
      %p166 = scmp.lt.s32.totalorder %s14, 1
      %s167 = scalar_select %p166, %s14, 1
      %s168 = smul.addr %s167, 36
      %s169 = smul.addr %s168, 4
      %s170 = scalar_lea.vmem %s3, %s169
      %v172 = vld [vmem:[%s165] sm:$0xf]
      %v173 = vld [vmem:[%s165 + $0x4] sm:$0xf]
      %v174 = vld [vmem:[%s165 + $0x8] sm:$0xf]
      %v175 = vld [vmem:[%s165 + $0xc] sm:$0xf]
      %v176 = vld [vmem:[%s165 + $0x10] sm:$0xf]
      %v177 = vld [vmem:[%s165 + $0x14] sm:$0xf]
      %v178 = vld [vmem:[%s165 + $0x18] sm:$0xf]
      %v179 = vld [vmem:[%s165 + $0x1c] sm:$0xf]
      %v180 = vld [vmem:[%s165 + $0x20] sm:$0xf]
      %v181 = vld [vmem:[%s165 + $0x24] sm:$0xf]
      %v182 = vld [vmem:[%s165 + $0x28] sm:$0xf]
      %v183 = vld [vmem:[%s165 + $0x2c] sm:$0xf]
      %v184 = vld [vmem:[%s165 + $0x30] sm:$0xf]
      %v185 = vld [vmem:[%s165 + $0x34] sm:$0xf]
      %v186 = vld [vmem:[%s165 + $0x38] sm:$0xf]
      %v187 = vld [vmem:[%s165 + $0x3c] sm:$0xf]
      %v188 = vld [vmem:[%s165 + $0x40] sm:$0xf]
      %v189 = vld [vmem:[%s165 + $0x44] sm:$0xf]
      %v190 = vld [vmem:[%s165 + $0x48] sm:$0xf]
      %v191 = vld [vmem:[%s165 + $0x4c] sm:$0xf]
      %v192 = vld [vmem:[%s165 + $0x50] sm:$0xf]
      %v193 = vld [vmem:[%s165 + $0x54] sm:$0xf]
      %v194 = vld [vmem:[%s165 + $0x58] sm:$0xf]
      %v195 = vld [vmem:[%s165 + $0x5c] sm:$0xf]
      %v196 = vld [vmem:[%s165 + $0x60] sm:$0xf]
      %v197 = vld [vmem:[%s165 + $0x64] sm:$0xf]
      %v198 = vld [vmem:[%s165 + $0x68] sm:$0xf]
      %v199 = vld [vmem:[%s165 + $0x6c] sm:$0xf]
      %v200 = vld [vmem:[%s165 + $0x70] sm:$0xf]
      %v201 = vld [vmem:[%s165 + $0x74] sm:$0xf]
      %v202 = vld [vmem:[%s165 + $0x78] sm:$0xf]
      %v203 = vld [vmem:[%s165 + $0x7c] sm:$0xf]
      %v204 = vld [vmem:[%s165 + $0x80] sm:$0xf]
      %v205 = vld [vmem:[%s165 + $0x84] sm:$0xf]
      %v206 = vld [vmem:[%s165 + $0x88] sm:$0xf]
      %v207 = vld [vmem:[%s165 + $0x8c] sm:$0xf]
      %v208 = vld [vmem:[%s1] sm:$0xf]
      %v209 = vld [vmem:[%s1 + $0x4] sm:$0xf]
      %v210 = vld [vmem:[%s1 + $0x8] sm:$0xf]
      %v211 = vld [vmem:[%s1 + $0xc] sm:$0xf]
      %v212 = vld [vmem:[%s165 + $0x90] sm:$0x1]
      %s213 = scalar_lea.vmem %s1, 16
      %v214 = vld [vmem:[%s213] sm:$0xf]
      %v215 = vld [vmem:[%s213 + $0x4] sm:$0xf]
      %v216 = vld [vmem:[%s213 + $0x8] sm:$0xf]
      %v217 = vld [vmem:[%s213 + $0xc] sm:$0xf]
      %v255 = vunpack.c.l.b16 %v172
      %v256 = vunpack.c.l.b16 %v173
      %v257 = vunpack.c.l.b16 %v174
      %v258 = vunpack.c.l.b16 %v175
      %v259 = vunpack.c.l.b16 %v176
      %v260 = vunpack.c.l.b16 %v177
      %v261 = vunpack.c.l.b16 %v178
      %v262 = vunpack.c.l.b16 %v179
      %v263 = vunpack.c.l.b16 %v180
      %v264 = vunpack.c.l.b16 %v181
      %v265 = vunpack.c.l.b16 %v182
      %v266 = vunpack.c.l.b16 %v183
      %v267 = vunpack.c.l.b16 %v184
      %v268 = vunpack.c.l.b16 %v185
      %v269 = vunpack.c.l.b16 %v186
      %v270 = vunpack.c.l.b16 %v187
      %v271 = vunpack.c.l.b16 %v188
      %v272 = vunpack.c.l.b16 %v189
      %v273 = vunpack.c.l.b16 %v190
      %v274 = vunpack.c.l.b16 %v191
      %v275 = vunpack.c.l.b16 %v192
      %v276 = vunpack.c.l.b16 %v193
      %v277 = vunpack.c.l.b16 %v194
      %v278 = vunpack.c.l.b16 %v195
      %v279 = vunpack.c.l.b16 %v196
      %v280 = vunpack.c.l.b16 %v197
      %v281 = vunpack.c.l.b16 %v198
      %v282 = vunpack.c.l.b16 %v199
      %v283 = vunpack.c.l.b16 %v200
      %v284 = vunpack.c.l.b16 %v201
      %v285 = vunpack.c.l.b16 %v202
      %v286 = vunpack.c.l.b16 %v203
      %v287 = vunpack.c.l.b16 %v204
      %v288 = vunpack.c.l.b16 %v205
      %v289 = vunpack.c.l.b16 %v206
      %v290 = vunpack.c.l.b16 %v207
      %v291 = vunpack.c.l.b16 %v212
      %v292 = vpack.c.b16 %v256, %v255
      %v293 = vpack.c.b16 %v258, %v257
      %v294 = vpack.c.b16 %v260, %v259
      %v295 = vpack.c.b16 %v262, %v261
      %v296 = vpack.c.b16 %v264, %v263
      %v297 = vpack.c.b16 %v266, %v265
      %v298 = vpack.c.b16 %v268, %v267
      %v299 = vpack.c.b16 %v270, %v269
      %v300 = vpack.c.b16 %v272, %v271
      %v301 = vpack.c.b16 %v274, %v273
      %v302 = vpack.c.b16 %v276, %v275
      %v303 = vpack.c.b16 %v278, %v277
      %v304 = vpack.c.b16 %v280, %v279
      %v305 = vpack.c.b16 %v282, %v281
      %v306 = vpack.c.b16 %v284, %v283
      %v307 = vpack.c.b16 %v286, %v285
      %v308 = vpack.c.b16 %v288, %v287
      %v309 = vpack.c.b16 %v290, %v289
      %v310 = vpack.c.b16 %v291, %v291
      %vm311 = vsmask.f32 7424
      %v313 = vshrl.u32 %v292, 16
      %v315 = vshll.u32 %v292, 16
      %v317 = vrot.slane %v315, 1
      %v318 = vor.u32 %v313, %v317
      %v320 = vshll.u32 %v293, 16
      %v322 = vrot.slane %v320, 1
      %v323 = vsel %vm311, %v318, %v322
      %v324 = vshrl.u32 %v293, 16
      %v326 = vor.u32 %v324, %v322
      %v328 = vshll.u32 %v294, 16
      %v330 = vrot.slane %v328, 1
      %v331 = vsel %vm311, %v326, %v330
      %v332 = vshrl.u32 %v294, 16
      %v334 = vor.u32 %v332, %v330
      %v336 = vshll.u32 %v295, 16
      %v338 = vrot.slane %v336, 1
      %v339 = vsel %vm311, %v334, %v338
      %v340 = vshrl.u32 %v295, 16
      %v342 = vor.u32 %v340, %v338
      %v344 = vshll.u32 %v296, 16
      %v346 = vrot.slane %v344, 1
      %v347 = vsel %vm311, %v342, %v346
      %v348 = vshrl.u32 %v296, 16
      %v350 = vor.u32 %v348, %v346
      %v352 = vshll.u32 %v297, 16
      %v354 = vrot.slane %v352, 1
      %v355 = vsel %vm311, %v350, %v354
      %v356 = vshrl.u32 %v297, 16
      %v358 = vor.u32 %v356, %v354
      %v360 = vshll.u32 %v298, 16
      %v362 = vrot.slane %v360, 1
      %v363 = vsel %vm311, %v358, %v362
      %v364 = vshrl.u32 %v298, 16
      %v366 = vor.u32 %v364, %v362
      %v368 = vshll.u32 %v299, 16
      %v370 = vrot.slane %v368, 1
      %v371 = vsel %vm311, %v366, %v370
      %v372 = vshrl.u32 %v299, 16
      %v374 = vor.u32 %v372, %v370
      %v376 = vshll.u32 %v300, 16
      %v378 = vrot.slane %v376, 1
      %v379 = vsel %vm311, %v374, %v378
      %v380 = vshrl.u32 %v300, 16
      %v382 = vor.u32 %v380, %v378
      %v384 = vshll.u32 %v301, 16
      %v386 = vrot.slane %v384, 1
      %v387 = vsel %vm311, %v382, %v386
      %v388 = vshrl.u32 %v301, 16
      %v390 = vor.u32 %v388, %v386
      %v392 = vshll.u32 %v302, 16
      %v394 = vrot.slane %v392, 1
      %v395 = vsel %vm311, %v390, %v394
      %v396 = vshrl.u32 %v302, 16
      %v398 = vor.u32 %v396, %v394
      %v400 = vshll.u32 %v303, 16
      %v402 = vrot.slane %v400, 1
      %v403 = vsel %vm311, %v398, %v402
      %v404 = vshrl.u32 %v303, 16
      %v406 = vor.u32 %v404, %v402
      %v408 = vshll.u32 %v304, 16
      %v410 = vrot.slane %v408, 1
      %v411 = vsel %vm311, %v406, %v410
      %v412 = vshrl.u32 %v304, 16
      %v414 = vor.u32 %v412, %v410
      %v416 = vshll.u32 %v305, 16
      %v418 = vrot.slane %v416, 1
      %v419 = vsel %vm311, %v414, %v418
      %v420 = vshrl.u32 %v305, 16
      %v422 = vor.u32 %v420, %v418
      %v424 = vshll.u32 %v306, 16
      %v426 = vrot.slane %v424, 1
      %v427 = vsel %vm311, %v422, %v426
      %v428 = vshrl.u32 %v306, 16
      %v430 = vor.u32 %v428, %v426
      %v432 = vshll.u32 %v307, 16
      %v434 = vrot.slane %v432, 1
      %v435 = vsel %vm311, %v430, %v434
      %v436 = vshrl.u32 %v307, 16
      %v438 = vor.u32 %v436, %v434
      %v440 = vshll.u32 %v308, 16
      %v442 = vrot.slane %v440, 1
      %v443 = vsel %vm311, %v438, %v442
      %v444 = vshrl.u32 %v308, 16
      %v446 = vor.u32 %v444, %v442
      %v448 = vshll.u32 %v309, 16
      %v450 = vrot.slane %v448, 1
      %v451 = vsel %vm311, %v446, %v450
      %v452 = vshrl.u32 %v309, 16
      %v454 = vor.u32 %v452, %v450
      %v456 = vshll.u32 %v310, 16
      %v458 = vrot.slane %v456, 1
      %v459 = vsel %vm311, %v454, %v458
      %v464 = vunpack.c.l.b16 %v214
      %v465 = vunpack.c.l.b16 %v215
      %v466 = vunpack.c.l.b16 %v216
      %v467 = vunpack.c.l.b16 %v217
      %v468 = vpack.c.b16 %v465, %v464
      %v469 = vpack.c.b16 %v467, %v466
      %vm472 = vcmask 261120
      %v474 = vsel %vm472, %v323, 0
      %v477 = vsel %vm472, %v331, 0
      %v480 = vsel %vm472, %v339, 0
      %v483 = vsel %vm472, %v347, 0
      %v486 = vsel %vm472, %v355, 0
      %v489 = vsel %vm472, %v363, 0
      %v492 = vsel %vm472, %v371, 0
      %v495 = vsel %vm472, %v379, 0
      %v498 = vsel %vm472, %v387, 0
      %v501 = vsel %vm472, %v395, 0
      %v504 = vsel %vm472, %v403, 0
      %v507 = vsel %vm472, %v411, 0
      %v510 = vsel %vm472, %v419, 0
      %v513 = vsel %vm472, %v427, 0
      %v516 = vsel %vm472, %v435, 0
      %v519 = vsel %vm472, %v443, 0
      %v522 = vsel %vm472, %v451, 0
      %v525 = vsel %vm472, %v459, 0
      %527 = vmatprep.subr.bf16.mxu0 0
      %528 = vmatpush1.bf16.msra.mxu0 %v468
      %529 = vmatprep.subr.bf16.mxu0 0
      %530 = vmatpush1.bf16.msra.mxu0 %v469
      %531 = vmatprep.subr.bf16.mxu0 0
      %532 = vmatpush1.bf16.msra.mxu0 0
      %533 = vmatprep.subr.bf16.mxu0 0
      %534 = vmatpush1.bf16.msra.mxu0 0
      %535 = vmatprep.subr.bf16.mxu0 0
      %536 = vmatpush1.bf16.msra.mxu0 0
      %537 = vmatprep.subr.bf16.mxu0 0
      %538 = vmatpush1.bf16.msra.mxu0 0
      %539 = vmatprep.subr.bf16.mxu0 0
      %540 = vmatpush1.bf16.msra.mxu0 0
      %541 = vmatprep.subr.bf16.mxu0 0
      %542 = vmatpush1.bf16.msra.mxu0 0
      %543 = vmatprep.subr.bf16.mxu0 0
      %544 = vmatpush1.bf16.msra.mxu0 0
      %545 = vmatprep.subr.bf16.mxu0 0
      %546 = vmatpush1.bf16.msra.mxu0 0
      %547 = vmatprep.subr.bf16.mxu0 0
      %548 = vmatpush1.bf16.msra.mxu0 0
      %549 = vmatprep.subr.bf16.mxu0 0
      %550 = vmatpush1.bf16.msra.mxu0 0
      %551 = vmatprep.subr.bf16.mxu0 0
      %552 = vmatpush1.bf16.msra.mxu0 0
      %553 = vmatprep.subr.bf16.mxu0 0
      %554 = vmatpush1.bf16.msra.mxu0 0
      %555 = vmatprep.subr.bf16.mxu0 0
      %556 = vmatpush1.bf16.msra.mxu0 0
      %557 = vmatprep.subr.bf16.mxu0 0
      %558 = vmatpush1.bf16.msra.mxu0 0
      %559 = vmatprep.mubr.bf16.mxu0 0
      %560 = vmatmul.mubr.bf16.gmra.mrb[0].mxu0 %v474
      %v561 = vpop.f32.mrb[0].mxu0
      %v562 = vadd.f32 0.0, %v561
      %v563 = vpop.f32.mrb[0].mxu0
      %v564 = vpop.f32.mrb[0].mxu0
      %v565 = vadd.f32 0.0, %v564
      %v566 = vpop.f32.mrb[0].mxu0
      %567 = vmatprep.mubr.bf16.mxu0 0
      %568 = vmatmul.mubr.bf16.gmra.mrb[0].mxu0 %v477
      %v569 = vpop.f32.mrb[0].mxu0
      %v570 = vadd.f32 0.0, %v569
      %v571 = vpop.f32.mrb[0].mxu0
      %v572 = vpop.f32.mrb[0].mxu0
      %v573 = vadd.f32 0.0, %v572
      %v574 = vpop.f32.mrb[0].mxu0
      %575 = vmatprep.mubr.bf16.mxu0 0
      %576 = vmatmul.mubr.bf16.gmra.mrb[0].mxu0 %v480
      %v577 = vpop.f32.mrb[0].mxu0
      %v578 = vadd.f32 0.0, %v577
      %v579 = vpop.f32.mrb[0].mxu0
      %v580 = vpop.f32.mrb[0].mxu0
      %v581 = vadd.f32 0.0, %v580
      %v582 = vpop.f32.mrb[0].mxu0
      %583 = vmatprep.mubr.bf16.mxu0 0
      %584 = vmatmul.mubr.bf16.gmra.mrb[0].mxu0 %v483
      %v585 = vpop.f32.mrb[0].mxu0
      %v586 = vadd.f32 0.0, %v585
      %v587 = vpop.f32.mrb[0].mxu0
      %v588 = vpop.f32.mrb[0].mxu0
      %v589 = vadd.f32 0.0, %v588
      %v590 = vpop.f32.mrb[0].mxu0
      %591 = vmatprep.mubr.bf16.mxu0 0
      %592 = vmatmul.mubr.bf16.gmra.mrb[0].mxu0 %v486
      %v593 = vpop.f32.mrb[0].mxu0
      %v594 = vadd.f32 0.0, %v593
      %v595 = vpop.f32.mrb[0].mxu0
      %v596 = vpop.f32.mrb[0].mxu0
      %v597 = vadd.f32 0.0, %v596
      %v598 = vpop.f32.mrb[0].mxu0
      %599 = vmatprep.mubr.bf16.mxu0 0
      %600 = vmatmul.mubr.bf16.gmra.mrb[0].mxu0 %v489
      %v601 = vpop.f32.mrb[0].mxu0
      %v602 = vadd.f32 0.0, %v601
      %v603 = vpop.f32.mrb[0].mxu0
      %v604 = vpop.f32.mrb[0].mxu0
      %v605 = vadd.f32 0.0, %v604
      %v606 = vpop.f32.mrb[0].mxu0
      %607 = vmatprep.mubr.bf16.mxu0 0
      %608 = vmatmul.mubr.bf16.gmra.mrb[0].mxu0 %v492
      %v609 = vpop.f32.mrb[0].mxu0
      %v610 = vadd.f32 0.0, %v609
      %v611 = vpop.f32.mrb[0].mxu0
      %v612 = vpop.f32.mrb[0].mxu0
      %v613 = vadd.f32 0.0, %v612
      %v614 = vpop.f32.mrb[0].mxu0
      %615 = vmatprep.mubr.bf16.mxu0 0
      %616 = vmatmul.mubr.bf16.gmra.mrb[0].mxu0 %v495
      %v617 = vpop.f32.mrb[0].mxu0
      %v618 = vadd.f32 0.0, %v617
      %v619 = vpop.f32.mrb[0].mxu0
      %v620 = vpop.f32.mrb[0].mxu0
      %v621 = vadd.f32 0.0, %v620
      %v622 = vpop.f32.mrb[0].mxu0
      %623 = vmatprep.mubr.bf16.mxu0 0
      %624 = vmatmul.mubr.bf16.gmra.mrb[0].mxu0 %v498
      %v625 = vpop.f32.mrb[0].mxu0
      %v626 = vadd.f32 0.0, %v625
      %v627 = vpop.f32.mrb[0].mxu0
      %v628 = vpop.f32.mrb[0].mxu0
      %v629 = vadd.f32 0.0, %v628
      %v630 = vpop.f32.mrb[0].mxu0
      %631 = vmatprep.mubr.bf16.mxu0 0
      %632 = vmatmul.mubr.bf16.gmra.mrb[0].mxu0 %v501
      %v633 = vpop.f32.mrb[0].mxu0
      %v634 = vadd.f32 0.0, %v633
      %v635 = vpop.f32.mrb[0].mxu0
      %v636 = vpop.f32.mrb[0].mxu0
      %v637 = vadd.f32 0.0, %v636
      %v638 = vpop.f32.mrb[0].mxu0
      %639 = vmatprep.mubr.bf16.mxu0 0
      %640 = vmatmul.mubr.bf16.gmra.mrb[0].mxu0 %v504
      %v641 = vpop.f32.mrb[0].mxu0
      %v642 = vadd.f32 0.0, %v641
      %v643 = vpop.f32.mrb[0].mxu0
      %v644 = vpop.f32.mrb[0].mxu0
      %v645 = vadd.f32 0.0, %v644
      %v646 = vpop.f32.mrb[0].mxu0
      %647 = vmatprep.mubr.bf16.mxu0 0
      %648 = vmatmul.mubr.bf16.gmra.mrb[0].mxu0 %v507
      %v649 = vpop.f32.mrb[0].mxu0
      %v650 = vadd.f32 0.0, %v649
      %v651 = vpop.f32.mrb[0].mxu0
      %v652 = vpop.f32.mrb[0].mxu0
      %v653 = vadd.f32 0.0, %v652
      %v654 = vpop.f32.mrb[0].mxu0
      %655 = vmatprep.mubr.bf16.mxu0 0
      %656 = vmatmul.mubr.bf16.gmra.mrb[0].mxu0 %v510
      %v657 = vpop.f32.mrb[0].mxu0
      %v658 = vadd.f32 0.0, %v657
      %v659 = vpop.f32.mrb[0].mxu0
      %v660 = vpop.f32.mrb[0].mxu0
      %v661 = vadd.f32 0.0, %v660
      %v662 = vpop.f32.mrb[0].mxu0
      %663 = vmatprep.mubr.bf16.mxu0 0
      %664 = vmatmul.mubr.bf16.gmra.mrb[0].mxu0 %v513
      %v665 = vpop.f32.mrb[0].mxu0
      %v666 = vadd.f32 0.0, %v665
      %v667 = vpop.f32.mrb[0].mxu0
      %v668 = vpop.f32.mrb[0].mxu0
      %v669 = vadd.f32 0.0, %v668
      %v670 = vpop.f32.mrb[0].mxu0
      %671 = vmatprep.mubr.bf16.mxu0 0
      %672 = vmatmul.mubr.bf16.gmra.mrb[0].mxu0 %v516
      %v673 = vpop.f32.mrb[0].mxu0
      %v674 = vadd.f32 0.0, %v673
      %v675 = vpop.f32.mrb[0].mxu0
      %v676 = vpop.f32.mrb[0].mxu0
      %v677 = vadd.f32 0.0, %v676
      %v678 = vpop.f32.mrb[0].mxu0
      %679 = vmatprep.mubr.bf16.mxu0 0
      %680 = vmatmul.mubr.bf16.gmra.mrb[0].mxu0 %v519
      %v681 = vpop.f32.mrb[0].mxu0
      %v682 = vadd.f32 0.0, %v681
      %v683 = vpop.f32.mrb[0].mxu0
      %v684 = vpop.f32.mrb[0].mxu0
      %v685 = vadd.f32 0.0, %v684
      %v686 = vpop.f32.mrb[0].mxu0
      %687 = vmatprep.mubr.bf16.mxu0 0
      %688 = vmatmul.mubr.bf16.gmra.mrb[0].mxu0 %v522
      %v689 = vpop.f32.mrb[0].mxu0
      %v690 = vadd.f32 0.0, %v689
      %v691 = vpop.f32.mrb[0].mxu0
      %v692 = vpop.f32.mrb[0].mxu0
      %v693 = vadd.f32 0.0, %v692
      %v694 = vpop.f32.mrb[0].mxu0
      %695 = vmatprep.mubr.bf16.mxu0 0
      %696 = vmatmul.mubr.bf16.gmra.mrb[0].mxu0 %v525
      %v697 = vpop.f32.mrb[0].mxu0
      %v698 = vadd.f32 0.0, %v697
      %v699 = vpop.f32.mrb[0].mxu0
      %v700 = vpop.f32.mrb[0].mxu0
      %v701 = vadd.f32 0.0, %v700
      %v702 = vpop.f32.mrb[0].mxu0
      %703 = vdwg.mxu0
      %v708 = vunpack.c.l.b16 %v208
      %v709 = vunpack.c.l.b16 %v209
      %v710 = vunpack.c.l.b16 %v210
      %v711 = vunpack.c.l.b16 %v211
      %v712 = vpack.c.b16 %v709, %v708
      %v713 = vpack.c.b16 %v711, %v710
      %v716 = vsel %vm472, %v292, 0
      %v718 = vsel %vm472, %v293, 0
      %v720 = vsel %vm472, %v294, 0
      %v722 = vsel %vm472, %v295, 0
      %v724 = vsel %vm472, %v296, 0
      %v726 = vsel %vm472, %v297, 0
      %v728 = vsel %vm472, %v298, 0
      %v730 = vsel %vm472, %v299, 0
      %v732 = vsel %vm472, %v300, 0
      %v734 = vsel %vm472, %v301, 0
      %v736 = vsel %vm472, %v302, 0
      %v738 = vsel %vm472, %v303, 0
      %v740 = vsel %vm472, %v304, 0
      %v742 = vsel %vm472, %v305, 0
      %v744 = vsel %vm472, %v306, 0
      %v746 = vsel %vm472, %v307, 0
      %v748 = vsel %vm472, %v308, 0
      %v750 = vsel %vm472, %v309, 0
      %752 = vmatprep.subr.bf16.mxu0 0
      %753 = vmatpush1.bf16.msra.mxu0 %v712
      %754 = vmatprep.subr.bf16.mxu0 0
      %755 = vmatpush1.bf16.msra.mxu0 %v713
      %756 = vmatprep.subr.bf16.mxu0 0
      %757 = vmatpush1.bf16.msra.mxu0 0
      %758 = vmatprep.subr.bf16.mxu0 0
      %759 = vmatpush1.bf16.msra.mxu0 0
      %760 = vmatprep.subr.bf16.mxu0 0
      %761 = vmatpush1.bf16.msra.mxu0 0
      %762 = vmatprep.subr.bf16.mxu0 0
      %763 = vmatpush1.bf16.msra.mxu0 0
      %764 = vmatprep.subr.bf16.mxu0 0
      %765 = vmatpush1.bf16.msra.mxu0 0
      %766 = vmatprep.subr.bf16.mxu0 0
      %767 = vmatpush1.bf16.msra.mxu0 0
      %768 = vmatprep.subr.bf16.mxu0 0
      %769 = vmatpush1.bf16.msra.mxu0 0
      %770 = vmatprep.subr.bf16.mxu0 0
      %771 = vmatpush1.bf16.msra.mxu0 0
      %772 = vmatprep.subr.bf16.mxu0 0
      %773 = vmatpush1.bf16.msra.mxu0 0
      %774 = vmatprep.subr.bf16.mxu0 0
      %775 = vmatpush1.bf16.msra.mxu0 0
      %776 = vmatprep.subr.bf16.mxu0 0
      %777 = vmatpush1.bf16.msra.mxu0 0
      %778 = vmatprep.subr.bf16.mxu0 0
      %779 = vmatpush1.bf16.msra.mxu0 0
      %780 = vmatprep.subr.bf16.mxu0 0
      %781 = vmatpush1.bf16.msra.mxu0 0
      %782 = vmatprep.subr.bf16.mxu0 0
      %783 = vmatpush1.bf16.msra.mxu0 0
      %784 = vmatprep.mubr.bf16.mxu0 0
      %785 = vmatmul.mubr.bf16.gmra.mrb[0].mxu0 %v716
      %v786 = vpop.f32.mrb[0].mxu0
      %v787 = vadd.f32 %v562, %v786
      %v788 = vpop.f32.mrb[0].mxu0
      %v789 = vpop.f32.mrb[0].mxu0
      %v790 = vadd.f32 %v565, %v789
      %v791 = vpop.f32.mrb[0].mxu0
      %792 = vmatprep.mubr.bf16.mxu0 0
      %793 = vmatmul.mubr.bf16.gmra.mrb[0].mxu0 %v718
      %v794 = vpop.f32.mrb[0].mxu0
      %v795 = vadd.f32 %v570, %v794
      %v796 = vpop.f32.mrb[0].mxu0
      %v797 = vpop.f32.mrb[0].mxu0
      %v798 = vadd.f32 %v573, %v797
      %v799 = vpop.f32.mrb[0].mxu0
      %800 = vmatprep.mubr.bf16.mxu0 0
      %801 = vmatmul.mubr.bf16.gmra.mrb[0].mxu0 %v720
      %v802 = vpop.f32.mrb[0].mxu0
      %v803 = vadd.f32 %v578, %v802
      %v804 = vpop.f32.mrb[0].mxu0
      %v805 = vpop.f32.mrb[0].mxu0
      %v806 = vadd.f32 %v581, %v805
      %v807 = vpop.f32.mrb[0].mxu0
      %808 = vmatprep.mubr.bf16.mxu0 0
      %809 = vmatmul.mubr.bf16.gmra.mrb[0].mxu0 %v722
      %v810 = vpop.f32.mrb[0].mxu0
      %v811 = vadd.f32 %v586, %v810
      %v812 = vpop.f32.mrb[0].mxu0
      %v813 = vpop.f32.mrb[0].mxu0
      %v814 = vadd.f32 %v589, %v813
      %v815 = vpop.f32.mrb[0].mxu0
      %816 = vmatprep.mubr.bf16.mxu0 0
      %817 = vmatmul.mubr.bf16.gmra.mrb[0].mxu0 %v724
      %v818 = vpop.f32.mrb[0].mxu0
      %v819 = vadd.f32 %v594, %v818
      %v820 = vpop.f32.mrb[0].mxu0
      %v821 = vpop.f32.mrb[0].mxu0
      %v822 = vadd.f32 %v597, %v821
      %v823 = vpop.f32.mrb[0].mxu0
      %824 = vmatprep.mubr.bf16.mxu0 0
      %825 = vmatmul.mubr.bf16.gmra.mrb[0].mxu0 %v726
      %v826 = vpop.f32.mrb[0].mxu0
      %v827 = vadd.f32 %v602, %v826
      %v828 = vpop.f32.mrb[0].mxu0
      %v829 = vpop.f32.mrb[0].mxu0
      %v830 = vadd.f32 %v605, %v829
      %v831 = vpop.f32.mrb[0].mxu0
      %832 = vmatprep.mubr.bf16.mxu0 0
      %833 = vmatmul.mubr.bf16.gmra.mrb[0].mxu0 %v728
      %v834 = vpop.f32.mrb[0].mxu0
      %v835 = vadd.f32 %v610, %v834
      %v836 = vpop.f32.mrb[0].mxu0
      %v837 = vpop.f32.mrb[0].mxu0
      %v838 = vadd.f32 %v613, %v837
      %v839 = vpop.f32.mrb[0].mxu0
      %840 = vmatprep.mubr.bf16.mxu0 0
      %841 = vmatmul.mubr.bf16.gmra.mrb[0].mxu0 %v730
      %v842 = vpop.f32.mrb[0].mxu0
      %v843 = vadd.f32 %v618, %v842
      %v844 = vpop.f32.mrb[0].mxu0
      %v845 = vpop.f32.mrb[0].mxu0
      %v846 = vadd.f32 %v621, %v845
      %v847 = vpop.f32.mrb[0].mxu0
      %848 = vmatprep.mubr.bf16.mxu0 0
      %849 = vmatmul.mubr.bf16.gmra.mrb[0].mxu0 %v732
      %v850 = vpop.f32.mrb[0].mxu0
      %v851 = vadd.f32 %v626, %v850
      %v852 = vpop.f32.mrb[0].mxu0
      %v853 = vpop.f32.mrb[0].mxu0
      %v854 = vadd.f32 %v629, %v853
      %v855 = vpop.f32.mrb[0].mxu0
      %856 = vmatprep.mubr.bf16.mxu0 0
      %857 = vmatmul.mubr.bf16.gmra.mrb[0].mxu0 %v734
      %v858 = vpop.f32.mrb[0].mxu0
      %v859 = vadd.f32 %v634, %v858
      %v860 = vpop.f32.mrb[0].mxu0
      %v861 = vpop.f32.mrb[0].mxu0
      %v862 = vadd.f32 %v637, %v861
      %v863 = vpop.f32.mrb[0].mxu0
      %864 = vmatprep.mubr.bf16.mxu0 0
      %865 = vmatmul.mubr.bf16.gmra.mrb[0].mxu0 %v736
      %v866 = vpop.f32.mrb[0].mxu0
      %v867 = vadd.f32 %v642, %v866
      %v868 = vpop.f32.mrb[0].mxu0
      %v869 = vpop.f32.mrb[0].mxu0
      %v870 = vadd.f32 %v645, %v869
      %v871 = vpop.f32.mrb[0].mxu0
      %872 = vmatprep.mubr.bf16.mxu0 0
      %873 = vmatmul.mubr.bf16.gmra.mrb[0].mxu0 %v738
      %v874 = vpop.f32.mrb[0].mxu0
      %v875 = vadd.f32 %v650, %v874
      %v876 = vpop.f32.mrb[0].mxu0
      %v877 = vpop.f32.mrb[0].mxu0
      %v878 = vadd.f32 %v653, %v877
      %v879 = vpop.f32.mrb[0].mxu0
      %880 = vmatprep.mubr.bf16.mxu0 0
      %881 = vmatmul.mubr.bf16.gmra.mrb[0].mxu0 %v740
      %v882 = vpop.f32.mrb[0].mxu0
      %v883 = vadd.f32 %v658, %v882
      %v884 = vpop.f32.mrb[0].mxu0
      %v885 = vpop.f32.mrb[0].mxu0
      %v886 = vadd.f32 %v661, %v885
      %v887 = vpop.f32.mrb[0].mxu0
      %888 = vmatprep.mubr.bf16.mxu0 0
      %889 = vmatmul.mubr.bf16.gmra.mrb[0].mxu0 %v742
      %v890 = vpop.f32.mrb[0].mxu0
      %v891 = vadd.f32 %v666, %v890
      %v892 = vpop.f32.mrb[0].mxu0
      %v893 = vpop.f32.mrb[0].mxu0
      %v894 = vadd.f32 %v669, %v893
      %v895 = vpop.f32.mrb[0].mxu0
      %896 = vmatprep.mubr.bf16.mxu0 0
      %897 = vmatmul.mubr.bf16.gmra.mrb[0].mxu0 %v744
      %v898 = vpop.f32.mrb[0].mxu0
      %v899 = vadd.f32 %v674, %v898
      %v900 = vpop.f32.mrb[0].mxu0
      %v901 = vpop.f32.mrb[0].mxu0
      %v902 = vadd.f32 %v677, %v901
      %v903 = vpop.f32.mrb[0].mxu0
      %904 = vmatprep.mubr.bf16.mxu0 0
      %905 = vmatmul.mubr.bf16.gmra.mrb[0].mxu0 %v746
      %v906 = vpop.f32.mrb[0].mxu0
      %v907 = vadd.f32 %v682, %v906
      %v908 = vpop.f32.mrb[0].mxu0
      %v909 = vpop.f32.mrb[0].mxu0
      %v910 = vadd.f32 %v685, %v909
      %v911 = vpop.f32.mrb[0].mxu0
      %912 = vmatprep.mubr.bf16.mxu0 0
      %913 = vmatmul.mubr.bf16.gmra.mrb[0].mxu0 %v748
      %v914 = vpop.f32.mrb[0].mxu0
      %v915 = vadd.f32 %v690, %v914
      %v916 = vpop.f32.mrb[0].mxu0
      %v917 = vpop.f32.mrb[0].mxu0
      %v918 = vadd.f32 %v693, %v917
      %v919 = vpop.f32.mrb[0].mxu0
      %920 = vmatprep.mubr.bf16.mxu0 0
      %921 = vmatmul.mubr.bf16.gmra.mrb[0].mxu0 %v750
      %v922 = vpop.f32.mrb[0].mxu0
      %v923 = vadd.f32 %v698, %v922
      %v924 = vpop.f32.mrb[0].mxu0
      %v925 = vpop.f32.mrb[0].mxu0
      %v926 = vadd.f32 %v701, %v925
      %v927 = vpop.f32.mrb[0].mxu0
      %928 = vdwg.mxu0
      %v929 = vld [vmem:[%s165] sm:$0xe]
      %s930 = scalar_lea.vmem %s1, 32
      %v931 = vld [vmem:[%s930] sm:$0xf]
      %v932 = vld [vmem:[%s930 + $0x4] sm:$0xf]
      %v933 = vld [vmem:[%s930 + $0x8] sm:$0xf]
      %v934 = vld [vmem:[%s930 + $0xc] sm:$0xf]
      %v936 = vunpack.c.l.b16 %v929
      %v937 = vpack.c.b16 %v256, %v936
      %vm938 = vcmask 1046528
      %v939 = vrot.slane %v937, 1
      %v940 = vrot.slane %v293, 1
      %v941 = vsel %vm938, %v939, %v940
      %v942 = vrot.slane %v294, 1
      %v943 = vsel %vm938, %v940, %v942
      %v944 = vrot.slane %v295, 1
      %v945 = vsel %vm938, %v942, %v944
      %v946 = vrot.slane %v296, 1
      %v947 = vsel %vm938, %v944, %v946
      %v948 = vrot.slane %v297, 1
      %v949 = vsel %vm938, %v946, %v948
      %v950 = vrot.slane %v298, 1
      %v951 = vsel %vm938, %v948, %v950
      %v952 = vrot.slane %v299, 1
      %v953 = vsel %vm938, %v950, %v952
      %v954 = vrot.slane %v300, 1
      %v955 = vsel %vm938, %v952, %v954
      %v956 = vrot.slane %v301, 1
      %v957 = vsel %vm938, %v954, %v956
      %v958 = vrot.slane %v302, 1
      %v959 = vsel %vm938, %v956, %v958
      %v960 = vrot.slane %v303, 1
      %v961 = vsel %vm938, %v958, %v960
      %v962 = vrot.slane %v304, 1
      %v963 = vsel %vm938, %v960, %v962
      %v964 = vrot.slane %v305, 1
      %v965 = vsel %vm938, %v962, %v964
      %v966 = vrot.slane %v306, 1
      %v967 = vsel %vm938, %v964, %v966
      %v968 = vrot.slane %v307, 1
      %v969 = vsel %vm938, %v966, %v968
      %v970 = vrot.slane %v308, 1
      %v971 = vsel %vm938, %v968, %v970
      %v972 = vrot.slane %v309, 1
      %v973 = vsel %vm938, %v970, %v972
      %v974 = vrot.slane %v310, 1
      %v975 = vsel %vm938, %v972, %v974
      %v980 = vunpack.c.l.b16 %v931
      %v981 = vunpack.c.l.b16 %v932
      %v982 = vunpack.c.l.b16 %v933
      %v983 = vunpack.c.l.b16 %v934
      %v984 = vpack.c.b16 %v981, %v980
      %v985 = vpack.c.b16 %v983, %v982
      %v989 = vsel %vm472, %v941, 0
      %v992 = vsel %vm472, %v943, 0
      %v995 = vsel %vm472, %v945, 0
      %v998 = vsel %vm472, %v947, 0
      %v1001 = vsel %vm472, %v949, 0
      %v1004 = vsel %vm472, %v951, 0
      %v1007 = vsel %vm472, %v953, 0
      %v1010 = vsel %vm472, %v955, 0
      %v1013 = vsel %vm472, %v957, 0
      %v1016 = vsel %vm472, %v959, 0
      %v1019 = vsel %vm472, %v961, 0
      %v1022 = vsel %vm472, %v963, 0
      %v1025 = vsel %vm472, %v965, 0
      %v1028 = vsel %vm472, %v967, 0
      %v1031 = vsel %vm472, %v969, 0
      %v1034 = vsel %vm472, %v971, 0
      %v1037 = vsel %vm472, %v973, 0
      %v1040 = vsel %vm472, %v975, 0
      %1042 = vmatprep.subr.bf16.mxu0 0
      %1043 = vmatpush1.bf16.msra.mxu0 %v984
      %1044 = vmatprep.subr.bf16.mxu0 0
      %1045 = vmatpush1.bf16.msra.mxu0 %v985
      %1046 = vmatprep.subr.bf16.mxu0 0
      %1047 = vmatpush1.bf16.msra.mxu0 0
      %1048 = vmatprep.subr.bf16.mxu0 0
      %1049 = vmatpush1.bf16.msra.mxu0 0
      %1050 = vmatprep.subr.bf16.mxu0 0
      %1051 = vmatpush1.bf16.msra.mxu0 0
      %1052 = vmatprep.subr.bf16.mxu0 0
      %1053 = vmatpush1.bf16.msra.mxu0 0
      %1054 = vmatprep.subr.bf16.mxu0 0
      %1055 = vmatpush1.bf16.msra.mxu0 0
      %1056 = vmatprep.subr.bf16.mxu0 0
      %1057 = vmatpush1.bf16.msra.mxu0 0
      %1058 = vmatprep.subr.bf16.mxu0 0
      %1059 = vmatpush1.bf16.msra.mxu0 0
      %1060 = vmatprep.subr.bf16.mxu0 0
      %1061 = vmatpush1.bf16.msra.mxu0 0
      %1062 = vmatprep.subr.bf16.mxu0 0
      %1063 = vmatpush1.bf16.msra.mxu0 0
      %1064 = vmatprep.subr.bf16.mxu0 0
      %1065 = vmatpush1.bf16.msra.mxu0 0
      %1066 = vmatprep.subr.bf16.mxu0 0
      %1067 = vmatpush1.bf16.msra.mxu0 0
      %1068 = vmatprep.subr.bf16.mxu0 0
      %1069 = vmatpush1.bf16.msra.mxu0 0
      %1070 = vmatprep.subr.bf16.mxu0 0
      %1071 = vmatpush1.bf16.msra.mxu0 0
      %1072 = vmatprep.subr.bf16.mxu0 0
      %1073 = vmatpush1.bf16.msra.mxu0 0
      %1074 = vmatprep.mubr.bf16.mxu0 0
      %1075 = vmatmul.mubr.bf16.gmra.mrb[0].mxu0 %v989
      %v1076 = vpop.f32.mrb[0].mxu0
      %v1077 = vadd.f32 0.0, %v1076
      %v1078 = vpop.f32.mrb[0].mxu0
      %v1079 = vpop.f32.mrb[0].mxu0
      %v1080 = vadd.f32 0.0, %v1079
      %v1081 = vpop.f32.mrb[0].mxu0
      %1082 = vmatprep.mubr.bf16.mxu0 0
      %1083 = vmatmul.mubr.bf16.gmra.mrb[0].mxu0 %v992
      %v1084 = vpop.f32.mrb[0].mxu0
      %v1085 = vadd.f32 0.0, %v1084
      %v1086 = vpop.f32.mrb[0].mxu0
      %v1087 = vpop.f32.mrb[0].mxu0
      %v1088 = vadd.f32 0.0, %v1087
      %v1089 = vpop.f32.mrb[0].mxu0
      %1090 = vmatprep.mubr.bf16.mxu0 0
      %1091 = vmatmul.mubr.bf16.gmra.mrb[0].mxu0 %v995
      %v1092 = vpop.f32.mrb[0].mxu0
      %v1093 = vadd.f32 0.0, %v1092
      %v1094 = vpop.f32.mrb[0].mxu0
      %v1095 = vpop.f32.mrb[0].mxu0
      %v1096 = vadd.f32 0.0, %v1095
      %v1097 = vpop.f32.mrb[0].mxu0
      %1098 = vmatprep.mubr.bf16.mxu0 0
      %1099 = vmatmul.mubr.bf16.gmra.mrb[0].mxu0 %v998
      %v1100 = vpop.f32.mrb[0].mxu0
      %v1101 = vadd.f32 0.0, %v1100
      %v1102 = vpop.f32.mrb[0].mxu0
      %v1103 = vpop.f32.mrb[0].mxu0
      %v1104 = vadd.f32 0.0, %v1103
      %v1105 = vpop.f32.mrb[0].mxu0
      %1106 = vmatprep.mubr.bf16.mxu0 0
      %1107 = vmatmul.mubr.bf16.gmra.mrb[0].mxu0 %v1001
      %v1108 = vpop.f32.mrb[0].mxu0
      %v1109 = vadd.f32 0.0, %v1108
      %v1110 = vpop.f32.mrb[0].mxu0
      %v1111 = vpop.f32.mrb[0].mxu0
      %v1112 = vadd.f32 0.0, %v1111
      %v1113 = vpop.f32.mrb[0].mxu0
      %1114 = vmatprep.mubr.bf16.mxu0 0
      %1115 = vmatmul.mubr.bf16.gmra.mrb[0].mxu0 %v1004
      %v1116 = vpop.f32.mrb[0].mxu0
      %v1117 = vadd.f32 0.0, %v1116
      %v1118 = vpop.f32.mrb[0].mxu0
      %v1119 = vpop.f32.mrb[0].mxu0
      %v1120 = vadd.f32 0.0, %v1119
      %v1121 = vpop.f32.mrb[0].mxu0
      %1122 = vmatprep.mubr.bf16.mxu0 0
      %1123 = vmatmul.mubr.bf16.gmra.mrb[0].mxu0 %v1007
      %v1124 = vpop.f32.mrb[0].mxu0
      %v1125 = vadd.f32 0.0, %v1124
      %v1126 = vpop.f32.mrb[0].mxu0
      %v1127 = vpop.f32.mrb[0].mxu0
      %v1128 = vadd.f32 0.0, %v1127
      %v1129 = vpop.f32.mrb[0].mxu0
      %1130 = vmatprep.mubr.bf16.mxu0 0
      %1131 = vmatmul.mubr.bf16.gmra.mrb[0].mxu0 %v1010
      %v1132 = vpop.f32.mrb[0].mxu0
      %v1133 = vadd.f32 0.0, %v1132
      %v1134 = vpop.f32.mrb[0].mxu0
      %v1135 = vpop.f32.mrb[0].mxu0
      %v1136 = vadd.f32 0.0, %v1135
      %v1137 = vpop.f32.mrb[0].mxu0
      %1138 = vmatprep.mubr.bf16.mxu0 0
      %1139 = vmatmul.mubr.bf16.gmra.mrb[0].mxu0 %v1013
      %v1140 = vpop.f32.mrb[0].mxu0
      %v1141 = vadd.f32 0.0, %v1140
      %v1142 = vpop.f32.mrb[0].mxu0
      %v1143 = vpop.f32.mrb[0].mxu0
      %v1144 = vadd.f32 0.0, %v1143
      %v1145 = vpop.f32.mrb[0].mxu0
      %1146 = vmatprep.mubr.bf16.mxu0 0
      %1147 = vmatmul.mubr.bf16.gmra.mrb[0].mxu0 %v1016
      %v1148 = vpop.f32.mrb[0].mxu0
      %v1149 = vadd.f32 0.0, %v1148
      %v1150 = vpop.f32.mrb[0].mxu0
      %v1151 = vpop.f32.mrb[0].mxu0
      %v1152 = vadd.f32 0.0, %v1151
      %v1153 = vpop.f32.mrb[0].mxu0
      %1154 = vmatprep.mubr.bf16.mxu0 0
      %1155 = vmatmul.mubr.bf16.gmra.mrb[0].mxu0 %v1019
      %v1156 = vpop.f32.mrb[0].mxu0
      %v1157 = vadd.f32 0.0, %v1156
      %v1158 = vpop.f32.mrb[0].mxu0
      %v1159 = vpop.f32.mrb[0].mxu0
      %v1160 = vadd.f32 0.0, %v1159
      %v1161 = vpop.f32.mrb[0].mxu0
      %1162 = vmatprep.mubr.bf16.mxu0 0
      %1163 = vmatmul.mubr.bf16.gmra.mrb[0].mxu0 %v1022
      %v1164 = vpop.f32.mrb[0].mxu0
      %v1165 = vadd.f32 0.0, %v1164
      %v1166 = vpop.f32.mrb[0].mxu0
      %v1167 = vpop.f32.mrb[0].mxu0
      %v1168 = vadd.f32 0.0, %v1167
      %v1169 = vpop.f32.mrb[0].mxu0
      %1170 = vmatprep.mubr.bf16.mxu0 0
      %1171 = vmatmul.mubr.bf16.gmra.mrb[0].mxu0 %v1025
      %v1172 = vpop.f32.mrb[0].mxu0
      %v1173 = vadd.f32 0.0, %v1172
      %v1174 = vpop.f32.mrb[0].mxu0
      %v1175 = vpop.f32.mrb[0].mxu0
      %v1176 = vadd.f32 0.0, %v1175
      %v1177 = vpop.f32.mrb[0].mxu0
      %1178 = vmatprep.mubr.bf16.mxu0 0
      %1179 = vmatmul.mubr.bf16.gmra.mrb[0].mxu0 %v1028
      %v1180 = vpop.f32.mrb[0].mxu0
      %v1181 = vadd.f32 0.0, %v1180
      %v1182 = vpop.f32.mrb[0].mxu0
      %v1183 = vpop.f32.mrb[0].mxu0
      %v1184 = vadd.f32 0.0, %v1183
      %v1185 = vpop.f32.mrb[0].mxu0
      %1186 = vmatprep.mubr.bf16.mxu0 0
      %1187 = vmatmul.mubr.bf16.gmra.mrb[0].mxu0 %v1031
      %v1188 = vpop.f32.mrb[0].mxu0
      %v1189 = vadd.f32 0.0, %v1188
      %v1190 = vpop.f32.mrb[0].mxu0
      %v1191 = vpop.f32.mrb[0].mxu0
      %v1192 = vadd.f32 0.0, %v1191
      %v1193 = vpop.f32.mrb[0].mxu0
      %1194 = vmatprep.mubr.bf16.mxu0 0
      %1195 = vmatmul.mubr.bf16.gmra.mrb[0].mxu0 %v1034
      %v1196 = vpop.f32.mrb[0].mxu0
      %v1197 = vadd.f32 0.0, %v1196
      %v1198 = vpop.f32.mrb[0].mxu0
      %v1199 = vpop.f32.mrb[0].mxu0
      %v1200 = vadd.f32 0.0, %v1199
      %v1201 = vpop.f32.mrb[0].mxu0
      %1202 = vmatprep.mubr.bf16.mxu0 0
      %1203 = vmatmul.mubr.bf16.gmra.mrb[0].mxu0 %v1037
      %v1204 = vpop.f32.mrb[0].mxu0
      %v1205 = vadd.f32 0.0, %v1204
      %v1206 = vpop.f32.mrb[0].mxu0
      %v1207 = vpop.f32.mrb[0].mxu0
      %v1208 = vadd.f32 0.0, %v1207
      %v1209 = vpop.f32.mrb[0].mxu0
      %1210 = vmatprep.mubr.bf16.mxu0 0
      %1211 = vmatmul.mubr.bf16.gmra.mrb[0].mxu0 %v1040
      %v1212 = vpop.f32.mrb[0].mxu0
      %v1213 = vadd.f32 0.0, %v1212
      %v1214 = vpop.f32.mrb[0].mxu0
      %v1215 = vpop.f32.mrb[0].mxu0
      %v1216 = vadd.f32 0.0, %v1215
      %v1217 = vpop.f32.mrb[0].mxu0
      %1218 = vdwg.mxu0
      %v1219 = vadd.f32 %v787, %v1077
      %v1220 = vadd.f32 %v790, %v1080
      %v1221 = vadd.f32 %v795, %v1085
      %v1222 = vadd.f32 %v798, %v1088
      %v1223 = vadd.f32 %v803, %v1093
      %v1224 = vadd.f32 %v806, %v1096
      %v1225 = vadd.f32 %v811, %v1101
      %v1226 = vadd.f32 %v814, %v1104
      %v1227 = vadd.f32 %v819, %v1109
      %v1228 = vadd.f32 %v822, %v1112
      %v1229 = vadd.f32 %v827, %v1117
      %v1230 = vadd.f32 %v830, %v1120
      %v1231 = vadd.f32 %v835, %v1125
      %v1232 = vadd.f32 %v838, %v1128
      %v1233 = vadd.f32 %v843, %v1133
      %v1234 = vadd.f32 %v846, %v1136
      %v1235 = vadd.f32 %v851, %v1141
      %v1236 = vadd.f32 %v854, %v1144
      %v1237 = vadd.f32 %v859, %v1149
      %v1238 = vadd.f32 %v862, %v1152
      %v1239 = vadd.f32 %v867, %v1157
      %v1240 = vadd.f32 %v870, %v1160
      %v1241 = vadd.f32 %v875, %v1165
      %v1242 = vadd.f32 %v878, %v1168
      %v1243 = vadd.f32 %v883, %v1173
      %v1244 = vadd.f32 %v886, %v1176
      %v1245 = vadd.f32 %v891, %v1181
      %v1246 = vadd.f32 %v894, %v1184
      %v1247 = vadd.f32 %v899, %v1189
      %v1248 = vadd.f32 %v902, %v1192
      %v1249 = vadd.f32 %v907, %v1197
      %v1250 = vadd.f32 %v910, %v1200
      %v1251 = vadd.f32 %v915, %v1205
      %v1252 = vadd.f32 %v918, %v1208
      %v1253 = vadd.f32 %v923, %v1213
      %v1254 = vadd.f32 %v926, %v1216
      %v1255 = vld [vmem:[%s165 + $0x8] sm:$0xe]
      %v1256 = vld [vmem:[%s165 + $0xc] sm:$0xf]
      %v1257 = vld [vmem:[%s165 + $0x10] sm:$0xf]
      %v1258 = vld [vmem:[%s165 + $0x14] sm:$0xf]
      %v1259 = vld [vmem:[%s165 + $0x18] sm:$0xf]
      %v1260 = vld [vmem:[%s165 + $0x1c] sm:$0xf]
      %v1261 = vld [vmem:[%s165 + $0x20] sm:$0xf]
      %v1262 = vld [vmem:[%s165 + $0x24] sm:$0xf]
      %v1263 = vld [vmem:[%s165 + $0x28] sm:$0xf]
      %v1264 = vld [vmem:[%s165 + $0x2c] sm:$0xf]
      %v1265 = vld [vmem:[%s165 + $0x30] sm:$0xf]
      %v1266 = vld [vmem:[%s165 + $0x34] sm:$0xf]
      %v1267 = vld [vmem:[%s165 + $0x38] sm:$0xf]
      %v1268 = vld [vmem:[%s165 + $0x3c] sm:$0xf]
      %v1269 = vld [vmem:[%s165 + $0x40] sm:$0xf]
      %v1270 = vld [vmem:[%s165 + $0x44] sm:$0xf]
      %v1271 = vld [vmem:[%s165 + $0x48] sm:$0xf]
      %v1272 = vld [vmem:[%s165 + $0x4c] sm:$0xf]
      %v1273 = vld [vmem:[%s165 + $0x50] sm:$0xf]
      %v1274 = vld [vmem:[%s165 + $0x54] sm:$0xf]
      %v1275 = vld [vmem:[%s165 + $0x58] sm:$0xf]
      %v1276 = vld [vmem:[%s165 + $0x5c] sm:$0xf]
      %v1277 = vld [vmem:[%s165 + $0x60] sm:$0xf]
      %v1278 = vld [vmem:[%s165 + $0x64] sm:$0xf]
      %v1279 = vld [vmem:[%s165 + $0x68] sm:$0xf]
      %v1280 = vld [vmem:[%s165 + $0x6c] sm:$0xf]
      %v1281 = vld [vmem:[%s165 + $0x70] sm:$0xf]
      %v1282 = vld [vmem:[%s165 + $0x74] sm:$0xf]
      %v1283 = vld [vmem:[%s165 + $0x78] sm:$0xf]
      %v1284 = vld [vmem:[%s165 + $0x7c] sm:$0xf]
      %v1285 = vld [vmem:[%s165 + $0x80] sm:$0xf]
      %v1286 = vld [vmem:[%s165 + $0x84] sm:$0xf]
      %v1287 = vld [vmem:[%s165 + $0x88] sm:$0xf]
      %v1288 = vld [vmem:[%s165 + $0x8c] sm:$0xf]
      %v1289 = vld [vmem:[%s165 + $0x90] sm:$0xf]
      %v1290 = vld [vmem:[%s165 + $0x94] sm:$0xf]
      %v1291 = vld [vmem:[%s165 + $0x98] sm:$0x1]
      %s1292 = scalar_lea.vmem %s1, 48
      %v1293 = vld [vmem:[%s1292] sm:$0xf]
      %v1294 = vld [vmem:[%s1292 + $0x4] sm:$0xf]
      %v1295 = vld [vmem:[%s1292 + $0x8] sm:$0xf]
      %v1296 = vld [vmem:[%s1292 + $0xc] sm:$0xf]
      %v1334 = vunpack.c.l.b16 %v1255
      %v1335 = vunpack.c.l.b16 %v1256
      %v1336 = vunpack.c.l.b16 %v1257
      %v1337 = vunpack.c.l.b16 %v1258
      %v1338 = vunpack.c.l.b16 %v1259
      %v1339 = vunpack.c.l.b16 %v1260
      %v1340 = vunpack.c.l.b16 %v1261
      %v1341 = vunpack.c.l.b16 %v1262
      %v1342 = vunpack.c.l.b16 %v1263
      %v1343 = vunpack.c.l.b16 %v1264
      %v1344 = vunpack.c.l.b16 %v1265
      %v1345 = vunpack.c.l.b16 %v1266
      %v1346 = vunpack.c.l.b16 %v1267
      %v1347 = vunpack.c.l.b16 %v1268
      %v1348 = vunpack.c.l.b16 %v1269
      %v1349 = vunpack.c.l.b16 %v1270
      %v1350 = vunpack.c.l.b16 %v1271
      %v1351 = vunpack.c.l.b16 %v1272
      %v1352 = vunpack.c.l.b16 %v1273
      %v1353 = vunpack.c.l.b16 %v1274
      %v1354 = vunpack.c.l.b16 %v1275
      %v1355 = vunpack.c.l.b16 %v1276
      %v1356 = vunpack.c.l.b16 %v1277
      %v1357 = vunpack.c.l.b16 %v1278
      %v1358 = vunpack.c.l.b16 %v1279
      %v1359 = vunpack.c.l.b16 %v1280
      %v1360 = vunpack.c.l.b16 %v1281
      %v1361 = vunpack.c.l.b16 %v1282
      %v1362 = vunpack.c.l.b16 %v1283
      %v1363 = vunpack.c.l.b16 %v1284
      %v1364 = vunpack.c.l.b16 %v1285
      %v1365 = vunpack.c.l.b16 %v1286
      %v1366 = vunpack.c.l.b16 %v1287
      %v1367 = vunpack.c.l.b16 %v1288
      %v1368 = vunpack.c.l.b16 %v1289
      %v1369 = vunpack.c.l.b16 %v1290
      %v1370 = vunpack.c.l.b16 %v1291
      %v1371 = vpack.c.b16 %v1335, %v1334
      %v1372 = vpack.c.b16 %v1337, %v1336
      %v1373 = vpack.c.b16 %v1339, %v1338
      %v1374 = vpack.c.b16 %v1341, %v1340
      %v1375 = vpack.c.b16 %v1343, %v1342
      %v1376 = vpack.c.b16 %v1345, %v1344
      %v1377 = vpack.c.b16 %v1347, %v1346
      %v1378 = vpack.c.b16 %v1349, %v1348
      %v1379 = vpack.c.b16 %v1351, %v1350
      %v1380 = vpack.c.b16 %v1353, %v1352
      %v1381 = vpack.c.b16 %v1355, %v1354
      %v1382 = vpack.c.b16 %v1357, %v1356
      %v1383 = vpack.c.b16 %v1359, %v1358
      %v1384 = vpack.c.b16 %v1361, %v1360
      %v1385 = vpack.c.b16 %v1363, %v1362
      %v1386 = vpack.c.b16 %v1365, %v1364
      %v1387 = vpack.c.b16 %v1367, %v1366
      %v1388 = vpack.c.b16 %v1369, %v1368
      %v1389 = vpack.c.b16 %v1370, %v1370
      %v1390 = vrot.slane %v1371, 1
      %v1391 = vrot.slane %v1372, 1
      %v1392 = vsel %vm938, %v1390, %v1391
      %v1393 = vrot.slane %v1373, 1
      %v1394 = vsel %vm938, %v1391, %v1393
      %v1395 = vrot.slane %v1374, 1
      %v1396 = vsel %vm938, %v1393, %v1395
      %v1397 = vrot.slane %v1375, 1
      %v1398 = vsel %vm938, %v1395, %v1397
      %v1399 = vrot.slane %v1376, 1
      %v1400 = vsel %vm938, %v1397, %v1399
      %v1401 = vrot.slane %v1377, 1
      %v1402 = vsel %vm938, %v1399, %v1401
      %v1403 = vrot.slane %v1378, 1
      %v1404 = vsel %vm938, %v1401, %v1403
      %v1405 = vrot.slane %v1379, 1
      %v1406 = vsel %vm938, %v1403, %v1405
      %v1407 = vrot.slane %v1380, 1
      %v1408 = vsel %vm938, %v1405, %v1407
      %v1409 = vrot.slane %v1381, 1
      %v1410 = vsel %vm938, %v1407, %v1409
      %v1411 = vrot.slane %v1382, 1
      %v1412 = vsel %vm938, %v1409, %v1411
      %v1413 = vrot.slane %v1383, 1
      %v1414 = vsel %vm938, %v1411, %v1413
      %v1415 = vrot.slane %v1384, 1
      %v1416 = vsel %vm938, %v1413, %v1415
      %v1417 = vrot.slane %v1385, 1
      %v1418 = vsel %vm938, %v1415, %v1417
      %v1419 = vrot.slane %v1386, 1
      %v1420 = vsel %vm938, %v1417, %v1419
      %v1421 = vrot.slane %v1387, 1
      %v1422 = vsel %vm938, %v1419, %v1421
      %v1423 = vrot.slane %v1388, 1
      %v1424 = vsel %vm938, %v1421, %v1423
      %v1425 = vrot.slane %v1389, 1
      %v1426 = vsel %vm938, %v1423, %v1425
      %v1431 = vunpack.c.l.b16 %v1293
      %v1432 = vunpack.c.l.b16 %v1294
      %v1433 = vunpack.c.l.b16 %v1295
      %v1434 = vunpack.c.l.b16 %v1296
      %v1435 = vpack.c.b16 %v1432, %v1431
      %v1436 = vpack.c.b16 %v1434, %v1433
      %v1440 = vsel %vm472, %v1392, 0
      %v1443 = vsel %vm472, %v1394, 0
      %v1446 = vsel %vm472, %v1396, 0
      %v1449 = vsel %vm472, %v1398, 0
      %v1452 = vsel %vm472, %v1400, 0
      %v1455 = vsel %vm472, %v1402, 0
      %v1458 = vsel %vm472, %v1404, 0
      %v1461 = vsel %vm472, %v1406, 0
      %v1464 = vsel %vm472, %v1408, 0
      %v1467 = vsel %vm472, %v1410, 0
      %v1470 = vsel %vm472, %v1412, 0
      %v1473 = vsel %vm472, %v1414, 0
      %v1476 = vsel %vm472, %v1416, 0
      %v1479 = vsel %vm472, %v1418, 0
      %v1482 = vsel %vm472, %v1420, 0
      %v1485 = vsel %vm472, %v1422, 0
      %v1488 = vsel %vm472, %v1424, 0
      %v1491 = vsel %vm472, %v1426, 0
      %1493 = vmatprep.subr.bf16.mxu0 0
      %1494 = vmatpush1.bf16.msra.mxu0 %v1435
      %1495 = vmatprep.subr.bf16.mxu0 0
      %1496 = vmatpush1.bf16.msra.mxu0 %v1436
      %1497 = vmatprep.subr.bf16.mxu0 0
      %1498 = vmatpush1.bf16.msra.mxu0 0
      %1499 = vmatprep.subr.bf16.mxu0 0
      %1500 = vmatpush1.bf16.msra.mxu0 0
      %1501 = vmatprep.subr.bf16.mxu0 0
      %1502 = vmatpush1.bf16.msra.mxu0 0
      %1503 = vmatprep.subr.bf16.mxu0 0
      %1504 = vmatpush1.bf16.msra.mxu0 0
      %1505 = vmatprep.subr.bf16.mxu0 0
      %1506 = vmatpush1.bf16.msra.mxu0 0
      %1507 = vmatprep.subr.bf16.mxu0 0
      %1508 = vmatpush1.bf16.msra.mxu0 0
      %1509 = vmatprep.subr.bf16.mxu0 0
      %1510 = vmatpush1.bf16.msra.mxu0 0
      %1511 = vmatprep.subr.bf16.mxu0 0
      %1512 = vmatpush1.bf16.msra.mxu0 0
      %1513 = vmatprep.subr.bf16.mxu0 0
      %1514 = vmatpush1.bf16.msra.mxu0 0
      %1515 = vmatprep.subr.bf16.mxu0 0
      %1516 = vmatpush1.bf16.msra.mxu0 0
      %1517 = vmatprep.subr.bf16.mxu0 0
      %1518 = vmatpush1.bf16.msra.mxu0 0
      %1519 = vmatprep.subr.bf16.mxu0 0
      %1520 = vmatpush1.bf16.msra.mxu0 0
      %1521 = vmatprep.subr.bf16.mxu0 0
      %1522 = vmatpush1.bf16.msra.mxu0 0
      %1523 = vmatprep.subr.bf16.mxu0 0
      %1524 = vmatpush1.bf16.msra.mxu0 0
      %1525 = vmatprep.mubr.bf16.mxu0 0
      %1526 = vmatmul.mubr.bf16.gmra.mrb[0].mxu0 %v1440
      %v1527 = vpop.f32.mrb[0].mxu0
      %v1528 = vadd.f32 0.0, %v1527
      %v1529 = vpop.f32.mrb[0].mxu0
      %v1530 = vpop.f32.mrb[0].mxu0
      %v1531 = vadd.f32 0.0, %v1530
      %v1532 = vpop.f32.mrb[0].mxu0
      %1533 = vmatprep.mubr.bf16.mxu0 0
      %1534 = vmatmul.mubr.bf16.gmra.mrb[0].mxu0 %v1443
      %v1535 = vpop.f32.mrb[0].mxu0
      %v1536 = vadd.f32 0.0, %v1535
      %v1537 = vpop.f32.mrb[0].mxu0
      %v1538 = vpop.f32.mrb[0].mxu0
      %v1539 = vadd.f32 0.0, %v1538
      %v1540 = vpop.f32.mrb[0].mxu0
      %1541 = vmatprep.mubr.bf16.mxu0 0
      %1542 = vmatmul.mubr.bf16.gmra.mrb[0].mxu0 %v1446
      %v1543 = vpop.f32.mrb[0].mxu0
      %v1544 = vadd.f32 0.0, %v1543
      %v1545 = vpop.f32.mrb[0].mxu0
      %v1546 = vpop.f32.mrb[0].mxu0
      %v1547 = vadd.f32 0.0, %v1546
      %v1548 = vpop.f32.mrb[0].mxu0
      %1549 = vmatprep.mubr.bf16.mxu0 0
      %1550 = vmatmul.mubr.bf16.gmra.mrb[0].mxu0 %v1449
      %v1551 = vpop.f32.mrb[0].mxu0
      %v1552 = vadd.f32 0.0, %v1551
      %v1553 = vpop.f32.mrb[0].mxu0
      %v1554 = vpop.f32.mrb[0].mxu0
      %v1555 = vadd.f32 0.0, %v1554
      %v1556 = vpop.f32.mrb[0].mxu0
      %1557 = vmatprep.mubr.bf16.mxu0 0
      %1558 = vmatmul.mubr.bf16.gmra.mrb[0].mxu0 %v1452
      %v1559 = vpop.f32.mrb[0].mxu0
      %v1560 = vadd.f32 0.0, %v1559
      %v1561 = vpop.f32.mrb[0].mxu0
      %v1562 = vpop.f32.mrb[0].mxu0
      %v1563 = vadd.f32 0.0, %v1562
      %v1564 = vpop.f32.mrb[0].mxu0
      %1565 = vmatprep.mubr.bf16.mxu0 0
      %1566 = vmatmul.mubr.bf16.gmra.mrb[0].mxu0 %v1455
      %v1567 = vpop.f32.mrb[0].mxu0
      %v1568 = vadd.f32 0.0, %v1567
      %v1569 = vpop.f32.mrb[0].mxu0
      %v1570 = vpop.f32.mrb[0].mxu0
      %v1571 = vadd.f32 0.0, %v1570
      %v1572 = vpop.f32.mrb[0].mxu0
      %1573 = vmatprep.mubr.bf16.mxu0 0
      %1574 = vmatmul.mubr.bf16.gmra.mrb[0].mxu0 %v1458
      %v1575 = vpop.f32.mrb[0].mxu0
      %v1576 = vadd.f32 0.0, %v1575
      %v1577 = vpop.f32.mrb[0].mxu0
      %v1578 = vpop.f32.mrb[0].mxu0
      %v1579 = vadd.f32 0.0, %v1578
      %v1580 = vpop.f32.mrb[0].mxu0
      %1581 = vmatprep.mubr.bf16.mxu0 0
      %1582 = vmatmul.mubr.bf16.gmra.mrb[0].mxu0 %v1461
      %v1583 = vpop.f32.mrb[0].mxu0
      %v1584 = vadd.f32 0.0, %v1583
      %v1585 = vpop.f32.mrb[0].mxu0
      %v1586 = vpop.f32.mrb[0].mxu0
      %v1587 = vadd.f32 0.0, %v1586
      %v1588 = vpop.f32.mrb[0].mxu0
      %1589 = vmatprep.mubr.bf16.mxu0 0
      %1590 = vmatmul.mubr.bf16.gmra.mrb[0].mxu0 %v1464
      %v1591 = vpop.f32.mrb[0].mxu0
      %v1592 = vadd.f32 0.0, %v1591
      %v1593 = vpop.f32.mrb[0].mxu0
      %v1594 = vpop.f32.mrb[0].mxu0
      %v1595 = vadd.f32 0.0, %v1594
      %v1596 = vpop.f32.mrb[0].mxu0
      %1597 = vmatprep.mubr.bf16.mxu0 0
      %1598 = vmatmul.mubr.bf16.gmra.mrb[0].mxu0 %v1467
      %v1599 = vpop.f32.mrb[0].mxu0
      %v1600 = vadd.f32 0.0, %v1599
      %v1601 = vpop.f32.mrb[0].mxu0
      %v1602 = vpop.f32.mrb[0].mxu0
      %v1603 = vadd.f32 0.0, %v1602
      %v1604 = vpop.f32.mrb[0].mxu0
      %1605 = vmatprep.mubr.bf16.mxu0 0
      %1606 = vmatmul.mubr.bf16.gmra.mrb[0].mxu0 %v1470
      %v1607 = vpop.f32.mrb[0].mxu0
      %v1608 = vadd.f32 0.0, %v1607
      %v1609 = vpop.f32.mrb[0].mxu0
      %v1610 = vpop.f32.mrb[0].mxu0
      %v1611 = vadd.f32 0.0, %v1610
      %v1612 = vpop.f32.mrb[0].mxu0
      %1613 = vmatprep.mubr.bf16.mxu0 0
      %1614 = vmatmul.mubr.bf16.gmra.mrb[0].mxu0 %v1473
      %v1615 = vpop.f32.mrb[0].mxu0
      %v1616 = vadd.f32 0.0, %v1615
      %v1617 = vpop.f32.mrb[0].mxu0
      %v1618 = vpop.f32.mrb[0].mxu0
      %v1619 = vadd.f32 0.0, %v1618
      %v1620 = vpop.f32.mrb[0].mxu0
      %1621 = vmatprep.mubr.bf16.mxu0 0
      %1622 = vmatmul.mubr.bf16.gmra.mrb[0].mxu0 %v1476
      %v1623 = vpop.f32.mrb[0].mxu0
      %v1624 = vadd.f32 0.0, %v1623
      %v1625 = vpop.f32.mrb[0].mxu0
      %v1626 = vpop.f32.mrb[0].mxu0
      %v1627 = vadd.f32 0.0, %v1626
      %v1628 = vpop.f32.mrb[0].mxu0
      %1629 = vmatprep.mubr.bf16.mxu0 0
      %1630 = vmatmul.mubr.bf16.gmra.mrb[0].mxu0 %v1479
      %v1631 = vpop.f32.mrb[0].mxu0
      %v1632 = vadd.f32 0.0, %v1631
      %v1633 = vpop.f32.mrb[0].mxu0
      %v1634 = vpop.f32.mrb[0].mxu0
      %v1635 = vadd.f32 0.0, %v1634
      %v1636 = vpop.f32.mrb[0].mxu0
      %1637 = vmatprep.mubr.bf16.mxu0 0
      %1638 = vmatmul.mubr.bf16.gmra.mrb[0].mxu0 %v1482
      %v1639 = vpop.f32.mrb[0].mxu0
      %v1640 = vadd.f32 0.0, %v1639
      %v1641 = vpop.f32.mrb[0].mxu0
      %v1642 = vpop.f32.mrb[0].mxu0
      %v1643 = vadd.f32 0.0, %v1642
      %v1644 = vpop.f32.mrb[0].mxu0
      %1645 = vmatprep.mubr.bf16.mxu0 0
      %1646 = vmatmul.mubr.bf16.gmra.mrb[0].mxu0 %v1485
      %v1647 = vpop.f32.mrb[0].mxu0
      %v1648 = vadd.f32 0.0, %v1647
      %v1649 = vpop.f32.mrb[0].mxu0
      %v1650 = vpop.f32.mrb[0].mxu0
      %v1651 = vadd.f32 0.0, %v1650
      %v1652 = vpop.f32.mrb[0].mxu0
      %1653 = vmatprep.mubr.bf16.mxu0 0
      %1654 = vmatmul.mubr.bf16.gmra.mrb[0].mxu0 %v1488
      %v1655 = vpop.f32.mrb[0].mxu0
      %v1656 = vadd.f32 0.0, %v1655
      %v1657 = vpop.f32.mrb[0].mxu0
      %v1658 = vpop.f32.mrb[0].mxu0
      %v1659 = vadd.f32 0.0, %v1658
      %v1660 = vpop.f32.mrb[0].mxu0
      %1661 = vmatprep.mubr.bf16.mxu0 0
      %1662 = vmatmul.mubr.bf16.gmra.mrb[0].mxu0 %v1491
      %v1663 = vpop.f32.mrb[0].mxu0
      %v1664 = vadd.f32 0.0, %v1663
      %v1665 = vpop.f32.mrb[0].mxu0
      %v1666 = vpop.f32.mrb[0].mxu0
      %v1667 = vadd.f32 0.0, %v1666
      %v1668 = vpop.f32.mrb[0].mxu0
      %1669 = vdwg.mxu0
      %v1670 = vadd.f32 %v1219, %v1528
      %v1671 = vadd.f32 %v1220, %v1531
      %v1672 = vadd.f32 %v1221, %v1536
      %v1673 = vadd.f32 %v1222, %v1539
      %v1674 = vadd.f32 %v1223, %v1544
      %v1675 = vadd.f32 %v1224, %v1547
      %v1676 = vadd.f32 %v1225, %v1552
      %v1677 = vadd.f32 %v1226, %v1555
      %v1678 = vadd.f32 %v1227, %v1560
      %v1679 = vadd.f32 %v1228, %v1563
      %v1680 = vadd.f32 %v1229, %v1568
      %v1681 = vadd.f32 %v1230, %v1571
      %v1682 = vadd.f32 %v1231, %v1576
      %v1683 = vadd.f32 %v1232, %v1579
      %v1684 = vadd.f32 %v1233, %v1584
      %v1685 = vadd.f32 %v1234, %v1587
      %v1686 = vadd.f32 %v1235, %v1592
      %v1687 = vadd.f32 %v1236, %v1595
      %v1688 = vadd.f32 %v1237, %v1600
      %v1689 = vadd.f32 %v1238, %v1603
      %v1690 = vadd.f32 %v1239, %v1608
      %v1691 = vadd.f32 %v1240, %v1611
      %v1692 = vadd.f32 %v1241, %v1616
      %v1693 = vadd.f32 %v1242, %v1619
      %v1694 = vadd.f32 %v1243, %v1624
      %v1695 = vadd.f32 %v1244, %v1627
      %v1696 = vadd.f32 %v1245, %v1632
      %v1697 = vadd.f32 %v1246, %v1635
      %v1698 = vadd.f32 %v1247, %v1640
      %v1699 = vadd.f32 %v1248, %v1643
      %v1700 = vadd.f32 %v1249, %v1648
      %v1701 = vadd.f32 %v1250, %v1651
      %v1702 = vadd.f32 %v1251, %v1656
      %v1703 = vadd.f32 %v1252, %v1659
      %v1704 = vadd.f32 %v1253, %v1664
      %v1705 = vadd.f32 %v1254, %v1667
      %v1706 = vld [vmem:[%s165 + $0x98] sm:$0x3]
      %s1707 = scalar_lea.vmem %s1, 64
      %v1708 = vld [vmem:[%s1707] sm:$0xf]
      %v1709 = vld [vmem:[%s1707 + $0x4] sm:$0xf]
      %v1710 = vld [vmem:[%s1707 + $0x8] sm:$0xf]
      %v1711 = vld [vmem:[%s1707 + $0xc] sm:$0xf]
      %v1713 = vunpack.c.l.b16 %v1706
      %v1714 = vpack.c.b16 %v1713, %v1713
      %vm1715 = vsmask.f32 6400
      %v1717 = vshrl.u32 %v1371, 16
      %v1719 = vrot.slane %v1717, 1
      %v1720 = vshll.u32 %v1371, 16
      %v1722 = vrot.slane %v1720, 2
      %v1723 = vor.u32 %v1719, %v1722
      %v1725 = vshrl.u32 %v1372, 16
      %v1727 = vrot.slane %v1725, 1
      %v1728 = vshll.u32 %v1372, 16
      %v1730 = vrot.slane %v1728, 2
      %v1731 = vor.u32 %v1727, %v1730
      %v1732 = vsel %vm1715, %v1723, %v1731
      %v1734 = vshrl.u32 %v1373, 16
      %v1736 = vrot.slane %v1734, 1
      %v1737 = vshll.u32 %v1373, 16
      %v1739 = vrot.slane %v1737, 2
      %v1740 = vor.u32 %v1736, %v1739
      %v1741 = vsel %vm1715, %v1731, %v1740
      %v1743 = vshrl.u32 %v1374, 16
      %v1745 = vrot.slane %v1743, 1
      %v1746 = vshll.u32 %v1374, 16
      %v1748 = vrot.slane %v1746, 2
      %v1749 = vor.u32 %v1745, %v1748
      %v1750 = vsel %vm1715, %v1740, %v1749
      %v1752 = vshrl.u32 %v1375, 16
      %v1754 = vrot.slane %v1752, 1
      %v1755 = vshll.u32 %v1375, 16
      %v1757 = vrot.slane %v1755, 2
      %v1758 = vor.u32 %v1754, %v1757
      %v1759 = vsel %vm1715, %v1749, %v1758
      %v1761 = vshrl.u32 %v1376, 16
      %v1763 = vrot.slane %v1761, 1
      %v1764 = vshll.u32 %v1376, 16
      %v1766 = vrot.slane %v1764, 2
      %v1767 = vor.u32 %v1763, %v1766
      %v1768 = vsel %vm1715, %v1758, %v1767
      %v1770 = vshrl.u32 %v1377, 16
      %v1772 = vrot.slane %v1770, 1
      %v1773 = vshll.u32 %v1377, 16
      %v1775 = vrot.slane %v1773, 2
      %v1776 = vor.u32 %v1772, %v1775
      %v1777 = vsel %vm1715, %v1767, %v1776
      %v1779 = vshrl.u32 %v1378, 16
      %v1781 = vrot.slane %v1779, 1
      %v1782 = vshll.u32 %v1378, 16
      %v1784 = vrot.slane %v1782, 2
      %v1785 = vor.u32 %v1781, %v1784
      %v1786 = vsel %vm1715, %v1776, %v1785
      %v1788 = vshrl.u32 %v1379, 16
      %v1790 = vrot.slane %v1788, 1
      %v1791 = vshll.u32 %v1379, 16
      %v1793 = vrot.slane %v1791, 2
      %v1794 = vor.u32 %v1790, %v1793
      %v1795 = vsel %vm1715, %v1785, %v1794
      %v1797 = vshrl.u32 %v1380, 16
      %v1799 = vrot.slane %v1797, 1
      %v1800 = vshll.u32 %v1380, 16
      %v1802 = vrot.slane %v1800, 2
      %v1803 = vor.u32 %v1799, %v1802
      %v1804 = vsel %vm1715, %v1794, %v1803
      %v1806 = vshrl.u32 %v1381, 16
      %v1808 = vrot.slane %v1806, 1
      %v1809 = vshll.u32 %v1381, 16
      %v1811 = vrot.slane %v1809, 2
      %v1812 = vor.u32 %v1808, %v1811
      %v1813 = vsel %vm1715, %v1803, %v1812
      %v1815 = vshrl.u32 %v1382, 16
      %v1817 = vrot.slane %v1815, 1
      %v1818 = vshll.u32 %v1382, 16
      %v1820 = vrot.slane %v1818, 2
      %v1821 = vor.u32 %v1817, %v1820
      %v1822 = vsel %vm1715, %v1812, %v1821
      %v1824 = vshrl.u32 %v1383, 16
      %v1826 = vrot.slane %v1824, 1
      %v1827 = vshll.u32 %v1383, 16
      %v1829 = vrot.slane %v1827, 2
      %v1830 = vor.u32 %v1826, %v1829
      %v1831 = vsel %vm1715, %v1821, %v1830
      %v1833 = vshrl.u32 %v1384, 16
      %v1835 = vrot.slane %v1833, 1
      %v1836 = vshll.u32 %v1384, 16
      %v1838 = vrot.slane %v1836, 2
      %v1839 = vor.u32 %v1835, %v1838
      %v1840 = vsel %vm1715, %v1830, %v1839
      %v1842 = vshrl.u32 %v1385, 16
      %v1844 = vrot.slane %v1842, 1
      %v1845 = vshll.u32 %v1385, 16
      %v1847 = vrot.slane %v1845, 2
      %v1848 = vor.u32 %v1844, %v1847
      %v1849 = vsel %vm1715, %v1839, %v1848
      %v1851 = vshrl.u32 %v1386, 16
      %v1853 = vrot.slane %v1851, 1
      %v1854 = vshll.u32 %v1386, 16
      %v1856 = vrot.slane %v1854, 2
      %v1857 = vor.u32 %v1853, %v1856
      %v1858 = vsel %vm1715, %v1848, %v1857
      %v1860 = vshrl.u32 %v1387, 16
      %v1862 = vrot.slane %v1860, 1
      %v1863 = vshll.u32 %v1387, 16
      %v1865 = vrot.slane %v1863, 2
      %v1866 = vor.u32 %v1862, %v1865
      %v1867 = vsel %vm1715, %v1857, %v1866
      %v1869 = vshrl.u32 %v1388, 16
      %v1871 = vrot.slane %v1869, 1
      %v1872 = vshll.u32 %v1388, 16
      %v1874 = vrot.slane %v1872, 2
      %v1875 = vor.u32 %v1871, %v1874
      %v1876 = vsel %vm1715, %v1866, %v1875
      %v1878 = vshrl.u32 %v1714, 16
      %v1880 = vrot.slane %v1878, 1
      %v1881 = vshll.u32 %v1714, 16
      %v1883 = vrot.slane %v1881, 2
      %v1884 = vor.u32 %v1880, %v1883
      %v1885 = vsel %vm1715, %v1875, %v1884
      %v1890 = vunpack.c.l.b16 %v1708
      %v1891 = vunpack.c.l.b16 %v1709
      %v1892 = vunpack.c.l.b16 %v1710
      %v1893 = vunpack.c.l.b16 %v1711
      %v1894 = vpack.c.b16 %v1891, %v1890
      %v1895 = vpack.c.b16 %v1893, %v1892
      %v1899 = vsel %vm472, %v1732, 0
      %v1902 = vsel %vm472, %v1741, 0
      %v1905 = vsel %vm472, %v1750, 0
      %v1908 = vsel %vm472, %v1759, 0
      %v1911 = vsel %vm472, %v1768, 0
      %v1914 = vsel %vm472, %v1777, 0
      %v1917 = vsel %vm472, %v1786, 0
      %v1920 = vsel %vm472, %v1795, 0
      %v1923 = vsel %vm472, %v1804, 0
      %v1926 = vsel %vm472, %v1813, 0
      %v1929 = vsel %vm472, %v1822, 0
      %v1932 = vsel %vm472, %v1831, 0
      %v1935 = vsel %vm472, %v1840, 0
      %v1938 = vsel %vm472, %v1849, 0
      %v1941 = vsel %vm472, %v1858, 0
      %v1944 = vsel %vm472, %v1867, 0
      %v1947 = vsel %vm472, %v1876, 0
      %v1950 = vsel %vm472, %v1885, 0
      %1952 = vmatprep.subr.bf16.mxu0 0
      %1953 = vmatpush1.bf16.msra.mxu0 %v1894
      %1954 = vmatprep.subr.bf16.mxu0 0
      %1955 = vmatpush1.bf16.msra.mxu0 %v1895
      %1956 = vmatprep.subr.bf16.mxu0 0
      %1957 = vmatpush1.bf16.msra.mxu0 0
      %1958 = vmatprep.subr.bf16.mxu0 0
      %1959 = vmatpush1.bf16.msra.mxu0 0
      %1960 = vmatprep.subr.bf16.mxu0 0
      %1961 = vmatpush1.bf16.msra.mxu0 0
      %1962 = vmatprep.subr.bf16.mxu0 0
      %1963 = vmatpush1.bf16.msra.mxu0 0
      %1964 = vmatprep.subr.bf16.mxu0 0
      %1965 = vmatpush1.bf16.msra.mxu0 0
      %1966 = vmatprep.subr.bf16.mxu0 0
      %1967 = vmatpush1.bf16.msra.mxu0 0
      %1968 = vmatprep.subr.bf16.mxu0 0
      %1969 = vmatpush1.bf16.msra.mxu0 0
      %1970 = vmatprep.subr.bf16.mxu0 0
      %1971 = vmatpush1.bf16.msra.mxu0 0
      %1972 = vmatprep.subr.bf16.mxu0 0
      %1973 = vmatpush1.bf16.msra.mxu0 0
      %1974 = vmatprep.subr.bf16.mxu0 0
      %1975 = vmatpush1.bf16.msra.mxu0 0
      %1976 = vmatprep.subr.bf16.mxu0 0
      %1977 = vmatpush1.bf16.msra.mxu0 0
      %1978 = vmatprep.subr.bf16.mxu0 0
      %1979 = vmatpush1.bf16.msra.mxu0 0
      %1980 = vmatprep.subr.bf16.mxu0 0
      %1981 = vmatpush1.bf16.msra.mxu0 0
      %1982 = vmatprep.subr.bf16.mxu0 0
      %1983 = vmatpush1.bf16.msra.mxu0 0
      %1984 = vmatprep.mubr.bf16.mxu0 0
      %1985 = vmatmul.mubr.bf16.gmra.mrb[0].mxu0 %v1899
      %v1986 = vpop.f32.mrb[0].mxu0
      %v1987 = vadd.f32 0.0, %v1986
      %v1988 = vpop.f32.mrb[0].mxu0
      %v1989 = vpop.f32.mrb[0].mxu0
      %v1990 = vadd.f32 0.0, %v1989
      %v1991 = vpop.f32.mrb[0].mxu0
      %1992 = vmatprep.mubr.bf16.mxu0 0
      %1993 = vmatmul.mubr.bf16.gmra.mrb[0].mxu0 %v1902
      %v1994 = vpop.f32.mrb[0].mxu0
      %v1995 = vadd.f32 0.0, %v1994
      %v1996 = vpop.f32.mrb[0].mxu0
      %v1997 = vpop.f32.mrb[0].mxu0
      %v1998 = vadd.f32 0.0, %v1997
      %v1999 = vpop.f32.mrb[0].mxu0
      %2000 = vmatprep.mubr.bf16.mxu0 0
      %2001 = vmatmul.mubr.bf16.gmra.mrb[0].mxu0 %v1905
      %v2002 = vpop.f32.mrb[0].mxu0
      %v2003 = vadd.f32 0.0, %v2002
      %v2004 = vpop.f32.mrb[0].mxu0
      %v2005 = vpop.f32.mrb[0].mxu0
      %v2006 = vadd.f32 0.0, %v2005
      %v2007 = vpop.f32.mrb[0].mxu0
      %2008 = vmatprep.mubr.bf16.mxu0 0
      %2009 = vmatmul.mubr.bf16.gmra.mrb[0].mxu0 %v1908
      %v2010 = vpop.f32.mrb[0].mxu0
      %v2011 = vadd.f32 0.0, %v2010
      %v2012 = vpop.f32.mrb[0].mxu0
      %v2013 = vpop.f32.mrb[0].mxu0
      %v2014 = vadd.f32 0.0, %v2013
      %v2015 = vpop.f32.mrb[0].mxu0
      %2016 = vmatprep.mubr.bf16.mxu0 0
      %2017 = vmatmul.mubr.bf16.gmra.mrb[0].mxu0 %v1911
      %v2018 = vpop.f32.mrb[0].mxu0
      %v2019 = vadd.f32 0.0, %v2018
      %v2020 = vpop.f32.mrb[0].mxu0
      %v2021 = vpop.f32.mrb[0].mxu0
      %v2022 = vadd.f32 0.0, %v2021
      %v2023 = vpop.f32.mrb[0].mxu0
      %2024 = vmatprep.mubr.bf16.mxu0 0
      %2025 = vmatmul.mubr.bf16.gmra.mrb[0].mxu0 %v1914
      %v2026 = vpop.f32.mrb[0].mxu0
      %v2027 = vadd.f32 0.0, %v2026
      %v2028 = vpop.f32.mrb[0].mxu0
      %v2029 = vpop.f32.mrb[0].mxu0
      %v2030 = vadd.f32 0.0, %v2029
      %v2031 = vpop.f32.mrb[0].mxu0
      %2032 = vmatprep.mubr.bf16.mxu0 0
      %2033 = vmatmul.mubr.bf16.gmra.mrb[0].mxu0 %v1917
      %v2034 = vpop.f32.mrb[0].mxu0
      %v2035 = vadd.f32 0.0, %v2034
      %v2036 = vpop.f32.mrb[0].mxu0
      %v2037 = vpop.f32.mrb[0].mxu0
      %v2038 = vadd.f32 0.0, %v2037
      %v2039 = vpop.f32.mrb[0].mxu0
      %2040 = vmatprep.mubr.bf16.mxu0 0
      %2041 = vmatmul.mubr.bf16.gmra.mrb[0].mxu0 %v1920
      %v2042 = vpop.f32.mrb[0].mxu0
      %v2043 = vadd.f32 0.0, %v2042
      %v2044 = vpop.f32.mrb[0].mxu0
      %v2045 = vpop.f32.mrb[0].mxu0
      %v2046 = vadd.f32 0.0, %v2045
      %v2047 = vpop.f32.mrb[0].mxu0
      %2048 = vmatprep.mubr.bf16.mxu0 0
      %2049 = vmatmul.mubr.bf16.gmra.mrb[0].mxu0 %v1923
      %v2050 = vpop.f32.mrb[0].mxu0
      %v2051 = vadd.f32 0.0, %v2050
      %v2052 = vpop.f32.mrb[0].mxu0
      %v2053 = vpop.f32.mrb[0].mxu0
      %v2054 = vadd.f32 0.0, %v2053
      %v2055 = vpop.f32.mrb[0].mxu0
      %2056 = vmatprep.mubr.bf16.mxu0 0
      %2057 = vmatmul.mubr.bf16.gmra.mrb[0].mxu0 %v1926
      %v2058 = vpop.f32.mrb[0].mxu0
      %v2059 = vadd.f32 0.0, %v2058
      %v2060 = vpop.f32.mrb[0].mxu0
      %v2061 = vpop.f32.mrb[0].mxu0
      %v2062 = vadd.f32 0.0, %v2061
      %v2063 = vpop.f32.mrb[0].mxu0
      %2064 = vmatprep.mubr.bf16.mxu0 0
      %2065 = vmatmul.mubr.bf16.gmra.mrb[0].mxu0 %v1929
      %v2066 = vpop.f32.mrb[0].mxu0
      %v2067 = vadd.f32 0.0, %v2066
      %v2068 = vpop.f32.mrb[0].mxu0
      %v2069 = vpop.f32.mrb[0].mxu0
      %v2070 = vadd.f32 0.0, %v2069
      %v2071 = vpop.f32.mrb[0].mxu0
      %2072 = vmatprep.mubr.bf16.mxu0 0
      %2073 = vmatmul.mubr.bf16.gmra.mrb[0].mxu0 %v1932
      %v2074 = vpop.f32.mrb[0].mxu0
      %v2075 = vadd.f32 0.0, %v2074
      %v2076 = vpop.f32.mrb[0].mxu0
      %v2077 = vpop.f32.mrb[0].mxu0
      %v2078 = vadd.f32 0.0, %v2077
      %v2079 = vpop.f32.mrb[0].mxu0
      %2080 = vmatprep.mubr.bf16.mxu0 0
      %2081 = vmatmul.mubr.bf16.gmra.mrb[0].mxu0 %v1935
      %v2082 = vpop.f32.mrb[0].mxu0
      %v2083 = vadd.f32 0.0, %v2082
      %v2084 = vpop.f32.mrb[0].mxu0
      %v2085 = vpop.f32.mrb[0].mxu0
      %v2086 = vadd.f32 0.0, %v2085
      %v2087 = vpop.f32.mrb[0].mxu0
      %2088 = vmatprep.mubr.bf16.mxu0 0
      %2089 = vmatmul.mubr.bf16.gmra.mrb[0].mxu0 %v1938
      %v2090 = vpop.f32.mrb[0].mxu0
      %v2091 = vadd.f32 0.0, %v2090
      %v2092 = vpop.f32.mrb[0].mxu0
      %v2093 = vpop.f32.mrb[0].mxu0
      %v2094 = vadd.f32 0.0, %v2093
      %v2095 = vpop.f32.mrb[0].mxu0
      %2096 = vmatprep.mubr.bf16.mxu0 0
      %2097 = vmatmul.mubr.bf16.gmra.mrb[0].mxu0 %v1941
      %v2098 = vpop.f32.mrb[0].mxu0
      %v2099 = vadd.f32 0.0, %v2098
      %v2100 = vpop.f32.mrb[0].mxu0
      %v2101 = vpop.f32.mrb[0].mxu0
      %v2102 = vadd.f32 0.0, %v2101
      %v2103 = vpop.f32.mrb[0].mxu0
      %2104 = vmatprep.mubr.bf16.mxu0 0
      %2105 = vmatmul.mubr.bf16.gmra.mrb[0].mxu0 %v1944
      %v2106 = vpop.f32.mrb[0].mxu0
      %v2107 = vadd.f32 0.0, %v2106
      %v2108 = vpop.f32.mrb[0].mxu0
      %v2109 = vpop.f32.mrb[0].mxu0
      %v2110 = vadd.f32 0.0, %v2109
      %v2111 = vpop.f32.mrb[0].mxu0
      %2112 = vmatprep.mubr.bf16.mxu0 0
      %2113 = vmatmul.mubr.bf16.gmra.mrb[0].mxu0 %v1947
      %v2114 = vpop.f32.mrb[0].mxu0
      %v2115 = vadd.f32 0.0, %v2114
      %v2116 = vpop.f32.mrb[0].mxu0
      %v2117 = vpop.f32.mrb[0].mxu0
      %v2118 = vadd.f32 0.0, %v2117
      %v2119 = vpop.f32.mrb[0].mxu0
      %2120 = vmatprep.mubr.bf16.mxu0 0
      %2121 = vmatmul.mubr.bf16.gmra.mrb[0].mxu0 %v1950
      %v2122 = vpop.f32.mrb[0].mxu0
      %v2123 = vadd.f32 0.0, %v2122
      %v2124 = vpop.f32.mrb[0].mxu0
      %v2125 = vpop.f32.mrb[0].mxu0
      %v2126 = vadd.f32 0.0, %v2125
      %v2127 = vpop.f32.mrb[0].mxu0
      %2128 = vdwg.mxu0
      %v2129 = vadd.f32 %v1670, %v1987
      %v2130 = vadd.f32 %v1671, %v1990
      %v2131 = vadd.f32 %v1672, %v1995
      %v2132 = vadd.f32 %v1673, %v1998
      %v2133 = vadd.f32 %v1674, %v2003
      %v2134 = vadd.f32 %v1675, %v2006
      %v2135 = vadd.f32 %v1676, %v2011
      %v2136 = vadd.f32 %v1677, %v2014
      %v2137 = vadd.f32 %v1678, %v2019
      %v2138 = vadd.f32 %v1679, %v2022
      %v2139 = vadd.f32 %v1680, %v2027
      %v2140 = vadd.f32 %v1681, %v2030
      %v2141 = vadd.f32 %v1682, %v2035
      %v2142 = vadd.f32 %v1683, %v2038
      %v2143 = vadd.f32 %v1684, %v2043
      %v2144 = vadd.f32 %v1685, %v2046
      %v2145 = vadd.f32 %v1686, %v2051
      %v2146 = vadd.f32 %v1687, %v2054
      %v2147 = vadd.f32 %v1688, %v2059
      %v2148 = vadd.f32 %v1689, %v2062
      %v2149 = vadd.f32 %v1690, %v2067
      %v2150 = vadd.f32 %v1691, %v2070
      %v2151 = vadd.f32 %v1692, %v2075
      %v2152 = vadd.f32 %v1693, %v2078
      %v2153 = vadd.f32 %v1694, %v2083
      %v2154 = vadd.f32 %v1695, %v2086
      %v2155 = vadd.f32 %v1696, %v2091
      %v2156 = vadd.f32 %v1697, %v2094
      %v2157 = vadd.f32 %v1698, %v2099
      %v2158 = vadd.f32 %v1699, %v2102
      %v2159 = vadd.f32 %v1700, %v2107
      %v2160 = vadd.f32 %v1701, %v2110
      %v2161 = vadd.f32 %v1702, %v2115
      %v2162 = vadd.f32 %v1703, %v2118
      %v2163 = vadd.f32 %v1704, %v2123
      %v2164 = vadd.f32 %v1705, %v2126
      %v2165 = vld [vmem:[%s165 + $0x8] sm:$0xc]
      %s2166 = scalar_lea.vmem %s1, 80
      %v2167 = vld [vmem:[%s2166] sm:$0xf]
      %v2168 = vld [vmem:[%s2166 + $0x4] sm:$0xf]
      %v2169 = vld [vmem:[%s2166 + $0x8] sm:$0xf]
      %v2170 = vld [vmem:[%s2166 + $0xc] sm:$0xf]
      %v2172 = vunpack.c.l.b16 %v2165
      %v2173 = vpack.c.b16 %v1335, %v2172
      %vm2174 = vcmask 1045504
      %v2175 = vrot.slane %v2173, 2
      %v2176 = vrot.slane %v1372, 2
      %v2177 = vsel %vm2174, %v2175, %v2176
      %v2178 = vrot.slane %v1373, 2
      %v2179 = vsel %vm2174, %v2176, %v2178
      %v2180 = vrot.slane %v1374, 2
      %v2181 = vsel %vm2174, %v2178, %v2180
      %v2182 = vrot.slane %v1375, 2
      %v2183 = vsel %vm2174, %v2180, %v2182
      %v2184 = vrot.slane %v1376, 2
      %v2185 = vsel %vm2174, %v2182, %v2184
      %v2186 = vrot.slane %v1377, 2
      %v2187 = vsel %vm2174, %v2184, %v2186
      %v2188 = vrot.slane %v1378, 2
      %v2189 = vsel %vm2174, %v2186, %v2188
      %v2190 = vrot.slane %v1379, 2
      %v2191 = vsel %vm2174, %v2188, %v2190
      %v2192 = vrot.slane %v1380, 2
      %v2193 = vsel %vm2174, %v2190, %v2192
      %v2194 = vrot.slane %v1381, 2
      %v2195 = vsel %vm2174, %v2192, %v2194
      %v2196 = vrot.slane %v1382, 2
      %v2197 = vsel %vm2174, %v2194, %v2196
      %v2198 = vrot.slane %v1383, 2
      %v2199 = vsel %vm2174, %v2196, %v2198
      %v2200 = vrot.slane %v1384, 2
      %v2201 = vsel %vm2174, %v2198, %v2200
      %v2202 = vrot.slane %v1385, 2
      %v2203 = vsel %vm2174, %v2200, %v2202
      %v2204 = vrot.slane %v1386, 2
      %v2205 = vsel %vm2174, %v2202, %v2204
      %v2206 = vrot.slane %v1387, 2
      %v2207 = vsel %vm2174, %v2204, %v2206
      %v2208 = vrot.slane %v1388, 2
      %v2209 = vsel %vm2174, %v2206, %v2208
      %v2210 = vrot.slane %v1714, 2
      %v2211 = vsel %vm2174, %v2208, %v2210
      %v2216 = vunpack.c.l.b16 %v2167
      %v2217 = vunpack.c.l.b16 %v2168
      %v2218 = vunpack.c.l.b16 %v2169
      %v2219 = vunpack.c.l.b16 %v2170
      %v2220 = vpack.c.b16 %v2217, %v2216
      %v2221 = vpack.c.b16 %v2219, %v2218
      %v2225 = vsel %vm472, %v2177, 0
      %v2228 = vsel %vm472, %v2179, 0
      %v2231 = vsel %vm472, %v2181, 0
      %v2234 = vsel %vm472, %v2183, 0
      %v2237 = vsel %vm472, %v2185, 0
      %v2240 = vsel %vm472, %v2187, 0
      %v2243 = vsel %vm472, %v2189, 0
      %v2246 = vsel %vm472, %v2191, 0
      %v2249 = vsel %vm472, %v2193, 0
      %v2252 = vsel %vm472, %v2195, 0
      %v2255 = vsel %vm472, %v2197, 0
      %v2258 = vsel %vm472, %v2199, 0
      %v2261 = vsel %vm472, %v2201, 0
      %v2264 = vsel %vm472, %v2203, 0
      %v2267 = vsel %vm472, %v2205, 0
      %v2270 = vsel %vm472, %v2207, 0
      %v2273 = vsel %vm472, %v2209, 0
      %v2276 = vsel %vm472, %v2211, 0
      %2278 = vmatprep.subr.bf16.mxu0 0
      %2279 = vmatpush1.bf16.msra.mxu0 %v2220
      %2280 = vmatprep.subr.bf16.mxu0 0
      %2281 = vmatpush1.bf16.msra.mxu0 %v2221
      %2282 = vmatprep.subr.bf16.mxu0 0
      %2283 = vmatpush1.bf16.msra.mxu0 0
      %2284 = vmatprep.subr.bf16.mxu0 0
      %2285 = vmatpush1.bf16.msra.mxu0 0
      %2286 = vmatprep.subr.bf16.mxu0 0
      %2287 = vmatpush1.bf16.msra.mxu0 0
      %2288 = vmatprep.subr.bf16.mxu0 0
      %2289 = vmatpush1.bf16.msra.mxu0 0
      %2290 = vmatprep.subr.bf16.mxu0 0
      %2291 = vmatpush1.bf16.msra.mxu0 0
      %2292 = vmatprep.subr.bf16.mxu0 0
      %2293 = vmatpush1.bf16.msra.mxu0 0
      %2294 = vmatprep.subr.bf16.mxu0 0
      %2295 = vmatpush1.bf16.msra.mxu0 0
      %2296 = vmatprep.subr.bf16.mxu0 0
      %2297 = vmatpush1.bf16.msra.mxu0 0
      %2298 = vmatprep.subr.bf16.mxu0 0
      %2299 = vmatpush1.bf16.msra.mxu0 0
      %2300 = vmatprep.subr.bf16.mxu0 0
      %2301 = vmatpush1.bf16.msra.mxu0 0
      %2302 = vmatprep.subr.bf16.mxu0 0
      %2303 = vmatpush1.bf16.msra.mxu0 0
      %2304 = vmatprep.subr.bf16.mxu0 0
      %2305 = vmatpush1.bf16.msra.mxu0 0
      %2306 = vmatprep.subr.bf16.mxu0 0
      %2307 = vmatpush1.bf16.msra.mxu0 0
      %2308 = vmatprep.subr.bf16.mxu0 0
      %2309 = vmatpush1.bf16.msra.mxu0 0
      %2310 = vmatprep.mubr.bf16.mxu0 0
      %2311 = vmatmul.mubr.bf16.gmra.mrb[0].mxu0 %v2225
      %v2312 = vpop.f32.mrb[0].mxu0
      %v2313 = vadd.f32 0.0, %v2312
      %v2314 = vpop.f32.mrb[0].mxu0
      %v2315 = vpop.f32.mrb[0].mxu0
      %v2316 = vadd.f32 0.0, %v2315
      %v2317 = vpop.f32.mrb[0].mxu0
      %2318 = vmatprep.mubr.bf16.mxu0 0
      %2319 = vmatmul.mubr.bf16.gmra.mrb[0].mxu0 %v2228
      %v2320 = vpop.f32.mrb[0].mxu0
      %v2321 = vadd.f32 0.0, %v2320
      %v2322 = vpop.f32.mrb[0].mxu0
      %v2323 = vpop.f32.mrb[0].mxu0
      %v2324 = vadd.f32 0.0, %v2323
      %v2325 = vpop.f32.mrb[0].mxu0
      %2326 = vmatprep.mubr.bf16.mxu0 0
      %2327 = vmatmul.mubr.bf16.gmra.mrb[0].mxu0 %v2231
      %v2328 = vpop.f32.mrb[0].mxu0
      %v2329 = vadd.f32 0.0, %v2328
      %v2330 = vpop.f32.mrb[0].mxu0
      %v2331 = vpop.f32.mrb[0].mxu0
      %v2332 = vadd.f32 0.0, %v2331
      %v2333 = vpop.f32.mrb[0].mxu0
      %2334 = vmatprep.mubr.bf16.mxu0 0
      %2335 = vmatmul.mubr.bf16.gmra.mrb[0].mxu0 %v2234
      %v2336 = vpop.f32.mrb[0].mxu0
      %v2337 = vadd.f32 0.0, %v2336
      %v2338 = vpop.f32.mrb[0].mxu0
      %v2339 = vpop.f32.mrb[0].mxu0
      %v2340 = vadd.f32 0.0, %v2339
      %v2341 = vpop.f32.mrb[0].mxu0
      %2342 = vmatprep.mubr.bf16.mxu0 0
      %2343 = vmatmul.mubr.bf16.gmra.mrb[0].mxu0 %v2237
      %v2344 = vpop.f32.mrb[0].mxu0
      %v2345 = vadd.f32 0.0, %v2344
      %v2346 = vpop.f32.mrb[0].mxu0
      %v2347 = vpop.f32.mrb[0].mxu0
      %v2348 = vadd.f32 0.0, %v2347
      %v2349 = vpop.f32.mrb[0].mxu0
      %2350 = vmatprep.mubr.bf16.mxu0 0
      %2351 = vmatmul.mubr.bf16.gmra.mrb[0].mxu0 %v2240
      %v2352 = vpop.f32.mrb[0].mxu0
      %v2353 = vadd.f32 0.0, %v2352
      %v2354 = vpop.f32.mrb[0].mxu0
      %v2355 = vpop.f32.mrb[0].mxu0
      %v2356 = vadd.f32 0.0, %v2355
      %v2357 = vpop.f32.mrb[0].mxu0
      %2358 = vmatprep.mubr.bf16.mxu0 0
      %2359 = vmatmul.mubr.bf16.gmra.mrb[0].mxu0 %v2243
      %v2360 = vpop.f32.mrb[0].mxu0
      %v2361 = vadd.f32 0.0, %v2360
      %v2362 = vpop.f32.mrb[0].mxu0
      %v2363 = vpop.f32.mrb[0].mxu0
      %v2364 = vadd.f32 0.0, %v2363
      %v2365 = vpop.f32.mrb[0].mxu0
      %2366 = vmatprep.mubr.bf16.mxu0 0
      %2367 = vmatmul.mubr.bf16.gmra.mrb[0].mxu0 %v2246
      %v2368 = vpop.f32.mrb[0].mxu0
      %v2369 = vadd.f32 0.0, %v2368
      %v2370 = vpop.f32.mrb[0].mxu0
      %v2371 = vpop.f32.mrb[0].mxu0
      %v2372 = vadd.f32 0.0, %v2371
      %v2373 = vpop.f32.mrb[0].mxu0
      %2374 = vmatprep.mubr.bf16.mxu0 0
      %2375 = vmatmul.mubr.bf16.gmra.mrb[0].mxu0 %v2249
      %v2376 = vpop.f32.mrb[0].mxu0
      %v2377 = vadd.f32 0.0, %v2376
      %v2378 = vpop.f32.mrb[0].mxu0
      %v2379 = vpop.f32.mrb[0].mxu0
      %v2380 = vadd.f32 0.0, %v2379
      %v2381 = vpop.f32.mrb[0].mxu0
      %2382 = vmatprep.mubr.bf16.mxu0 0
      %2383 = vmatmul.mubr.bf16.gmra.mrb[0].mxu0 %v2252
      %v2384 = vpop.f32.mrb[0].mxu0
      %v2385 = vadd.f32 0.0, %v2384
      %v2386 = vpop.f32.mrb[0].mxu0
      %v2387 = vpop.f32.mrb[0].mxu0
      %v2388 = vadd.f32 0.0, %v2387
      %v2389 = vpop.f32.mrb[0].mxu0
      %2390 = vmatprep.mubr.bf16.mxu0 0
      %2391 = vmatmul.mubr.bf16.gmra.mrb[0].mxu0 %v2255
      %v2392 = vpop.f32.mrb[0].mxu0
      %v2393 = vadd.f32 0.0, %v2392
      %v2394 = vpop.f32.mrb[0].mxu0
      %v2395 = vpop.f32.mrb[0].mxu0
      %v2396 = vadd.f32 0.0, %v2395
      %v2397 = vpop.f32.mrb[0].mxu0
      %2398 = vmatprep.mubr.bf16.mxu0 0
      %2399 = vmatmul.mubr.bf16.gmra.mrb[0].mxu0 %v2258
      %v2400 = vpop.f32.mrb[0].mxu0
      %v2401 = vadd.f32 0.0, %v2400
      %v2402 = vpop.f32.mrb[0].mxu0
      %v2403 = vpop.f32.mrb[0].mxu0
      %v2404 = vadd.f32 0.0, %v2403
      %v2405 = vpop.f32.mrb[0].mxu0
      %2406 = vmatprep.mubr.bf16.mxu0 0
      %2407 = vmatmul.mubr.bf16.gmra.mrb[0].mxu0 %v2261
      %v2408 = vpop.f32.mrb[0].mxu0
      %v2409 = vadd.f32 0.0, %v2408
      %v2410 = vpop.f32.mrb[0].mxu0
      %v2411 = vpop.f32.mrb[0].mxu0
      %v2412 = vadd.f32 0.0, %v2411
      %v2413 = vpop.f32.mrb[0].mxu0
      %2414 = vmatprep.mubr.bf16.mxu0 0
      %2415 = vmatmul.mubr.bf16.gmra.mrb[0].mxu0 %v2264
      %v2416 = vpop.f32.mrb[0].mxu0
      %v2417 = vadd.f32 0.0, %v2416
      %v2418 = vpop.f32.mrb[0].mxu0
      %v2419 = vpop.f32.mrb[0].mxu0
      %v2420 = vadd.f32 0.0, %v2419
      %v2421 = vpop.f32.mrb[0].mxu0
      %2422 = vmatprep.mubr.bf16.mxu0 0
      %2423 = vmatmul.mubr.bf16.gmra.mrb[0].mxu0 %v2267
      %v2424 = vpop.f32.mrb[0].mxu0
      %v2425 = vadd.f32 0.0, %v2424
      %v2426 = vpop.f32.mrb[0].mxu0
      %v2427 = vpop.f32.mrb[0].mxu0
      %v2428 = vadd.f32 0.0, %v2427
      %v2429 = vpop.f32.mrb[0].mxu0
      %2430 = vmatprep.mubr.bf16.mxu0 0
      %2431 = vmatmul.mubr.bf16.gmra.mrb[0].mxu0 %v2270
      %v2432 = vpop.f32.mrb[0].mxu0
      %v2433 = vadd.f32 0.0, %v2432
      %v2434 = vpop.f32.mrb[0].mxu0
      %v2435 = vpop.f32.mrb[0].mxu0
      %v2436 = vadd.f32 0.0, %v2435
      %v2437 = vpop.f32.mrb[0].mxu0
      %2438 = vmatprep.mubr.bf16.mxu0 0
      %2439 = vmatmul.mubr.bf16.gmra.mrb[0].mxu0 %v2273
      %v2440 = vpop.f32.mrb[0].mxu0
      %v2441 = vadd.f32 0.0, %v2440
      %v2442 = vpop.f32.mrb[0].mxu0
      %v2443 = vpop.f32.mrb[0].mxu0
      %v2444 = vadd.f32 0.0, %v2443
      %v2445 = vpop.f32.mrb[0].mxu0
      %2446 = vmatprep.mubr.bf16.mxu0 0
      %2447 = vmatmul.mubr.bf16.gmra.mrb[0].mxu0 %v2276
      %v2448 = vpop.f32.mrb[0].mxu0
      %v2449 = vadd.f32 0.0, %v2448
      %v2450 = vpop.f32.mrb[0].mxu0
      %v2451 = vpop.f32.mrb[0].mxu0
      %v2452 = vadd.f32 0.0, %v2451
      %v2453 = vpop.f32.mrb[0].mxu0
      %2454 = vdwg.mxu0
      %v2455 = vadd.f32 %v2129, %v2313
      %v2456 = vadd.f32 %v2130, %v2316
      %v2457 = vadd.f32 %v2131, %v2321
      %v2458 = vadd.f32 %v2132, %v2324
      %v2459 = vadd.f32 %v2133, %v2329
      %v2460 = vadd.f32 %v2134, %v2332
      %v2461 = vadd.f32 %v2135, %v2337
      %v2462 = vadd.f32 %v2136, %v2340
      %v2463 = vadd.f32 %v2137, %v2345
      %v2464 = vadd.f32 %v2138, %v2348
      %v2465 = vadd.f32 %v2139, %v2353
      %v2466 = vadd.f32 %v2140, %v2356
      %v2467 = vadd.f32 %v2141, %v2361
      %v2468 = vadd.f32 %v2142, %v2364
      %v2469 = vadd.f32 %v2143, %v2369
      %v2470 = vadd.f32 %v2144, %v2372
      %v2471 = vadd.f32 %v2145, %v2377
      %v2472 = vadd.f32 %v2146, %v2380
      %v2473 = vadd.f32 %v2147, %v2385
      %v2474 = vadd.f32 %v2148, %v2388
      %v2475 = vadd.f32 %v2149, %v2393
      %v2476 = vadd.f32 %v2150, %v2396
      %v2477 = vadd.f32 %v2151, %v2401
      %v2478 = vadd.f32 %v2152, %v2404
      %v2479 = vadd.f32 %v2153, %v2409
      %v2480 = vadd.f32 %v2154, %v2412
      %v2481 = vadd.f32 %v2155, %v2417
      %v2482 = vadd.f32 %v2156, %v2420
      %v2483 = vadd.f32 %v2157, %v2425
      %v2484 = vadd.f32 %v2158, %v2428
      %v2485 = vadd.f32 %v2159, %v2433
      %v2486 = vadd.f32 %v2160, %v2436
      %v2487 = vadd.f32 %v2161, %v2441
      %v2488 = vadd.f32 %v2162, %v2444
      %v2489 = vadd.f32 %v2163, %v2449
      %v2490 = vadd.f32 %v2164, %v2452
      %v2491 = vld [vmem:[%s165 + $0x10] sm:$0xc]
      %v2492 = vld [vmem:[%s165 + $0x14] sm:$0xf]
      %v2493 = vld [vmem:[%s165 + $0x18] sm:$0xf]
      %v2494 = vld [vmem:[%s165 + $0x1c] sm:$0xf]
      %v2495 = vld [vmem:[%s165 + $0x20] sm:$0xf]
      %v2496 = vld [vmem:[%s165 + $0x24] sm:$0xf]
      %v2497 = vld [vmem:[%s165 + $0x28] sm:$0xf]
      %v2498 = vld [vmem:[%s165 + $0x2c] sm:$0xf]
      %v2499 = vld [vmem:[%s165 + $0x30] sm:$0xf]
      %v2500 = vld [vmem:[%s165 + $0x34] sm:$0xf]
      %v2501 = vld [vmem:[%s165 + $0x38] sm:$0xf]
      %v2502 = vld [vmem:[%s165 + $0x3c] sm:$0xf]
      %v2503 = vld [vmem:[%s165 + $0x40] sm:$0xf]
      %v2504 = vld [vmem:[%s165 + $0x44] sm:$0xf]
      %v2505 = vld [vmem:[%s165 + $0x48] sm:$0xf]
      %v2506 = vld [vmem:[%s165 + $0x4c] sm:$0xf]
      %v2507 = vld [vmem:[%s165 + $0x50] sm:$0xf]
      %v2508 = vld [vmem:[%s165 + $0x54] sm:$0xf]
      %v2509 = vld [vmem:[%s165 + $0x58] sm:$0xf]
      %v2510 = vld [vmem:[%s165 + $0x5c] sm:$0xf]
      %v2511 = vld [vmem:[%s165 + $0x60] sm:$0xf]
      %v2512 = vld [vmem:[%s165 + $0x64] sm:$0xf]
      %v2513 = vld [vmem:[%s165 + $0x68] sm:$0xf]
      %v2514 = vld [vmem:[%s165 + $0x6c] sm:$0xf]
      %v2515 = vld [vmem:[%s165 + $0x70] sm:$0xf]
      %v2516 = vld [vmem:[%s165 + $0x74] sm:$0xf]
      %v2517 = vld [vmem:[%s165 + $0x78] sm:$0xf]
      %v2518 = vld [vmem:[%s165 + $0x7c] sm:$0xf]
      %v2519 = vld [vmem:[%s165 + $0x80] sm:$0xf]
      %v2520 = vld [vmem:[%s165 + $0x84] sm:$0xf]
      %v2521 = vld [vmem:[%s165 + $0x88] sm:$0xf]
      %v2522 = vld [vmem:[%s165 + $0x8c] sm:$0xf]
      %v2523 = vld [vmem:[%s165 + $0x90] sm:$0xf]
      %v2524 = vld [vmem:[%s165 + $0x94] sm:$0xf]
      %v2525 = vld [vmem:[%s165 + $0x98] sm:$0xf]
      %v2526 = vld [vmem:[%s165 + $0x9c] sm:$0xf]
      %v2527 = vld [vmem:[%s165 + $0xa0] sm:$0x3]
      %s2528 = scalar_lea.vmem %s1, 96
      %v2529 = vld [vmem:[%s2528] sm:$0xf]
      %v2530 = vld [vmem:[%s2528 + $0x4] sm:$0xf]
      %v2531 = vld [vmem:[%s2528 + $0x8] sm:$0xf]
      %v2532 = vld [vmem:[%s2528 + $0xc] sm:$0xf]
      %v2570 = vunpack.c.l.b16 %v2491
      %v2571 = vunpack.c.l.b16 %v2492
      %v2572 = vunpack.c.l.b16 %v2493
      %v2573 = vunpack.c.l.b16 %v2494
      %v2574 = vunpack.c.l.b16 %v2495
      %v2575 = vunpack.c.l.b16 %v2496
      %v2576 = vunpack.c.l.b16 %v2497
      %v2577 = vunpack.c.l.b16 %v2498
      %v2578 = vunpack.c.l.b16 %v2499
      %v2579 = vunpack.c.l.b16 %v2500
      %v2580 = vunpack.c.l.b16 %v2501
      %v2581 = vunpack.c.l.b16 %v2502
      %v2582 = vunpack.c.l.b16 %v2503
      %v2583 = vunpack.c.l.b16 %v2504
      %v2584 = vunpack.c.l.b16 %v2505
      %v2585 = vunpack.c.l.b16 %v2506
      %v2586 = vunpack.c.l.b16 %v2507
      %v2587 = vunpack.c.l.b16 %v2508
      %v2588 = vunpack.c.l.b16 %v2509
      %v2589 = vunpack.c.l.b16 %v2510
      %v2590 = vunpack.c.l.b16 %v2511
      %v2591 = vunpack.c.l.b16 %v2512
      %v2592 = vunpack.c.l.b16 %v2513
      %v2593 = vunpack.c.l.b16 %v2514
      %v2594 = vunpack.c.l.b16 %v2515
      %v2595 = vunpack.c.l.b16 %v2516
      %v2596 = vunpack.c.l.b16 %v2517
      %v2597 = vunpack.c.l.b16 %v2518
      %v2598 = vunpack.c.l.b16 %v2519
      %v2599 = vunpack.c.l.b16 %v2520
      %v2600 = vunpack.c.l.b16 %v2521
      %v2601 = vunpack.c.l.b16 %v2522
      %v2602 = vunpack.c.l.b16 %v2523
      %v2603 = vunpack.c.l.b16 %v2524
      %v2604 = vunpack.c.l.b16 %v2525
      %v2605 = vunpack.c.l.b16 %v2526
      %v2606 = vunpack.c.l.b16 %v2527
      %v2607 = vpack.c.b16 %v2571, %v2570
      %v2608 = vpack.c.b16 %v2573, %v2572
      %v2609 = vpack.c.b16 %v2575, %v2574
      %v2610 = vpack.c.b16 %v2577, %v2576
      %v2611 = vpack.c.b16 %v2579, %v2578
      %v2612 = vpack.c.b16 %v2581, %v2580
      %v2613 = vpack.c.b16 %v2583, %v2582
      %v2614 = vpack.c.b16 %v2585, %v2584
      %v2615 = vpack.c.b16 %v2587, %v2586
      %v2616 = vpack.c.b16 %v2589, %v2588
      %v2617 = vpack.c.b16 %v2591, %v2590
      %v2618 = vpack.c.b16 %v2593, %v2592
      %v2619 = vpack.c.b16 %v2595, %v2594
      %v2620 = vpack.c.b16 %v2597, %v2596
      %v2621 = vpack.c.b16 %v2599, %v2598
      %v2622 = vpack.c.b16 %v2601, %v2600
      %v2623 = vpack.c.b16 %v2603, %v2602
      %v2624 = vpack.c.b16 %v2605, %v2604
      %v2625 = vpack.c.b16 %v2606, %v2606
      %v2626 = vrot.slane %v2607, 2
      %v2627 = vrot.slane %v2608, 2
      %v2628 = vsel %vm2174, %v2626, %v2627
      %v2629 = vrot.slane %v2609, 2
      %v2630 = vsel %vm2174, %v2627, %v2629
      %v2631 = vrot.slane %v2610, 2
      %v2632 = vsel %vm2174, %v2629, %v2631
      %v2633 = vrot.slane %v2611, 2
      %v2634 = vsel %vm2174, %v2631, %v2633
      %v2635 = vrot.slane %v2612, 2
      %v2636 = vsel %vm2174, %v2633, %v2635
      %v2637 = vrot.slane %v2613, 2
      %v2638 = vsel %vm2174, %v2635, %v2637
      %v2639 = vrot.slane %v2614, 2
      %v2640 = vsel %vm2174, %v2637, %v2639
      %v2641 = vrot.slane %v2615, 2
      %v2642 = vsel %vm2174, %v2639, %v2641
      %v2643 = vrot.slane %v2616, 2
      %v2644 = vsel %vm2174, %v2641, %v2643
      %v2645 = vrot.slane %v2617, 2
      %v2646 = vsel %vm2174, %v2643, %v2645
      %v2647 = vrot.slane %v2618, 2
      %v2648 = vsel %vm2174, %v2645, %v2647
      %v2649 = vrot.slane %v2619, 2
      %v2650 = vsel %vm2174, %v2647, %v2649
      %v2651 = vrot.slane %v2620, 2
      %v2652 = vsel %vm2174, %v2649, %v2651
      %v2653 = vrot.slane %v2621, 2
      %v2654 = vsel %vm2174, %v2651, %v2653
      %v2655 = vrot.slane %v2622, 2
      %v2656 = vsel %vm2174, %v2653, %v2655
      %v2657 = vrot.slane %v2623, 2
      %v2658 = vsel %vm2174, %v2655, %v2657
      %v2659 = vrot.slane %v2624, 2
      %v2660 = vsel %vm2174, %v2657, %v2659
      %v2661 = vrot.slane %v2625, 2
      %v2662 = vsel %vm2174, %v2659, %v2661
      %v2667 = vunpack.c.l.b16 %v2529
      %v2668 = vunpack.c.l.b16 %v2530
      %v2669 = vunpack.c.l.b16 %v2531
      %v2670 = vunpack.c.l.b16 %v2532
      %v2671 = vpack.c.b16 %v2668, %v2667
      %v2672 = vpack.c.b16 %v2670, %v2669
      %v2676 = vsel %vm472, %v2628, 0
      %v2679 = vsel %vm472, %v2630, 0
      %v2682 = vsel %vm472, %v2632, 0
      %v2685 = vsel %vm472, %v2634, 0
      %v2688 = vsel %vm472, %v2636, 0
      %v2691 = vsel %vm472, %v2638, 0
      %v2694 = vsel %vm472, %v2640, 0
      %v2697 = vsel %vm472, %v2642, 0
      %v2700 = vsel %vm472, %v2644, 0
      %v2703 = vsel %vm472, %v2646, 0
      %v2706 = vsel %vm472, %v2648, 0
      %v2709 = vsel %vm472, %v2650, 0
      %v2712 = vsel %vm472, %v2652, 0
      %v2715 = vsel %vm472, %v2654, 0
      %v2718 = vsel %vm472, %v2656, 0
      %v2721 = vsel %vm472, %v2658, 0
      %v2724 = vsel %vm472, %v2660, 0
      %v2727 = vsel %vm472, %v2662, 0
      %2729 = vmatprep.subr.bf16.mxu0 0
      %2730 = vmatpush1.bf16.msra.mxu0 %v2671
      %2731 = vmatprep.subr.bf16.mxu0 0
      %2732 = vmatpush1.bf16.msra.mxu0 %v2672
      %2733 = vmatprep.subr.bf16.mxu0 0
      %2734 = vmatpush1.bf16.msra.mxu0 0
      %2735 = vmatprep.subr.bf16.mxu0 0
      %2736 = vmatpush1.bf16.msra.mxu0 0
      %2737 = vmatprep.subr.bf16.mxu0 0
      %2738 = vmatpush1.bf16.msra.mxu0 0
      %2739 = vmatprep.subr.bf16.mxu0 0
      %2740 = vmatpush1.bf16.msra.mxu0 0
      %2741 = vmatprep.subr.bf16.mxu0 0
      %2742 = vmatpush1.bf16.msra.mxu0 0
      %2743 = vmatprep.subr.bf16.mxu0 0
      %2744 = vmatpush1.bf16.msra.mxu0 0
      %2745 = vmatprep.subr.bf16.mxu0 0
      %2746 = vmatpush1.bf16.msra.mxu0 0
      %2747 = vmatprep.subr.bf16.mxu0 0
      %2748 = vmatpush1.bf16.msra.mxu0 0
      %2749 = vmatprep.subr.bf16.mxu0 0
      %2750 = vmatpush1.bf16.msra.mxu0 0
      %2751 = vmatprep.subr.bf16.mxu0 0
      %2752 = vmatpush1.bf16.msra.mxu0 0
      %2753 = vmatprep.subr.bf16.mxu0 0
      %2754 = vmatpush1.bf16.msra.mxu0 0
      %2755 = vmatprep.subr.bf16.mxu0 0
      %2756 = vmatpush1.bf16.msra.mxu0 0
      %2757 = vmatprep.subr.bf16.mxu0 0
      %2758 = vmatpush1.bf16.msra.mxu0 0
      %2759 = vmatprep.subr.bf16.mxu0 0
      %2760 = vmatpush1.bf16.msra.mxu0 0
      %2761 = vmatprep.mubr.bf16.mxu0 0
      %2762 = vmatmul.mubr.bf16.gmra.mrb[0].mxu0 %v2676
      %v2763 = vpop.f32.mrb[0].mxu0
      %v2764 = vadd.f32 0.0, %v2763
      %v2765 = vpop.f32.mrb[0].mxu0
      %v2766 = vpop.f32.mrb[0].mxu0
      %v2767 = vadd.f32 0.0, %v2766
      %v2768 = vpop.f32.mrb[0].mxu0
      %2769 = vmatprep.mubr.bf16.mxu0 0
      %2770 = vmatmul.mubr.bf16.gmra.mrb[0].mxu0 %v2679
      %v2771 = vpop.f32.mrb[0].mxu0
      %v2772 = vadd.f32 0.0, %v2771
      %v2773 = vpop.f32.mrb[0].mxu0
      %v2774 = vpop.f32.mrb[0].mxu0
      %v2775 = vadd.f32 0.0, %v2774
      %v2776 = vpop.f32.mrb[0].mxu0
      %2777 = vmatprep.mubr.bf16.mxu0 0
      %2778 = vmatmul.mubr.bf16.gmra.mrb[0].mxu0 %v2682
      %v2779 = vpop.f32.mrb[0].mxu0
      %v2780 = vadd.f32 0.0, %v2779
      %v2781 = vpop.f32.mrb[0].mxu0
      %v2782 = vpop.f32.mrb[0].mxu0
      %v2783 = vadd.f32 0.0, %v2782
      %v2784 = vpop.f32.mrb[0].mxu0
      %2785 = vmatprep.mubr.bf16.mxu0 0
      %2786 = vmatmul.mubr.bf16.gmra.mrb[0].mxu0 %v2685
      %v2787 = vpop.f32.mrb[0].mxu0
      %v2788 = vadd.f32 0.0, %v2787
      %v2789 = vpop.f32.mrb[0].mxu0
      %v2790 = vpop.f32.mrb[0].mxu0
      %v2791 = vadd.f32 0.0, %v2790
      %v2792 = vpop.f32.mrb[0].mxu0
      %2793 = vmatprep.mubr.bf16.mxu0 0
      %2794 = vmatmul.mubr.bf16.gmra.mrb[0].mxu0 %v2688
      %v2795 = vpop.f32.mrb[0].mxu0
      %v2796 = vadd.f32 0.0, %v2795
      %v2797 = vpop.f32.mrb[0].mxu0
      %v2798 = vpop.f32.mrb[0].mxu0
      %v2799 = vadd.f32 0.0, %v2798
      %v2800 = vpop.f32.mrb[0].mxu0
      %2801 = vmatprep.mubr.bf16.mxu0 0
      %2802 = vmatmul.mubr.bf16.gmra.mrb[0].mxu0 %v2691
      %v2803 = vpop.f32.mrb[0].mxu0
      %v2804 = vadd.f32 0.0, %v2803
      %v2805 = vpop.f32.mrb[0].mxu0
      %v2806 = vpop.f32.mrb[0].mxu0
      %v2807 = vadd.f32 0.0, %v2806
      %v2808 = vpop.f32.mrb[0].mxu0
      %2809 = vmatprep.mubr.bf16.mxu0 0
      %2810 = vmatmul.mubr.bf16.gmra.mrb[0].mxu0 %v2694
      %v2811 = vpop.f32.mrb[0].mxu0
      %v2812 = vadd.f32 0.0, %v2811
      %v2813 = vpop.f32.mrb[0].mxu0
      %v2814 = vpop.f32.mrb[0].mxu0
      %v2815 = vadd.f32 0.0, %v2814
      %v2816 = vpop.f32.mrb[0].mxu0
      %2817 = vmatprep.mubr.bf16.mxu0 0
      %2818 = vmatmul.mubr.bf16.gmra.mrb[0].mxu0 %v2697
      %v2819 = vpop.f32.mrb[0].mxu0
      %v2820 = vadd.f32 0.0, %v2819
      %v2821 = vpop.f32.mrb[0].mxu0
      %v2822 = vpop.f32.mrb[0].mxu0
      %v2823 = vadd.f32 0.0, %v2822
      %v2824 = vpop.f32.mrb[0].mxu0
      %2825 = vmatprep.mubr.bf16.mxu0 0
      %2826 = vmatmul.mubr.bf16.gmra.mrb[0].mxu0 %v2700
      %v2827 = vpop.f32.mrb[0].mxu0
      %v2828 = vadd.f32 0.0, %v2827
      %v2829 = vpop.f32.mrb[0].mxu0
      %v2830 = vpop.f32.mrb[0].mxu0
      %v2831 = vadd.f32 0.0, %v2830
      %v2832 = vpop.f32.mrb[0].mxu0
      %2833 = vmatprep.mubr.bf16.mxu0 0
      %2834 = vmatmul.mubr.bf16.gmra.mrb[0].mxu0 %v2703
      %v2835 = vpop.f32.mrb[0].mxu0
      %v2836 = vadd.f32 0.0, %v2835
      %v2837 = vpop.f32.mrb[0].mxu0
      %v2838 = vpop.f32.mrb[0].mxu0
      %v2839 = vadd.f32 0.0, %v2838
      %v2840 = vpop.f32.mrb[0].mxu0
      %2841 = vmatprep.mubr.bf16.mxu0 0
      %2842 = vmatmul.mubr.bf16.gmra.mrb[0].mxu0 %v2706
      %v2843 = vpop.f32.mrb[0].mxu0
      %v2844 = vadd.f32 0.0, %v2843
      %v2845 = vpop.f32.mrb[0].mxu0
      %v2846 = vpop.f32.mrb[0].mxu0
      %v2847 = vadd.f32 0.0, %v2846
      %v2848 = vpop.f32.mrb[0].mxu0
      %2849 = vmatprep.mubr.bf16.mxu0 0
      %2850 = vmatmul.mubr.bf16.gmra.mrb[0].mxu0 %v2709
      %v2851 = vpop.f32.mrb[0].mxu0
      %v2852 = vadd.f32 0.0, %v2851
      %v2853 = vpop.f32.mrb[0].mxu0
      %v2854 = vpop.f32.mrb[0].mxu0
      %v2855 = vadd.f32 0.0, %v2854
      %v2856 = vpop.f32.mrb[0].mxu0
      %2857 = vmatprep.mubr.bf16.mxu0 0
      %2858 = vmatmul.mubr.bf16.gmra.mrb[0].mxu0 %v2712
      %v2859 = vpop.f32.mrb[0].mxu0
      %v2860 = vadd.f32 0.0, %v2859
      %v2861 = vpop.f32.mrb[0].mxu0
      %v2862 = vpop.f32.mrb[0].mxu0
      %v2863 = vadd.f32 0.0, %v2862
      %v2864 = vpop.f32.mrb[0].mxu0
      %2865 = vmatprep.mubr.bf16.mxu0 0
      %2866 = vmatmul.mubr.bf16.gmra.mrb[0].mxu0 %v2715
      %v2867 = vpop.f32.mrb[0].mxu0
      %v2868 = vadd.f32 0.0, %v2867
      %v2869 = vpop.f32.mrb[0].mxu0
      %v2870 = vpop.f32.mrb[0].mxu0
      %v2871 = vadd.f32 0.0, %v2870
      %v2872 = vpop.f32.mrb[0].mxu0
      %2873 = vmatprep.mubr.bf16.mxu0 0
      %2874 = vmatmul.mubr.bf16.gmra.mrb[0].mxu0 %v2718
      %v2875 = vpop.f32.mrb[0].mxu0
      %v2876 = vadd.f32 0.0, %v2875
      %v2877 = vpop.f32.mrb[0].mxu0
      %v2878 = vpop.f32.mrb[0].mxu0
      %v2879 = vadd.f32 0.0, %v2878
      %v2880 = vpop.f32.mrb[0].mxu0
      %2881 = vmatprep.mubr.bf16.mxu0 0
      %2882 = vmatmul.mubr.bf16.gmra.mrb[0].mxu0 %v2721
      %v2883 = vpop.f32.mrb[0].mxu0
      %v2884 = vadd.f32 0.0, %v2883
      %v2885 = vpop.f32.mrb[0].mxu0
      %v2886 = vpop.f32.mrb[0].mxu0
      %v2887 = vadd.f32 0.0, %v2886
      %v2888 = vpop.f32.mrb[0].mxu0
      %2889 = vmatprep.mubr.bf16.mxu0 0
      %2890 = vmatmul.mubr.bf16.gmra.mrb[0].mxu0 %v2724
      %v2891 = vpop.f32.mrb[0].mxu0
      %v2892 = vadd.f32 0.0, %v2891
      %v2893 = vpop.f32.mrb[0].mxu0
      %v2894 = vpop.f32.mrb[0].mxu0
      %v2895 = vadd.f32 0.0, %v2894
      %v2896 = vpop.f32.mrb[0].mxu0
      %2897 = vmatprep.mubr.bf16.mxu0 0
      %2898 = vmatmul.mubr.bf16.gmra.mrb[0].mxu0 %v2727
      %v2899 = vpop.f32.mrb[0].mxu0
      %v2900 = vadd.f32 0.0, %v2899
      %v2901 = vpop.f32.mrb[0].mxu0
      %v2902 = vpop.f32.mrb[0].mxu0
      %v2903 = vadd.f32 0.0, %v2902
      %v2904 = vpop.f32.mrb[0].mxu0
      %2905 = vdwg.mxu0
      %v2906 = vadd.f32 %v2455, %v2764
      %v2907 = vadd.f32 %v2456, %v2767
      %v2908 = vadd.f32 %v2457, %v2772
      %v2909 = vadd.f32 %v2458, %v2775
      %v2910 = vadd.f32 %v2459, %v2780
      %v2911 = vadd.f32 %v2460, %v2783
      %v2912 = vadd.f32 %v2461, %v2788
      %v2913 = vadd.f32 %v2462, %v2791
      %v2914 = vadd.f32 %v2463, %v2796
      %v2915 = vadd.f32 %v2464, %v2799
      %v2916 = vadd.f32 %v2465, %v2804
      %v2917 = vadd.f32 %v2466, %v2807
      %v2918 = vadd.f32 %v2467, %v2812
      %v2919 = vadd.f32 %v2468, %v2815
      %v2920 = vadd.f32 %v2469, %v2820
      %v2921 = vadd.f32 %v2470, %v2823
      %v2922 = vadd.f32 %v2471, %v2828
      %v2923 = vadd.f32 %v2472, %v2831
      %v2924 = vadd.f32 %v2473, %v2836
      %v2925 = vadd.f32 %v2474, %v2839
      %v2926 = vadd.f32 %v2475, %v2844
      %v2927 = vadd.f32 %v2476, %v2847
      %v2928 = vadd.f32 %v2477, %v2852
      %v2929 = vadd.f32 %v2478, %v2855
      %v2930 = vadd.f32 %v2479, %v2860
      %v2931 = vadd.f32 %v2480, %v2863
      %v2932 = vadd.f32 %v2481, %v2868
      %v2933 = vadd.f32 %v2482, %v2871
      %v2934 = vadd.f32 %v2483, %v2876
      %v2935 = vadd.f32 %v2484, %v2879
      %v2936 = vadd.f32 %v2485, %v2884
      %v2937 = vadd.f32 %v2486, %v2887
      %v2938 = vadd.f32 %v2487, %v2892
      %v2939 = vadd.f32 %v2488, %v2895
      %v2940 = vadd.f32 %v2489, %v2900
      %v2941 = vadd.f32 %v2490, %v2903
      %v2942 = vld [vmem:[%s165 + $0xa0] sm:$0x7]
      %s2943 = scalar_lea.vmem %s1, 112
      %v2944 = vld [vmem:[%s2943] sm:$0xf]
      %v2945 = vld [vmem:[%s2943 + $0x4] sm:$0xf]
      %v2946 = vld [vmem:[%s2943 + $0x8] sm:$0xf]
      %v2947 = vld [vmem:[%s2943 + $0xc] sm:$0xf]
      %v2949 = vunpack.c.l.b16 %v2942
      %v2950 = vpack.c.b16 %v2949, %v2949
      %vm2951 = vsmask.f32 5376
      %v2953 = vshrl.u32 %v2607, 16
      %v2955 = vrot.slane %v2953, 2
      %v2956 = vshll.u32 %v2607, 16
      %v2958 = vrot.slane %v2956, 3
      %v2959 = vor.u32 %v2955, %v2958
      %v2961 = vshrl.u32 %v2608, 16
      %v2963 = vrot.slane %v2961, 2
      %v2964 = vshll.u32 %v2608, 16
      %v2966 = vrot.slane %v2964, 3
      %v2967 = vor.u32 %v2963, %v2966
      %v2968 = vsel %vm2951, %v2959, %v2967
      %v2970 = vshrl.u32 %v2609, 16
      %v2972 = vrot.slane %v2970, 2
      %v2973 = vshll.u32 %v2609, 16
      %v2975 = vrot.slane %v2973, 3
      %v2976 = vor.u32 %v2972, %v2975
      %v2977 = vsel %vm2951, %v2967, %v2976
      %v2979 = vshrl.u32 %v2610, 16
      %v2981 = vrot.slane %v2979, 2
      %v2982 = vshll.u32 %v2610, 16
      %v2984 = vrot.slane %v2982, 3
      %v2985 = vor.u32 %v2981, %v2984
      %v2986 = vsel %vm2951, %v2976, %v2985
      %v2988 = vshrl.u32 %v2611, 16
      %v2990 = vrot.slane %v2988, 2
      %v2991 = vshll.u32 %v2611, 16
      %v2993 = vrot.slane %v2991, 3
      %v2994 = vor.u32 %v2990, %v2993
      %v2995 = vsel %vm2951, %v2985, %v2994
      %v2997 = vshrl.u32 %v2612, 16
      %v2999 = vrot.slane %v2997, 2
      %v3000 = vshll.u32 %v2612, 16
      %v3002 = vrot.slane %v3000, 3
      %v3003 = vor.u32 %v2999, %v3002
      %v3004 = vsel %vm2951, %v2994, %v3003
      %v3006 = vshrl.u32 %v2613, 16
      %v3008 = vrot.slane %v3006, 2
      %v3009 = vshll.u32 %v2613, 16
      %v3011 = vrot.slane %v3009, 3
      %v3012 = vor.u32 %v3008, %v3011
      %v3013 = vsel %vm2951, %v3003, %v3012
      %v3015 = vshrl.u32 %v2614, 16
      %v3017 = vrot.slane %v3015, 2
      %v3018 = vshll.u32 %v2614, 16
      %v3020 = vrot.slane %v3018, 3
      %v3021 = vor.u32 %v3017, %v3020
      %v3022 = vsel %vm2951, %v3012, %v3021
      %v3024 = vshrl.u32 %v2615, 16
      %v3026 = vrot.slane %v3024, 2
      %v3027 = vshll.u32 %v2615, 16
      %v3029 = vrot.slane %v3027, 3
      %v3030 = vor.u32 %v3026, %v3029
      %v3031 = vsel %vm2951, %v3021, %v3030
      %v3033 = vshrl.u32 %v2616, 16
      %v3035 = vrot.slane %v3033, 2
      %v3036 = vshll.u32 %v2616, 16
      %v3038 = vrot.slane %v3036, 3
      %v3039 = vor.u32 %v3035, %v3038
      %v3040 = vsel %vm2951, %v3030, %v3039
      %v3042 = vshrl.u32 %v2617, 16
      %v3044 = vrot.slane %v3042, 2
      %v3045 = vshll.u32 %v2617, 16
      %v3047 = vrot.slane %v3045, 3
      %v3048 = vor.u32 %v3044, %v3047
      %v3049 = vsel %vm2951, %v3039, %v3048
      %v3051 = vshrl.u32 %v2618, 16
      %v3053 = vrot.slane %v3051, 2
      %v3054 = vshll.u32 %v2618, 16
      %v3056 = vrot.slane %v3054, 3
      %v3057 = vor.u32 %v3053, %v3056
      %v3058 = vsel %vm2951, %v3048, %v3057
      %v3060 = vshrl.u32 %v2619, 16
      %v3062 = vrot.slane %v3060, 2
      %v3063 = vshll.u32 %v2619, 16
      %v3065 = vrot.slane %v3063, 3
      %v3066 = vor.u32 %v3062, %v3065
      %v3067 = vsel %vm2951, %v3057, %v3066
      %v3069 = vshrl.u32 %v2620, 16
      %v3071 = vrot.slane %v3069, 2
      %v3072 = vshll.u32 %v2620, 16
      %v3074 = vrot.slane %v3072, 3
      %v3075 = vor.u32 %v3071, %v3074
      %v3076 = vsel %vm2951, %v3066, %v3075
      %v3078 = vshrl.u32 %v2621, 16
      %v3080 = vrot.slane %v3078, 2
      %v3081 = vshll.u32 %v2621, 16
      %v3083 = vrot.slane %v3081, 3
      %v3084 = vor.u32 %v3080, %v3083
      %v3085 = vsel %vm2951, %v3075, %v3084
      %v3087 = vshrl.u32 %v2622, 16
      %v3089 = vrot.slane %v3087, 2
      %v3090 = vshll.u32 %v2622, 16
      %v3092 = vrot.slane %v3090, 3
      %v3093 = vor.u32 %v3089, %v3092
      %v3094 = vsel %vm2951, %v3084, %v3093
      %v3096 = vshrl.u32 %v2623, 16
      %v3098 = vrot.slane %v3096, 2
      %v3099 = vshll.u32 %v2623, 16
      %v3101 = vrot.slane %v3099, 3
      %v3102 = vor.u32 %v3098, %v3101
      %v3103 = vsel %vm2951, %v3093, %v3102
      %v3105 = vshrl.u32 %v2624, 16
      %v3107 = vrot.slane %v3105, 2
      %v3108 = vshll.u32 %v2624, 16
      %v3110 = vrot.slane %v3108, 3
      %v3111 = vor.u32 %v3107, %v3110
      %v3112 = vsel %vm2951, %v3102, %v3111
      %v3114 = vshrl.u32 %v2950, 16
      %v3116 = vrot.slane %v3114, 2
      %v3117 = vshll.u32 %v2950, 16
      %v3119 = vrot.slane %v3117, 3
      %v3120 = vor.u32 %v3116, %v3119
      %v3121 = vsel %vm2951, %v3111, %v3120
      %v3126 = vunpack.c.l.b16 %v2944
      %v3127 = vunpack.c.l.b16 %v2945
      %v3128 = vunpack.c.l.b16 %v2946
      %v3129 = vunpack.c.l.b16 %v2947
      %v3130 = vpack.c.b16 %v3127, %v3126
      %v3131 = vpack.c.b16 %v3129, %v3128
      %v3135 = vsel %vm472, %v2968, 0
      %v3138 = vsel %vm472, %v2977, 0
      %v3141 = vsel %vm472, %v2986, 0
      %v3144 = vsel %vm472, %v2995, 0
      %v3147 = vsel %vm472, %v3004, 0
      %v3150 = vsel %vm472, %v3013, 0
      %v3153 = vsel %vm472, %v3022, 0
      %v3156 = vsel %vm472, %v3031, 0
      %v3159 = vsel %vm472, %v3040, 0
      %v3162 = vsel %vm472, %v3049, 0
      %v3165 = vsel %vm472, %v3058, 0
      %v3168 = vsel %vm472, %v3067, 0
      %v3171 = vsel %vm472, %v3076, 0
      %v3174 = vsel %vm472, %v3085, 0
      %v3177 = vsel %vm472, %v3094, 0
      %v3180 = vsel %vm472, %v3103, 0
      %v3183 = vsel %vm472, %v3112, 0
      %v3186 = vsel %vm472, %v3121, 0
      %3188 = vmatprep.subr.bf16.mxu0 0
      %3189 = vmatpush1.bf16.msra.mxu0 %v3130
      %3190 = vmatprep.subr.bf16.mxu0 0
      %3191 = vmatpush1.bf16.msra.mxu0 %v3131
      %3192 = vmatprep.subr.bf16.mxu0 0
      %3193 = vmatpush1.bf16.msra.mxu0 0
      %3194 = vmatprep.subr.bf16.mxu0 0
      %3195 = vmatpush1.bf16.msra.mxu0 0
      %3196 = vmatprep.subr.bf16.mxu0 0
      %3197 = vmatpush1.bf16.msra.mxu0 0
      %3198 = vmatprep.subr.bf16.mxu0 0
      %3199 = vmatpush1.bf16.msra.mxu0 0
      %3200 = vmatprep.subr.bf16.mxu0 0
      %3201 = vmatpush1.bf16.msra.mxu0 0
      %3202 = vmatprep.subr.bf16.mxu0 0
      %3203 = vmatpush1.bf16.msra.mxu0 0
      %3204 = vmatprep.subr.bf16.mxu0 0
      %3205 = vmatpush1.bf16.msra.mxu0 0
      %3206 = vmatprep.subr.bf16.mxu0 0
      %3207 = vmatpush1.bf16.msra.mxu0 0
      %3208 = vmatprep.subr.bf16.mxu0 0
      %3209 = vmatpush1.bf16.msra.mxu0 0
      %3210 = vmatprep.subr.bf16.mxu0 0
      %3211 = vmatpush1.bf16.msra.mxu0 0
      %3212 = vmatprep.subr.bf16.mxu0 0
      %3213 = vmatpush1.bf16.msra.mxu0 0
      %3214 = vmatprep.subr.bf16.mxu0 0
      %3215 = vmatpush1.bf16.msra.mxu0 0
      %3216 = vmatprep.subr.bf16.mxu0 0
      %3217 = vmatpush1.bf16.msra.mxu0 0
      %3218 = vmatprep.subr.bf16.mxu0 0
      %3219 = vmatpush1.bf16.msra.mxu0 0
      %3220 = vmatprep.mubr.bf16.mxu0 0
      %3221 = vmatmul.mubr.bf16.gmra.mrb[0].mxu0 %v3135
      %v3222 = vpop.f32.mrb[0].mxu0
      %v3223 = vadd.f32 0.0, %v3222
      %v3224 = vpop.f32.mrb[0].mxu0
      %v3225 = vpop.f32.mrb[0].mxu0
      %v3226 = vadd.f32 0.0, %v3225
      %v3227 = vpop.f32.mrb[0].mxu0
      %3228 = vmatprep.mubr.bf16.mxu0 0
      %3229 = vmatmul.mubr.bf16.gmra.mrb[0].mxu0 %v3138
      %v3230 = vpop.f32.mrb[0].mxu0
      %v3231 = vadd.f32 0.0, %v3230
      %v3232 = vpop.f32.mrb[0].mxu0
      %v3233 = vpop.f32.mrb[0].mxu0
      %v3234 = vadd.f32 0.0, %v3233
      %v3235 = vpop.f32.mrb[0].mxu0
      %3236 = vmatprep.mubr.bf16.mxu0 0
      %3237 = vmatmul.mubr.bf16.gmra.mrb[0].mxu0 %v3141
      %v3238 = vpop.f32.mrb[0].mxu0
      %v3239 = vadd.f32 0.0, %v3238
      %v3240 = vpop.f32.mrb[0].mxu0
      %v3241 = vpop.f32.mrb[0].mxu0
      %v3242 = vadd.f32 0.0, %v3241
      %v3243 = vpop.f32.mrb[0].mxu0
      %3244 = vmatprep.mubr.bf16.mxu0 0
      %3245 = vmatmul.mubr.bf16.gmra.mrb[0].mxu0 %v3144
      %v3246 = vpop.f32.mrb[0].mxu0
      %v3247 = vadd.f32 0.0, %v3246
      %v3248 = vpop.f32.mrb[0].mxu0
      %v3249 = vpop.f32.mrb[0].mxu0
      %v3250 = vadd.f32 0.0, %v3249
      %v3251 = vpop.f32.mrb[0].mxu0
      %3252 = vmatprep.mubr.bf16.mxu0 0
      %3253 = vmatmul.mubr.bf16.gmra.mrb[0].mxu0 %v3147
      %v3254 = vpop.f32.mrb[0].mxu0
      %v3255 = vadd.f32 0.0, %v3254
      %v3256 = vpop.f32.mrb[0].mxu0
      %v3257 = vpop.f32.mrb[0].mxu0
      %v3258 = vadd.f32 0.0, %v3257
      %v3259 = vpop.f32.mrb[0].mxu0
      %3260 = vmatprep.mubr.bf16.mxu0 0
      %3261 = vmatmul.mubr.bf16.gmra.mrb[0].mxu0 %v3150
      %v3262 = vpop.f32.mrb[0].mxu0
      %v3263 = vadd.f32 0.0, %v3262
      %v3264 = vpop.f32.mrb[0].mxu0
      %v3265 = vpop.f32.mrb[0].mxu0
      %v3266 = vadd.f32 0.0, %v3265
      %v3267 = vpop.f32.mrb[0].mxu0
      %3268 = vmatprep.mubr.bf16.mxu0 0
      %3269 = vmatmul.mubr.bf16.gmra.mrb[0].mxu0 %v3153
      %v3270 = vpop.f32.mrb[0].mxu0
      %v3271 = vadd.f32 0.0, %v3270
      %v3272 = vpop.f32.mrb[0].mxu0
      %v3273 = vpop.f32.mrb[0].mxu0
      %v3274 = vadd.f32 0.0, %v3273
      %v3275 = vpop.f32.mrb[0].mxu0
      %3276 = vmatprep.mubr.bf16.mxu0 0
      %3277 = vmatmul.mubr.bf16.gmra.mrb[0].mxu0 %v3156
      %v3278 = vpop.f32.mrb[0].mxu0
      %v3279 = vadd.f32 0.0, %v3278
      %v3280 = vpop.f32.mrb[0].mxu0
      %v3281 = vpop.f32.mrb[0].mxu0
      %v3282 = vadd.f32 0.0, %v3281
      %v3283 = vpop.f32.mrb[0].mxu0
      %3284 = vmatprep.mubr.bf16.mxu0 0
      %3285 = vmatmul.mubr.bf16.gmra.mrb[0].mxu0 %v3159
      %v3286 = vpop.f32.mrb[0].mxu0
      %v3287 = vadd.f32 0.0, %v3286
      %v3288 = vpop.f32.mrb[0].mxu0
      %v3289 = vpop.f32.mrb[0].mxu0
      %v3290 = vadd.f32 0.0, %v3289
      %v3291 = vpop.f32.mrb[0].mxu0
      %3292 = vmatprep.mubr.bf16.mxu0 0
      %3293 = vmatmul.mubr.bf16.gmra.mrb[0].mxu0 %v3162
      %v3294 = vpop.f32.mrb[0].mxu0
      %v3295 = vadd.f32 0.0, %v3294
      %v3296 = vpop.f32.mrb[0].mxu0
      %v3297 = vpop.f32.mrb[0].mxu0
      %v3298 = vadd.f32 0.0, %v3297
      %v3299 = vpop.f32.mrb[0].mxu0
      %3300 = vmatprep.mubr.bf16.mxu0 0
      %3301 = vmatmul.mubr.bf16.gmra.mrb[0].mxu0 %v3165
      %v3302 = vpop.f32.mrb[0].mxu0
      %v3303 = vadd.f32 0.0, %v3302
      %v3304 = vpop.f32.mrb[0].mxu0
      %v3305 = vpop.f32.mrb[0].mxu0
      %v3306 = vadd.f32 0.0, %v3305
      %v3307 = vpop.f32.mrb[0].mxu0
      %3308 = vmatprep.mubr.bf16.mxu0 0
      %3309 = vmatmul.mubr.bf16.gmra.mrb[0].mxu0 %v3168
      %v3310 = vpop.f32.mrb[0].mxu0
      %v3311 = vadd.f32 0.0, %v3310
      %v3312 = vpop.f32.mrb[0].mxu0
      %v3313 = vpop.f32.mrb[0].mxu0
      %v3314 = vadd.f32 0.0, %v3313
      %v3315 = vpop.f32.mrb[0].mxu0
      %3316 = vmatprep.mubr.bf16.mxu0 0
      %3317 = vmatmul.mubr.bf16.gmra.mrb[0].mxu0 %v3171
      %v3318 = vpop.f32.mrb[0].mxu0
      %v3319 = vadd.f32 0.0, %v3318
      %v3320 = vpop.f32.mrb[0].mxu0
      %v3321 = vpop.f32.mrb[0].mxu0
      %v3322 = vadd.f32 0.0, %v3321
      %v3323 = vpop.f32.mrb[0].mxu0
      %3324 = vmatprep.mubr.bf16.mxu0 0
      %3325 = vmatmul.mubr.bf16.gmra.mrb[0].mxu0 %v3174
      %v3326 = vpop.f32.mrb[0].mxu0
      %v3327 = vadd.f32 0.0, %v3326
      %v3328 = vpop.f32.mrb[0].mxu0
      %v3329 = vpop.f32.mrb[0].mxu0
      %v3330 = vadd.f32 0.0, %v3329
      %v3331 = vpop.f32.mrb[0].mxu0
      %3332 = vmatprep.mubr.bf16.mxu0 0
      %3333 = vmatmul.mubr.bf16.gmra.mrb[0].mxu0 %v3177
      %v3334 = vpop.f32.mrb[0].mxu0
      %v3335 = vadd.f32 0.0, %v3334
      %v3336 = vpop.f32.mrb[0].mxu0
      %v3337 = vpop.f32.mrb[0].mxu0
      %v3338 = vadd.f32 0.0, %v3337
      %v3339 = vpop.f32.mrb[0].mxu0
      %3340 = vmatprep.mubr.bf16.mxu0 0
      %3341 = vmatmul.mubr.bf16.gmra.mrb[0].mxu0 %v3180
      %v3342 = vpop.f32.mrb[0].mxu0
      %v3343 = vadd.f32 0.0, %v3342
      %v3344 = vpop.f32.mrb[0].mxu0
      %v3345 = vpop.f32.mrb[0].mxu0
      %v3346 = vadd.f32 0.0, %v3345
      %v3347 = vpop.f32.mrb[0].mxu0
      %3348 = vmatprep.mubr.bf16.mxu0 0
      %3349 = vmatmul.mubr.bf16.gmra.mrb[0].mxu0 %v3183
      %v3350 = vpop.f32.mrb[0].mxu0
      %v3351 = vadd.f32 0.0, %v3350
      %v3352 = vpop.f32.mrb[0].mxu0
      %v3353 = vpop.f32.mrb[0].mxu0
      %v3354 = vadd.f32 0.0, %v3353
      %v3355 = vpop.f32.mrb[0].mxu0
      %3356 = vmatprep.mubr.bf16.mxu0 0
      %3357 = vmatmul.mubr.bf16.gmra.mrb[0].mxu0 %v3186
      %v3358 = vpop.f32.mrb[0].mxu0
      %v3359 = vadd.f32 0.0, %v3358
      %v3360 = vpop.f32.mrb[0].mxu0
      %v3361 = vpop.f32.mrb[0].mxu0
      %v3362 = vadd.f32 0.0, %v3361
      %v3363 = vpop.f32.mrb[0].mxu0
      %3364 = vdwg.mxu0
      %v3365 = vadd.f32 %v2906, %v3223
      %v3366 = vadd.f32 %v2907, %v3226
      %v3367 = vadd.f32 %v2908, %v3231
      %v3368 = vadd.f32 %v2909, %v3234
      %v3369 = vadd.f32 %v2910, %v3239
      %v3370 = vadd.f32 %v2911, %v3242
      %v3371 = vadd.f32 %v2912, %v3247
      %v3372 = vadd.f32 %v2913, %v3250
      %v3373 = vadd.f32 %v2914, %v3255
      %v3374 = vadd.f32 %v2915, %v3258
      %v3375 = vadd.f32 %v2916, %v3263
      %v3376 = vadd.f32 %v2917, %v3266
      %v3377 = vadd.f32 %v2918, %v3271
      %v3378 = vadd.f32 %v2919, %v3274
      %v3379 = vadd.f32 %v2920, %v3279
      %v3380 = vadd.f32 %v2921, %v3282
      %v3381 = vadd.f32 %v2922, %v3287
      %v3382 = vadd.f32 %v2923, %v3290
      %v3383 = vadd.f32 %v2924, %v3295
      %v3384 = vadd.f32 %v2925, %v3298
      %v3385 = vadd.f32 %v2926, %v3303
      %v3386 = vadd.f32 %v2927, %v3306
      %v3387 = vadd.f32 %v2928, %v3311
      %v3388 = vadd.f32 %v2929, %v3314
      %v3389 = vadd.f32 %v2930, %v3319
      %v3390 = vadd.f32 %v2931, %v3322
      %v3391 = vadd.f32 %v2932, %v3327
      %v3392 = vadd.f32 %v2933, %v3330
      %v3393 = vadd.f32 %v2934, %v3335
      %v3394 = vadd.f32 %v2935, %v3338
      %v3395 = vadd.f32 %v2936, %v3343
      %v3396 = vadd.f32 %v2937, %v3346
      %v3397 = vadd.f32 %v2938, %v3351
      %v3398 = vadd.f32 %v2939, %v3354
      %v3399 = vadd.f32 %v2940, %v3359
      %v3400 = vadd.f32 %v2941, %v3362
      %v3401 = vld [vmem:[%s165 + $0x10] sm:$0x8]
      %s3402 = scalar_lea.vmem %s1, 128
      %v3403 = vld [vmem:[%s3402] sm:$0xf]
      %v3404 = vld [vmem:[%s3402 + $0x4] sm:$0xf]
      %v3405 = vld [vmem:[%s3402 + $0x8] sm:$0xf]
      %v3406 = vld [vmem:[%s3402 + $0xc] sm:$0xf]
      %v3408 = vunpack.c.l.b16 %v3401
      %v3409 = vpack.c.b16 %v2571, %v3408
      %vm3410 = vcmask 1044480
      %v3411 = vrot.slane %v3409, 3
      %v3412 = vrot.slane %v2608, 3
      %v3413 = vsel %vm3410, %v3411, %v3412
      %v3414 = vrot.slane %v2609, 3
      %v3415 = vsel %vm3410, %v3412, %v3414
      %v3416 = vrot.slane %v2610, 3
      %v3417 = vsel %vm3410, %v3414, %v3416
      %v3418 = vrot.slane %v2611, 3
      %v3419 = vsel %vm3410, %v3416, %v3418
      %v3420 = vrot.slane %v2612, 3
      %v3421 = vsel %vm3410, %v3418, %v3420
      %v3422 = vrot.slane %v2613, 3
      %v3423 = vsel %vm3410, %v3420, %v3422
      %v3424 = vrot.slane %v2614, 3
      %v3425 = vsel %vm3410, %v3422, %v3424
      %v3426 = vrot.slane %v2615, 3
      %v3427 = vsel %vm3410, %v3424, %v3426
      %v3428 = vrot.slane %v2616, 3
      %v3429 = vsel %vm3410, %v3426, %v3428
      %v3430 = vrot.slane %v2617, 3
      %v3431 = vsel %vm3410, %v3428, %v3430
      %v3432 = vrot.slane %v2618, 3
      %v3433 = vsel %vm3410, %v3430, %v3432
      %v3434 = vrot.slane %v2619, 3
      %v3435 = vsel %vm3410, %v3432, %v3434
      %v3436 = vrot.slane %v2620, 3
      %v3437 = vsel %vm3410, %v3434, %v3436
      %v3438 = vrot.slane %v2621, 3
      %v3439 = vsel %vm3410, %v3436, %v3438
      %v3440 = vrot.slane %v2622, 3
      %v3441 = vsel %vm3410, %v3438, %v3440
      %v3442 = vrot.slane %v2623, 3
      %v3443 = vsel %vm3410, %v3440, %v3442
      %v3444 = vrot.slane %v2624, 3
      %v3445 = vsel %vm3410, %v3442, %v3444
      %v3446 = vrot.slane %v2950, 3
      %v3447 = vsel %vm3410, %v3444, %v3446
      %v3452 = vunpack.c.l.b16 %v3403
      %v3453 = vunpack.c.l.b16 %v3404
      %v3454 = vunpack.c.l.b16 %v3405
      %v3455 = vunpack.c.l.b16 %v3406
      %v3456 = vpack.c.b16 %v3453, %v3452
      %v3457 = vpack.c.b16 %v3455, %v3454
      %v3461 = vsel %vm472, %v3413, 0
      %v3464 = vsel %vm472, %v3415, 0
      %v3467 = vsel %vm472, %v3417, 0
      %v3470 = vsel %vm472, %v3419, 0
      %v3473 = vsel %vm472, %v3421, 0
      %v3476 = vsel %vm472, %v3423, 0
      %v3479 = vsel %vm472, %v3425, 0
      %v3482 = vsel %vm472, %v3427, 0
      %v3485 = vsel %vm472, %v3429, 0
      %v3488 = vsel %vm472, %v3431, 0
      %v3491 = vsel %vm472, %v3433, 0
      %v3494 = vsel %vm472, %v3435, 0
      %v3497 = vsel %vm472, %v3437, 0
      %v3500 = vsel %vm472, %v3439, 0
      %v3503 = vsel %vm472, %v3441, 0
      %v3506 = vsel %vm472, %v3443, 0
      %v3509 = vsel %vm472, %v3445, 0
      %v3512 = vsel %vm472, %v3447, 0
      %3514 = vmatprep.subr.bf16.mxu0 0
      %3515 = vmatpush1.bf16.msra.mxu0 %v3456
      %3516 = vmatprep.subr.bf16.mxu0 0
      %3517 = vmatpush1.bf16.msra.mxu0 %v3457
      %3518 = vmatprep.subr.bf16.mxu0 0
      %3519 = vmatpush1.bf16.msra.mxu0 0
      %3520 = vmatprep.subr.bf16.mxu0 0
      %3521 = vmatpush1.bf16.msra.mxu0 0
      %3522 = vmatprep.subr.bf16.mxu0 0
      %3523 = vmatpush1.bf16.msra.mxu0 0
      %3524 = vmatprep.subr.bf16.mxu0 0
      %3525 = vmatpush1.bf16.msra.mxu0 0
      %3526 = vmatprep.subr.bf16.mxu0 0
      %3527 = vmatpush1.bf16.msra.mxu0 0
      %3528 = vmatprep.subr.bf16.mxu0 0
      %3529 = vmatpush1.bf16.msra.mxu0 0
      %3530 = vmatprep.subr.bf16.mxu0 0
      %3531 = vmatpush1.bf16.msra.mxu0 0
      %3532 = vmatprep.subr.bf16.mxu0 0
      %3533 = vmatpush1.bf16.msra.mxu0 0
      %3534 = vmatprep.subr.bf16.mxu0 0
      %3535 = vmatpush1.bf16.msra.mxu0 0
      %3536 = vmatprep.subr.bf16.mxu0 0
      %3537 = vmatpush1.bf16.msra.mxu0 0
      %3538 = vmatprep.subr.bf16.mxu0 0
      %3539 = vmatpush1.bf16.msra.mxu0 0
      %3540 = vmatprep.subr.bf16.mxu0 0
      %3541 = vmatpush1.bf16.msra.mxu0 0
      %3542 = vmatprep.subr.bf16.mxu0 0
      %3543 = vmatpush1.bf16.msra.mxu0 0
      %3544 = vmatprep.subr.bf16.mxu0 0
      %3545 = vmatpush1.bf16.msra.mxu0 0
      %3546 = vmatprep.mubr.bf16.mxu0 0
      %3547 = vmatmul.mubr.bf16.gmra.mrb[0].mxu0 %v3461
      %v3548 = vpop.f32.mrb[0].mxu0
      %v3549 = vadd.f32 0.0, %v3548
      %v3550 = vpop.f32.mrb[0].mxu0
      %v3551 = vpop.f32.mrb[0].mxu0
      %v3552 = vadd.f32 0.0, %v3551
      %v3553 = vpop.f32.mrb[0].mxu0
      %3554 = vmatprep.mubr.bf16.mxu0 0
      %3555 = vmatmul.mubr.bf16.gmra.mrb[0].mxu0 %v3464
      %v3556 = vpop.f32.mrb[0].mxu0
      %v3557 = vadd.f32 0.0, %v3556
      %v3558 = vpop.f32.mrb[0].mxu0
      %v3559 = vpop.f32.mrb[0].mxu0
      %v3560 = vadd.f32 0.0, %v3559
      %v3561 = vpop.f32.mrb[0].mxu0
      %3562 = vmatprep.mubr.bf16.mxu0 0
      %3563 = vmatmul.mubr.bf16.gmra.mrb[0].mxu0 %v3467
      %v3564 = vpop.f32.mrb[0].mxu0
      %v3565 = vadd.f32 0.0, %v3564
      %v3566 = vpop.f32.mrb[0].mxu0
      %v3567 = vpop.f32.mrb[0].mxu0
      %v3568 = vadd.f32 0.0, %v3567
      %v3569 = vpop.f32.mrb[0].mxu0
      %3570 = vmatprep.mubr.bf16.mxu0 0
      %3571 = vmatmul.mubr.bf16.gmra.mrb[0].mxu0 %v3470
      %v3572 = vpop.f32.mrb[0].mxu0
      %v3573 = vadd.f32 0.0, %v3572
      %v3574 = vpop.f32.mrb[0].mxu0
      %v3575 = vpop.f32.mrb[0].mxu0
      %v3576 = vadd.f32 0.0, %v3575
      %v3577 = vpop.f32.mrb[0].mxu0
      %3578 = vmatprep.mubr.bf16.mxu0 0
      %3579 = vmatmul.mubr.bf16.gmra.mrb[0].mxu0 %v3473
      %v3580 = vpop.f32.mrb[0].mxu0
      %v3581 = vadd.f32 0.0, %v3580
      %v3582 = vpop.f32.mrb[0].mxu0
      %v3583 = vpop.f32.mrb[0].mxu0
      %v3584 = vadd.f32 0.0, %v3583
      %v3585 = vpop.f32.mrb[0].mxu0
      %3586 = vmatprep.mubr.bf16.mxu0 0
      %3587 = vmatmul.mubr.bf16.gmra.mrb[0].mxu0 %v3476
      %v3588 = vpop.f32.mrb[0].mxu0
      %v3589 = vadd.f32 0.0, %v3588
      %v3590 = vpop.f32.mrb[0].mxu0
      %v3591 = vpop.f32.mrb[0].mxu0
      %v3592 = vadd.f32 0.0, %v3591
      %v3593 = vpop.f32.mrb[0].mxu0
      %3594 = vmatprep.mubr.bf16.mxu0 0
      %3595 = vmatmul.mubr.bf16.gmra.mrb[0].mxu0 %v3479
      %v3596 = vpop.f32.mrb[0].mxu0
      %v3597 = vadd.f32 0.0, %v3596
      %v3598 = vpop.f32.mrb[0].mxu0
      %v3599 = vpop.f32.mrb[0].mxu0
      %v3600 = vadd.f32 0.0, %v3599
      %v3601 = vpop.f32.mrb[0].mxu0
      %3602 = vmatprep.mubr.bf16.mxu0 0
      %3603 = vmatmul.mubr.bf16.gmra.mrb[0].mxu0 %v3482
      %v3604 = vpop.f32.mrb[0].mxu0
      %v3605 = vadd.f32 0.0, %v3604
      %v3606 = vpop.f32.mrb[0].mxu0
      %v3607 = vpop.f32.mrb[0].mxu0
      %v3608 = vadd.f32 0.0, %v3607
      %v3609 = vpop.f32.mrb[0].mxu0
      %3610 = vmatprep.mubr.bf16.mxu0 0
      %3611 = vmatmul.mubr.bf16.gmra.mrb[0].mxu0 %v3485
      %v3612 = vpop.f32.mrb[0].mxu0
      %v3613 = vadd.f32 0.0, %v3612
      %v3614 = vpop.f32.mrb[0].mxu0
      %v3615 = vpop.f32.mrb[0].mxu0
      %v3616 = vadd.f32 0.0, %v3615
      %v3617 = vpop.f32.mrb[0].mxu0
      %3618 = vmatprep.mubr.bf16.mxu0 0
      %3619 = vmatmul.mubr.bf16.gmra.mrb[0].mxu0 %v3488
      %v3620 = vpop.f32.mrb[0].mxu0
      %v3621 = vadd.f32 0.0, %v3620
      %v3622 = vpop.f32.mrb[0].mxu0
      %v3623 = vpop.f32.mrb[0].mxu0
      %v3624 = vadd.f32 0.0, %v3623
      %v3625 = vpop.f32.mrb[0].mxu0
      %3626 = vmatprep.mubr.bf16.mxu0 0
      %3627 = vmatmul.mubr.bf16.gmra.mrb[0].mxu0 %v3491
      %v3628 = vpop.f32.mrb[0].mxu0
      %v3629 = vadd.f32 0.0, %v3628
      %v3630 = vpop.f32.mrb[0].mxu0
      %v3631 = vpop.f32.mrb[0].mxu0
      %v3632 = vadd.f32 0.0, %v3631
      %v3633 = vpop.f32.mrb[0].mxu0
      %3634 = vmatprep.mubr.bf16.mxu0 0
      %3635 = vmatmul.mubr.bf16.gmra.mrb[0].mxu0 %v3494
      %v3636 = vpop.f32.mrb[0].mxu0
      %v3637 = vadd.f32 0.0, %v3636
      %v3638 = vpop.f32.mrb[0].mxu0
      %v3639 = vpop.f32.mrb[0].mxu0
      %v3640 = vadd.f32 0.0, %v3639
      %v3641 = vpop.f32.mrb[0].mxu0
      %3642 = vmatprep.mubr.bf16.mxu0 0
      %3643 = vmatmul.mubr.bf16.gmra.mrb[0].mxu0 %v3497
      %v3644 = vpop.f32.mrb[0].mxu0
      %v3645 = vadd.f32 0.0, %v3644
      %v3646 = vpop.f32.mrb[0].mxu0
      %v3647 = vpop.f32.mrb[0].mxu0
      %v3648 = vadd.f32 0.0, %v3647
      %v3649 = vpop.f32.mrb[0].mxu0
      %3650 = vmatprep.mubr.bf16.mxu0 0
      %3651 = vmatmul.mubr.bf16.gmra.mrb[0].mxu0 %v3500
      %v3652 = vpop.f32.mrb[0].mxu0
      %v3653 = vadd.f32 0.0, %v3652
      %v3654 = vpop.f32.mrb[0].mxu0
      %v3655 = vpop.f32.mrb[0].mxu0
      %v3656 = vadd.f32 0.0, %v3655
      %v3657 = vpop.f32.mrb[0].mxu0
      %3658 = vmatprep.mubr.bf16.mxu0 0
      %3659 = vmatmul.mubr.bf16.gmra.mrb[0].mxu0 %v3503
      %v3660 = vpop.f32.mrb[0].mxu0
      %v3661 = vadd.f32 0.0, %v3660
      %v3662 = vpop.f32.mrb[0].mxu0
      %v3663 = vpop.f32.mrb[0].mxu0
      %v3664 = vadd.f32 0.0, %v3663
      %v3665 = vpop.f32.mrb[0].mxu0
      %3666 = vmatprep.mubr.bf16.mxu0 0
      %3667 = vmatmul.mubr.bf16.gmra.mrb[0].mxu0 %v3506
      %v3668 = vpop.f32.mrb[0].mxu0
      %v3669 = vadd.f32 0.0, %v3668
      %v3670 = vpop.f32.mrb[0].mxu0
      %v3671 = vpop.f32.mrb[0].mxu0
      %v3672 = vadd.f32 0.0, %v3671
      %v3673 = vpop.f32.mrb[0].mxu0
      %3674 = vmatprep.mubr.bf16.mxu0 0
      %3675 = vmatmul.mubr.bf16.gmra.mrb[0].mxu0 %v3509
      %v3676 = vpop.f32.mrb[0].mxu0
      %v3677 = vadd.f32 0.0, %v3676
      %v3678 = vpop.f32.mrb[0].mxu0
      %v3679 = vpop.f32.mrb[0].mxu0
      %v3680 = vadd.f32 0.0, %v3679
      %v3681 = vpop.f32.mrb[0].mxu0
      %3682 = vmatprep.mubr.bf16.mxu0 0
      %3683 = vmatmul.mubr.bf16.gmra.mrb[0].mxu0 %v3512
      %v3684 = vpop.f32.mrb[0].mxu0
      %v3685 = vadd.f32 0.0, %v3684
      %v3686 = vpop.f32.mrb[0].mxu0
      %v3687 = vpop.f32.mrb[0].mxu0
      %v3688 = vadd.f32 0.0, %v3687
      %v3689 = vpop.f32.mrb[0].mxu0
      %3690 = vdwg.mxu0
      %v3691 = vadd.f32 %v3365, %v3549
      %v3692 = vadd.f32 %v3366, %v3552
      %v3693 = vadd.f32 %v3367, %v3557
      %v3694 = vadd.f32 %v3368, %v3560
      %v3695 = vadd.f32 %v3369, %v3565
      %v3696 = vadd.f32 %v3370, %v3568
      %v3697 = vadd.f32 %v3371, %v3573
      %v3698 = vadd.f32 %v3372, %v3576
      %v3699 = vadd.f32 %v3373, %v3581
      %v3700 = vadd.f32 %v3374, %v3584
      %v3701 = vadd.f32 %v3375, %v3589
      %v3702 = vadd.f32 %v3376, %v3592
      %v3703 = vadd.f32 %v3377, %v3597
      %v3704 = vadd.f32 %v3378, %v3600
      %v3705 = vadd.f32 %v3379, %v3605
      %v3706 = vadd.f32 %v3380, %v3608
      %v3707 = vadd.f32 %v3381, %v3613
      %v3708 = vadd.f32 %v3382, %v3616
      %v3709 = vadd.f32 %v3383, %v3621
      %v3710 = vadd.f32 %v3384, %v3624
      %v3711 = vadd.f32 %v3385, %v3629
      %v3712 = vadd.f32 %v3386, %v3632
      %v3713 = vadd.f32 %v3387, %v3637
      %v3714 = vadd.f32 %v3388, %v3640
      %v3715 = vadd.f32 %v3389, %v3645
      %v3716 = vadd.f32 %v3390, %v3648
      %v3717 = vadd.f32 %v3391, %v3653
      %v3718 = vadd.f32 %v3392, %v3656
      %v3719 = vadd.f32 %v3393, %v3661
      %v3720 = vadd.f32 %v3394, %v3664
      %v3721 = vadd.f32 %v3395, %v3669
      %v3722 = vadd.f32 %v3396, %v3672
      %v3723 = vadd.f32 %v3397, %v3677
      %v3724 = vadd.f32 %v3398, %v3680
      %v3725 = vadd.f32 %v3399, %v3685
      %v3726 = vadd.f32 %v3400, %v3688
      %v3727 = vld [vmem:[%s2] sm:$0x1]
      %v3729 = vlaneseq
      %v3730 = vshrl.u32 %v3729, 7
      %v3731 = vsub.s32 0, %v3730
      %v3732 = vrot.slane %v3727, %v3731
      %v3734 = vadd.f32 %v3691, %v3732
      %v3735 = vadd.f32 %v3692, %v3732
      %v3736 = vadd.f32 %v3693, %v3732
      %v3737 = vadd.f32 %v3694, %v3732
      %v3738 = vadd.f32 %v3695, %v3732
      %v3739 = vadd.f32 %v3696, %v3732
      %v3740 = vadd.f32 %v3697, %v3732
      %v3741 = vadd.f32 %v3698, %v3732
      %v3742 = vadd.f32 %v3699, %v3732
      %v3743 = vadd.f32 %v3700, %v3732
      %v3744 = vadd.f32 %v3701, %v3732
      %v3745 = vadd.f32 %v3702, %v3732
      %v3746 = vadd.f32 %v3703, %v3732
      %v3747 = vadd.f32 %v3704, %v3732
      %v3748 = vadd.f32 %v3705, %v3732
      %v3749 = vadd.f32 %v3706, %v3732
      %v3750 = vadd.f32 %v3707, %v3732
      %v3751 = vadd.f32 %v3708, %v3732
      %v3752 = vadd.f32 %v3709, %v3732
      %v3753 = vadd.f32 %v3710, %v3732
      %v3754 = vadd.f32 %v3711, %v3732
      %v3755 = vadd.f32 %v3712, %v3732
      %v3756 = vadd.f32 %v3713, %v3732
      %v3757 = vadd.f32 %v3714, %v3732
      %v3758 = vadd.f32 %v3715, %v3732
      %v3759 = vadd.f32 %v3716, %v3732
      %v3760 = vadd.f32 %v3717, %v3732
      %v3761 = vadd.f32 %v3718, %v3732
      %v3762 = vadd.f32 %v3719, %v3732
      %v3763 = vadd.f32 %v3720, %v3732
      %v3764 = vadd.f32 %v3721, %v3732
      %v3765 = vadd.f32 %v3722, %v3732
      %v3766 = vadd.f32 %v3723, %v3732
      %v3767 = vadd.f32 %v3724, %v3732
      %v3768 = vadd.f32 %v3725, %v3732
      %v3769 = vadd.f32 %v3726, %v3732
      %v3770 = vmax.f32 %v3734, 0.0
      %v3771 = vmax.f32 %v3735, 0.0
      %v3772 = vmax.f32 %v3736, 0.0
      %v3773 = vmax.f32 %v3737, 0.0
      %v3774 = vmax.f32 %v3738, 0.0
      %v3775 = vmax.f32 %v3739, 0.0
      %v3776 = vmax.f32 %v3740, 0.0
      %v3777 = vmax.f32 %v3741, 0.0
      %v3778 = vmax.f32 %v3742, 0.0
      %v3779 = vmax.f32 %v3743, 0.0
      %v3780 = vmax.f32 %v3744, 0.0
      %v3781 = vmax.f32 %v3745, 0.0
      %v3782 = vmax.f32 %v3746, 0.0
      %v3783 = vmax.f32 %v3747, 0.0
      %v3784 = vmax.f32 %v3748, 0.0
      %v3785 = vmax.f32 %v3749, 0.0
      %v3786 = vmax.f32 %v3750, 0.0
      %v3787 = vmax.f32 %v3751, 0.0
      %v3788 = vmax.f32 %v3752, 0.0
      %v3789 = vmax.f32 %v3753, 0.0
      %v3790 = vmax.f32 %v3754, 0.0
      %v3791 = vmax.f32 %v3755, 0.0
      %v3792 = vmax.f32 %v3756, 0.0
      %v3793 = vmax.f32 %v3757, 0.0
      %v3794 = vmax.f32 %v3758, 0.0
      %v3795 = vmax.f32 %v3759, 0.0
      %v3796 = vmax.f32 %v3760, 0.0
      %v3797 = vmax.f32 %v3761, 0.0
      %v3798 = vmax.f32 %v3762, 0.0
      %v3799 = vmax.f32 %v3763, 0.0
      %v3800 = vmax.f32 %v3764, 0.0
      %v3801 = vmax.f32 %v3765, 0.0
      %v3802 = vmax.f32 %v3766, 0.0
      %v3803 = vmax.f32 %v3767, 0.0
      %v3804 = vmax.f32 %v3768, 0.0
      %v3805 = vmax.f32 %v3769, 0.0
      %v3806 = vpack.c.bf16 %v3771, %v3770
      %v3807 = vpack.c.bf16 %v3773, %v3772
      %v3808 = vpack.c.bf16 %v3775, %v3774
      %v3809 = vpack.c.bf16 %v3777, %v3776
      %v3810 = vpack.c.bf16 %v3779, %v3778
      %v3811 = vpack.c.bf16 %v3781, %v3780
      %v3812 = vpack.c.bf16 %v3783, %v3782
      %v3813 = vpack.c.bf16 %v3785, %v3784
      %v3814 = vpack.c.bf16 %v3787, %v3786
      %v3815 = vpack.c.bf16 %v3789, %v3788
      %v3816 = vpack.c.bf16 %v3791, %v3790
      %v3817 = vpack.c.bf16 %v3793, %v3792
      %v3818 = vpack.c.bf16 %v3795, %v3794
      %v3819 = vpack.c.bf16 %v3797, %v3796
      %v3820 = vpack.c.bf16 %v3799, %v3798
      %v3821 = vpack.c.bf16 %v3801, %v3800
      %v3822 = vpack.c.bf16 %v3803, %v3802
      %v3823 = vpack.c.bf16 %v3805, %v3804
      %v3842 = vunpack.c.l.b16 %v3806
      %v3843 = vunpack.c.h.b16 %v3806
      %v3844 = vunpack.c.l.b16 %v3807
      %v3845 = vunpack.c.h.b16 %v3807
      %v3846 = vunpack.c.l.b16 %v3808
      %v3847 = vunpack.c.h.b16 %v3808
      %v3848 = vunpack.c.l.b16 %v3809
      %v3849 = vunpack.c.h.b16 %v3809
      %v3850 = vunpack.c.l.b16 %v3810
      %v3851 = vunpack.c.h.b16 %v3810
      %v3852 = vunpack.c.l.b16 %v3811
      %v3853 = vunpack.c.h.b16 %v3811
      %v3854 = vunpack.c.l.b16 %v3812
      %v3855 = vunpack.c.h.b16 %v3812
      %v3856 = vunpack.c.l.b16 %v3813
      %v3857 = vunpack.c.h.b16 %v3813
      %v3858 = vunpack.c.l.b16 %v3814
      %v3859 = vunpack.c.h.b16 %v3814
      %v3860 = vunpack.c.l.b16 %v3815
      %v3861 = vunpack.c.h.b16 %v3815
      %v3862 = vunpack.c.l.b16 %v3816
      %v3863 = vunpack.c.h.b16 %v3816
      %v3864 = vunpack.c.l.b16 %v3817
      %v3865 = vunpack.c.h.b16 %v3817
      %v3866 = vunpack.c.l.b16 %v3818
      %v3867 = vunpack.c.h.b16 %v3818
      %v3868 = vunpack.c.l.b16 %v3819
      %v3869 = vunpack.c.h.b16 %v3819
      %v3870 = vunpack.c.l.b16 %v3820
      %v3871 = vunpack.c.h.b16 %v3820
      %v3872 = vunpack.c.l.b16 %v3821
      %v3873 = vunpack.c.h.b16 %v3821
      %v3874 = vunpack.c.l.b16 %v3822
      %v3875 = vunpack.c.h.b16 %v3822
      %v3876 = vunpack.c.l.b16 %v3823
      %v3877 = vunpack.c.h.b16 %v3823
      %v3878 = vpack.c.b16 %v3842, %v3842
      %v3879 = vpack.c.b16 %v3843, %v3843
      %v3880 = vpack.c.b16 %v3844, %v3844
      %v3881 = vpack.c.b16 %v3845, %v3845
      %v3882 = vpack.c.b16 %v3846, %v3846
      %v3883 = vpack.c.b16 %v3847, %v3847
      %v3884 = vpack.c.b16 %v3848, %v3848
      %v3885 = vpack.c.b16 %v3849, %v3849
      %v3886 = vpack.c.b16 %v3850, %v3850
      %v3887 = vpack.c.b16 %v3851, %v3851
      %v3888 = vpack.c.b16 %v3852, %v3852
      %v3889 = vpack.c.b16 %v3853, %v3853
      %v3890 = vpack.c.b16 %v3854, %v3854
      %v3891 = vpack.c.b16 %v3855, %v3855
      %v3892 = vpack.c.b16 %v3856, %v3856
      %v3893 = vpack.c.b16 %v3857, %v3857
      %v3894 = vpack.c.b16 %v3858, %v3858
      %v3895 = vpack.c.b16 %v3859, %v3859
      %v3896 = vpack.c.b16 %v3860, %v3860
      %v3897 = vpack.c.b16 %v3861, %v3861
      %v3898 = vpack.c.b16 %v3862, %v3862
      %v3899 = vpack.c.b16 %v3863, %v3863
      %v3900 = vpack.c.b16 %v3864, %v3864
      %v3901 = vpack.c.b16 %v3865, %v3865
      %v3902 = vpack.c.b16 %v3866, %v3866
      %v3903 = vpack.c.b16 %v3867, %v3867
      %v3904 = vpack.c.b16 %v3868, %v3868
      %v3905 = vpack.c.b16 %v3869, %v3869
      %v3906 = vpack.c.b16 %v3870, %v3870
      %v3907 = vpack.c.b16 %v3871, %v3871
      %v3908 = vpack.c.b16 %v3872, %v3872
      %v3909 = vpack.c.b16 %v3873, %v3873
      %v3910 = vpack.c.b16 %v3874, %v3874
      %v3911 = vpack.c.b16 %v3875, %v3875
      %v3912 = vpack.c.b16 %v3876, %v3876
      %v3913 = vpack.c.b16 %v3877, %v3877
      %vm3950 = vcmask 257024
      %3951 = vst.msk [vmem:[%s170] sm:$0xf] %vm3950, %v3878
      %3952 = vst.msk [vmem:[%s170 + $0x4] sm:$0xf] %vm3950, %v3879
      %3953 = vst.msk [vmem:[%s170 + $0x8] sm:$0xf] %vm3950, %v3880
      %3954 = vst.msk [vmem:[%s170 + $0xc] sm:$0xf] %vm3950, %v3881
      %3955 = vst.msk [vmem:[%s170 + $0x10] sm:$0xf] %vm3950, %v3882
      %3956 = vst.msk [vmem:[%s170 + $0x14] sm:$0xf] %vm3950, %v3883
      %3957 = vst.msk [vmem:[%s170 + $0x18] sm:$0xf] %vm3950, %v3884
      %3958 = vst.msk [vmem:[%s170 + $0x1c] sm:$0xf] %vm3950, %v3885
      %3959 = vst.msk [vmem:[%s170 + $0x20] sm:$0xf] %vm3950, %v3886
      %3960 = vst.msk [vmem:[%s170 + $0x24] sm:$0xf] %vm3950, %v3887
      %3961 = vst.msk [vmem:[%s170 + $0x28] sm:$0xf] %vm3950, %v3888
      %3962 = vst.msk [vmem:[%s170 + $0x2c] sm:$0xf] %vm3950, %v3889
      %3963 = vst.msk [vmem:[%s170 + $0x30] sm:$0xf] %vm3950, %v3890
      %3964 = vst.msk [vmem:[%s170 + $0x34] sm:$0xf] %vm3950, %v3891
      %3965 = vst.msk [vmem:[%s170 + $0x38] sm:$0xf] %vm3950, %v3892
      %3966 = vst.msk [vmem:[%s170 + $0x3c] sm:$0xf] %vm3950, %v3893
      %3967 = vst.msk [vmem:[%s170 + $0x40] sm:$0xf] %vm3950, %v3894
      %3968 = vst.msk [vmem:[%s170 + $0x44] sm:$0xf] %vm3950, %v3895
      %3969 = vst.msk [vmem:[%s170 + $0x48] sm:$0xf] %vm3950, %v3896
      %3970 = vst.msk [vmem:[%s170 + $0x4c] sm:$0xf] %vm3950, %v3897
      %3971 = vst.msk [vmem:[%s170 + $0x50] sm:$0xf] %vm3950, %v3898
      %3972 = vst.msk [vmem:[%s170 + $0x54] sm:$0xf] %vm3950, %v3899
      %3973 = vst.msk [vmem:[%s170 + $0x58] sm:$0xf] %vm3950, %v3900
      %3974 = vst.msk [vmem:[%s170 + $0x5c] sm:$0xf] %vm3950, %v3901
      %3975 = vst.msk [vmem:[%s170 + $0x60] sm:$0xf] %vm3950, %v3902
      %3976 = vst.msk [vmem:[%s170 + $0x64] sm:$0xf] %vm3950, %v3903
      %3977 = vst.msk [vmem:[%s170 + $0x68] sm:$0xf] %vm3950, %v3904
      %3978 = vst.msk [vmem:[%s170 + $0x6c] sm:$0xf] %vm3950, %v3905
      %3979 = vst.msk [vmem:[%s170 + $0x70] sm:$0xf] %vm3950, %v3906
      %3980 = vst.msk [vmem:[%s170 + $0x74] sm:$0xf] %vm3950, %v3907
      %3981 = vst.msk [vmem:[%s170 + $0x78] sm:$0xf] %vm3950, %v3908
      %3982 = vst.msk [vmem:[%s170 + $0x7c] sm:$0xf] %vm3950, %v3909
      %3983 = vst.msk [vmem:[%s170 + $0x80] sm:$0xf] %vm3950, %v3910
      %3984 = vst.msk [vmem:[%s170 + $0x84] sm:$0xf] %vm3950, %v3911
      %3985 = vst.msk [vmem:[%s170 + $0x88] sm:$0xf] %vm3950, %v3912
      %3986 = vst.msk [vmem:[%s170 + $0x8c] sm:$0xf] %vm3950, %v3913
      %p3987 = scmp.lt.s32.totalorder %s14, 1
      %s3988 = scalar_select %p3987, %s14, 1
      %s3989 = smul.addr %s3988, 36
      %s3990 = smul.addr %s3989, 4
      %s3991 = scalar_lea.vmem %s3, %s3990
      // Predicated region
      $region33: #{bottleneck_forward.4} parent=31 // pred_check
        %p3992 = pneg %p100
      $region34: #{bottleneck_forward.4} parent=31 // pred_check_branch
        %3994 = sbr.rel (%p3992) target = $region36
      $region35: #{bottleneck_forward.4} parent=31 // pred_region
        _
      $region36: #{bottleneck_forward.4} parent=31 // pred_fallthru
        _
    $region32: #{bottleneck_forward.4} parent=5 // pred_fallthru
      _
    %p3995 = scmp.le.s32.totalorder 2, %s9
    // Predicated region
    $region37: #{bottleneck_forward.4} parent=5 // pred_check
      %p3996 = pneg %p3995
    $region38: #{bottleneck_forward.4} parent=5 // pred_check_branch
      %3998 = sbr.rel (%p3996) target = $region40
    $region39: #{bottleneck_forward.4} parent=5 // pred_region
      %s3999 = ssub.s32 %s9, 2
      // Predicated region
      $region41: #{bottleneck_forward.4} parent=39 // pred_check
        %p4000 = pneg %p106
      $region42: #{bottleneck_forward.4} parent=39 // pred_check_branch
        %4002 = sbr.rel (%p4000) target = $region44
      $region43: #{bottleneck_forward.4} parent=39 // pred_region
        %p4003 = scmp.lt.s32.totalorder %s15, 1
        %s4004 = scalar_select %p4003, %s15, 1
        %s4005 = smul.addr %s4004, 36
        %s4006 = smul.addr %s4005, 4
        %s4007 = scalar_lea.vmem %s3, %s4006
      $region44: #{bottleneck_forward.4} parent=39 // pred_fallthru
        _
    $region40: #{bottleneck_forward.4} parent=5 // pred_fallthru
      _
  $region6: #{bottleneck_forward.4} parent=0 // loop_footer
    %s13 = sadd.s32 1, %s9
  $region7: #{bottleneck_forward.4} parent=0 // loop_footer_branch
    %8 = sbr.rel target = $region3
  $region8: #{bottleneck_forward.4} parent=0 // loop_exit
    _

</llo_original>
